<compile_context>
chip_gen: v5e
topology: v5e:2x2
jax: 0.10.0
libtpu: 0.0.40
codegen_flags: <defaults>
</compile_context>

<pallas_src>
import math

import numpy as np

import jax
import jax.numpy as jnp
from jax.experimental import pallas as pl
from jax.experimental.pallas import tpu as pltpu


def _round_up(x, m):
    return (x + m - 1) // m * m


# --------------------------------------------------------------------------
# Parameter preparation (one-time, host/XLA side)
# --------------------------------------------------------------------------
def prepare_params(params):
    """Convert PyTorch-convention params into the kernel's matmul-friendly form."""

    def toeplitz(w_hwio, w_in):
        # T[p][kh, w*Cin+ci, j*Cout+co] = w[kh, kw, ci, co] for w == 2*j + p + kw.
        # A conv row then becomes a dot; parity p in {0,1} gives the two output
        # columns of each 2-wide max-pool window.
        KH, KW, Cin, Cout = w_hwio.shape
        owp = (w_in - KW + 1) // 2
        planes = []
        for parity in (0, 1):
            sel = np.zeros((KW, w_in, owp), np.float32)
            for kw in range(KW):
                for j in range(owp):
                    sel[kw, 2 * j + parity + kw, j] = 1.0
            t = jnp.einsum("hwio,wWj->hWijo", w_hwio, sel)   # (KH, W, Cin, owp, Cout)
            planes.append(t.reshape(KH, w_in * Cin, owp * Cout))
        return planes                                         # 2 x (KH, W*Cin, owp*Cout)

    # conv1: fuse the 5 kernel-row planes along K and the 2 parities along N
    # (each parity padded 240 -> 256 lanes) -> a single (140, 512) weight.
    t1 = toeplitz(params["w1"], 28)                           # 2 x (5, 28, 240)
    wt1 = jnp.concatenate(
        [jnp.pad(t.reshape(140, 240), ((0, 0), (0, 16))) for t in t1],
        axis=1).astype(jnp.bfloat16)                          # (140, 512)
    b1t = jnp.pad(jnp.tile(params["b1"], 12), (0, 16)).reshape(1, 256)

    # conv2: one plane per kernel row (K=240 already fills the MXU depth),
    # parities concatenated along N (each padded 200 -> 256) -> (5, 256, 512).
    t2 = toeplitz(params["w2"], 12)                           # 2 x (5, 240, 200)
    wt2 = jnp.concatenate(
        [jnp.pad(t, ((0, 0), (0, 16), (0, 56))) for t in t2],
        axis=2).astype(jnp.bfloat16)                          # (5, 256, 512)
    b2t = jnp.pad(jnp.tile(params["b2"], 4), (0, 56)).reshape(1, 256)

    # fc1 rows are stored in PyTorch flatten order (c*16 + h*4 + w); permute to
    # the kernel's (h, w, c) order, pre-chunk along h, pad to 256/512 lanes.
    fw1 = (params["fw1"].reshape(50, 4, 4, 500)
           .transpose(1, 2, 0, 3)
           .reshape(4, 200, 500))
    fw1 = jnp.pad(fw1, ((0, 0), (0, 56), (0, 12))).astype(jnp.bfloat16)   # (4, 256, 512)
    fb1 = jnp.pad(params["fb1"], (0, 12)).reshape(1, 512)

    # fc2: pad to 128 output lanes (zero weights, -1e30 biases in pad columns)
    # so the output store is lane-dense and log_softmax over the 10 real
    # classes is unchanged.
    fw2 = jnp.pad(params["fw2"], ((0, 12), (0, 118))).astype(jnp.bfloat16)  # (512, 128)
    fb2 = jnp.full((1, 128), -1e30, jnp.float32).at[0, :10].set(
        params["fb2"].astype(jnp.float32))

    return {
        "wt1": wt1, "b1t": b1t.astype(jnp.float32),
        "wt2": wt2, "b2t": b2t.astype(jnp.float32),
        "fw1": fw1, "fb1": fb1.astype(jnp.float32),
        "fw2": fw2, "fb2": fb2,
    }


# --------------------------------------------------------------------------
# Fused kernel
# --------------------------------------------------------------------------
def _pool_bias_relu(acc, b_ref, OHp, B):
    """acc: (2*OHp*B, 512) f32 with even|odd parity halves along lanes.

    Returns (OHp, B, 256) = relu(maxpool2x2(conv) + b).  Parity halves give the
    W-pool as an aligned slice + element-wise max; the H-pool is a max over an
    outer (row-block) axis.  Bias + ReLU commute with max-pool (monotonic).
    """
    m = jnp.maximum(acc[:, :256], acc[:, 256:])       # max-pool along W
    m = m.reshape(OHp, 2, B, 256)
    m = jnp.maximum(m[:, 0], m[:, 1])                 # max-pool along H
    return jnp.maximum(m + b_ref[...], 0.0)           # bias + ReLU


def _net_fused_kernel(x_ref, wt1_ref, b1t_ref, wt2_ref, b2t_ref,
                      fw1_ref, fb1_ref, fw2_ref, fb2_ref, o_ref):
    B = x_ref.shape[2]
    bf16 = jnp.bfloat16

    # ---- conv1 + pool: single MXU dot (kh fused along K, parities along N) ----
    lhs1 = x_ref[0].reshape(24 * B, 140).astype(bf16)          # pre-shifted input
    c1 = jnp.dot(lhs1, wt1_ref[...], preferred_element_type=jnp.float32)  # (24B, 512)
    h1 = _pool_bias_relu(c1, b1t_ref, 12, B)                   # (12, B, 256)

    # ---- conv2 + pool: one dot per kernel row (parities along N) ----
    acc = None
    for kh in range(5):
        lhs = h1[kh:kh + 8].reshape(8 * B, 256).astype(bf16)
        d = jnp.dot(lhs, wt2_ref[kh], preferred_element_type=jnp.float32)
        acc = d if acc is None else acc + d                    # (8B, 512)
    h2 = _pool_bias_relu(acc, b2t_ref, 4, B)                   # (4, B, 256)

    # ---- fc1: flatten (h, w, c) folded into 4 chunked dots + ReLU ----
    acc = None
    for i in range(4):
        d = jnp.dot(h2[i].astype(bf16), fw1_ref[i],
                    preferred_element_type=jnp.float32)
        acc = d if acc is None else acc + d
    h3 = jnp.maximum(acc + fb1_ref[...], 0.0)                  # (B, 512); pad cols 0

    # ---- fc2 (128 padded lanes) + log_softmax ----
    logits = jnp.dot(h3.astype(bf16), fw2_ref[...],
                     preferred_element_type=jnp.float32) + fb2_ref[...]   # (B, 128)
    mx = jnp.max(logits, axis=1, keepdims=True)
    lse = jnp.log(jnp.sum(jnp.exp(logits - mx), axis=1, keepdims=True)) + mx
    o_ref[...] = (logits - lse).astype(o_ref.dtype)


def net_forward(x_nchw, prep, *, batch_tile=128):
    N, C, H, W = x_nchw.shape
    assert (C, H, W) == (1, 28, 28), "Net requires 1x28x28 inputs"

    # Batch tile: multiple of 8, default 128.  Ensure >= 2 grid steps so both
    # TensorCores on v7x get work (harmless on single-TC v5e/v6e).
    bt = min(batch_tile, _round_up(N, 8))
    if _round_up(N, bt) // bt < 2:
        bt = max(8, _round_up(max(_round_up(N, 8) // 2, 1), 8))
    n_pad = max(_round_up(N, bt), 2 * bt)
    n_tiles = n_pad // bt

    x = x_nchw.reshape(N, 28, 28).astype(jnp.float32)
    if n_pad != N:
        x = jnp.pad(x, ((0, n_pad - N), (0, 0), (0, 0)))
    # Pre-tile so each grid step reads a contiguous HBM block, and pre-stack the
    # 5 kernel-row shifted views along lanes (lane = kh*28 + w) so conv1's LHS
    # inside the kernel is a plain reshape (no in-kernel gather/concat).
    xt = x.reshape(n_tiles, bt, 28, 28).transpose(0, 2, 1, 3)      # (nt, 28, bt, 28)
    x_cat = jnp.concatenate([xt[:, kh:kh + 24] for kh in range(5)], axis=-1)

    out = pl.pallas_call(
        _net_fused_kernel,
        out_shape=jax.ShapeDtypeStruct((n_pad, 128), jnp.float32),
        grid=(n_tiles,),
        in_specs=[
            pl.BlockSpec((1, 24, bt, 140), lambda n: (n, 0, 0, 0)),
            pl.BlockSpec(prep["wt1"].shape, lambda n: (0, 0)),
            pl.BlockSpec(prep["b1t"].shape, lambda n: (0, 0)),
            pl.BlockSpec(prep["wt2"].shape, lambda n: (0, 0, 0)),
            pl.BlockSpec(prep["b2t"].shape, lambda n: (0, 0)),
            pl.BlockSpec(prep["fw1"].shape, lambda n: (0, 0, 0)),
            pl.BlockSpec(prep["fb1"].shape, lambda n: (0, 0)),
            pl.BlockSpec(prep["fw2"].shape, lambda n: (0, 0)),
            pl.BlockSpec(prep["fb2"].shape, lambda n: (0, 0)),
        ],
        out_specs=pl.BlockSpec((bt, 128), lambda n: (n, 0)),
        compiler_params=pltpu.CompilerParams(
            dimension_semantics=("parallel",),
            vmem_limit_bytes=48 * 1024 * 1024),
    )(x_cat, prep["wt1"], prep["b1t"], prep["wt2"], prep["b2t"],
      prep["fw1"], prep["fb1"], prep["fw2"], prep["fb2"])
    return out[:N, :10]


# --------------------------------------------------------------------------
# Pure-JAX reference (PyTorch semantics) and parameter init
# --------------------------------------------------------------------------
def reference_forward(x_nchw, params):
    x = jnp.transpose(x_nchw, (0, 2, 3, 1))

    def conv_block(x, w, b):
        y = jax.lax.conv_general_dilated(
            x, w, (1, 1), "VALID", dimension_numbers=("NHWC", "HWIO", "NHWC"))
        y = jax.nn.relu(y + b.reshape(1, 1, 1, -1))
        return jax.lax.reduce_window(y, -jnp.inf, jax.lax.max,
                                     (1, 2, 2, 1), (1, 2, 2, 1), "VALID")

    x = conv_block(x, params["w1"], params["b1"])
    x = conv_block(x, params["w2"], params["b2"])
    N = x.shape[0]
    x = jnp.transpose(x, (0, 3, 1, 2)).reshape(N, -1)   # PyTorch NCHW flatten
    h = jax.nn.relu(x @ params["fw1"] + params["fb1"])
    logits = h @ params["fw2"] + params["fb2"]
    return jax.nn.log_softmax(logits, axis=1)


def init_params(key):
    def uni(k, shape, fan_in):
        bound = 1.0 / math.sqrt(fan_in)
        return jax.random.uniform(k, shape, jnp.float32, -bound, bound)

    ks = jax.random.split(key, 8)
    return {
        "w1": uni(ks[0], (5, 5, 1, 20), 1 * 5 * 5),      # HWIO
        "b1": uni(ks[1], (20,), 1 * 5 * 5),
        "w2": uni(ks[2], (5, 5, 20, 50), 20 * 5 * 5),    # HWIO
        "b2": uni(ks[3], (50,), 20 * 5 * 5),
        "fw1": uni(ks[4], (800, 500), 800),              # rows in torch (c,h,w) order
        "fb1": uni(ks[5], (500,), 800),
        "fw2": uni(ks[6], (500, 10), 500),
        "fb2": uni(ks[7], (10,), 500),
    }


if __name__ == "__main__":
    root = jax.random.PRNGKey(0)
    pkey, xkey = jax.random.split(root)
    params = init_params(pkey)
    prep = prepare_params(params)                        # one-time weight prep

    # 28x28x1 input is forced by fc1's 4*4*50 flatten; batch kept small.
    x = jax.random.normal(xkey, (2, 1, 28, 28), jnp.float32)

    out = jax.block_until_ready(net_forward(x, prep))
    ref = jax.block_until_ready(reference_forward(x, params))

    assert out.shape == (2, 10), out.shape
    if not jnp.allclose(out, ref, rtol=1e-2, atol=1e-2):
        err = float(jnp.max(jnp.abs(out - ref)))
        raise AssertionError(f"Pallas output does not match reference (max err {err:.4g})")
    print("KERNEL_OK")
</pallas_src>

<mosaic_0001>
module attributes {stable_mosaic.version = 11 : i64} {
  func.func @_net_fused_kernel(%arg0: i32, %arg1: memref<1x24x8x140xf32, #tpu.memory_space<vmem>>, %arg2: memref<140x512xbf16, #tpu.memory_space<vmem>>, %arg3: memref<1x256xf32, #tpu.memory_space<vmem>>, %arg4: memref<5x256x512xbf16, #tpu.memory_space<vmem>>, %arg5: memref<1x256xf32, #tpu.memory_space<vmem>>, %arg6: memref<4x256x512xbf16, #tpu.memory_space<vmem>>, %arg7: memref<1x512xf32, #tpu.memory_space<vmem>>, %arg8: memref<512x128xbf16, #tpu.memory_space<vmem>>, %arg9: memref<1x128xf32, #tpu.memory_space<vmem>>, %arg10: memref<8x128xf32, #tpu.memory_space<vmem>>) attributes {dimension_semantics = [#tpu.dimension_semantics<parallel>], iteration_bounds = array<i64: 2>, scalar_prefetch = 0 : i64, scratch_operands = 0 : i64, tpu.core_type = #tpu.core_type<tc>, window_params = [{transform_indices = @transform_0, window_bounds = array<i64: 1, 24, 8, 140>}, {pipeline_mode = #tpu.pipeline_mode<synchronous>, transform_indices = @transform_1, window_bounds = array<i64: 140, 512>}, {pipeline_mode = #tpu.pipeline_mode<synchronous>, transform_indices = @transform_2, window_bounds = array<i64: 1, 256>}, {pipeline_mode = #tpu.pipeline_mode<synchronous>, transform_indices = @transform_3, window_bounds = array<i64: 5, 256, 512>}, {pipeline_mode = #tpu.pipeline_mode<synchronous>, transform_indices = @transform_4, window_bounds = array<i64: 1, 256>}, {pipeline_mode = #tpu.pipeline_mode<synchronous>, transform_indices = @transform_5, window_bounds = array<i64: 4, 256, 512>}, {pipeline_mode = #tpu.pipeline_mode<synchronous>, transform_indices = @transform_6, window_bounds = array<i64: 1, 512>}, {pipeline_mode = #tpu.pipeline_mode<synchronous>, transform_indices = @transform_7, window_bounds = array<i64: 512, 128>}, {pipeline_mode = #tpu.pipeline_mode<synchronous>, transform_indices = @transform_8, window_bounds = array<i64: 1, 128>}, {transform_indices = @transform_9, window_bounds = array<i64: 8, 128>}]} {
    %c0 = arith.constant 0 : index
    %c0_0 = arith.constant 0 : index
    %c0_1 = arith.constant 0 : index
    %c0_2 = arith.constant 0 : index
    %0 = vector.load %arg1[%c0, %c0_0, %c0_1, %c0_2] : memref<1x24x8x140xf32, #tpu.memory_space<vmem>>, vector<1x24x8x140xf32>
    %1 = vector.shape_cast %0 : vector<1x24x8x140xf32> to vector<24x8x140xf32>
    %2 = vector.shape_cast %1 : vector<24x8x140xf32> to vector<192x140xf32>
    %3 = arith.truncf %2 : vector<192x140xf32> to vector<192x140xbf16>
    %c0_3 = arith.constant 0 : index
    %c0_4 = arith.constant 0 : index
    %4 = vector.load %arg2[%c0_3, %c0_4] : memref<140x512xbf16, #tpu.memory_space<vmem>>, vector<140x512xbf16>
    %cst = arith.constant dense<0.000000e+00> : vector<192x512xf32>
    %5 = tpu.matmul %3, %4, %cst {dimension_numbers = #tpu.dot_dimension_numbers<[1], [0], [0], [1], [0, 0, 1, 1], [], []>} : vector<192x140xbf16>, vector<140x512xbf16>, vector<192x512xf32> -> vector<192x512xf32>
    %6 = vector.extract_strided_slice %5 {offsets = [0, 0], sizes = [192, 256], strides = [1, 1]} : vector<192x512xf32> to vector<192x256xf32>
    %7 = vector.extract_strided_slice %5 {offsets = [0, 256], sizes = [192, 256], strides = [1, 1]} : vector<192x512xf32> to vector<192x256xf32>
    %8 = arith.maximumf %6, %7 : vector<192x256xf32>
    %9 = vector.shape_cast %8 : vector<192x256xf32> to vector<12x2x8x256xf32>
    %10 = vector.extract_strided_slice %9 {offsets = [0, 0, 0, 0], sizes = [12, 1, 8, 256], strides = [1, 1, 1, 1]} : vector<12x2x8x256xf32> to vector<12x1x8x256xf32>
    %11 = vector.shape_cast %10 : vector<12x1x8x256xf32> to vector<12x8x256xf32>
    %12 = vector.extract_strided_slice %9 {offsets = [0, 1, 0, 0], sizes = [12, 1, 8, 256], strides = [1, 1, 1, 1]} : vector<12x2x8x256xf32> to vector<12x1x8x256xf32>
    %13 = vector.shape_cast %12 : vector<12x1x8x256xf32> to vector<12x8x256xf32>
    %14 = arith.maximumf %11, %13 : vector<12x8x256xf32>
    %c0_5 = arith.constant 0 : index
    %c0_6 = arith.constant 0 : index
    %15 = vector.load %arg3[%c0_5, %c0_6] : memref<1x256xf32, #tpu.memory_space<vmem>>, vector<1x256xf32>
    %16 = vector.shape_cast %15 : vector<1x256xf32> to vector<1x1x256xf32>
    %17 = vector.broadcast %16 : vector<1x1x256xf32> to vector<12x8x256xf32>
    %18 = arith.addf %14, %17 : vector<12x8x256xf32>
    %cst_7 = arith.constant 0.000000e+00 : f32
    %19 = vector.broadcast %cst_7 : f32 to vector<12x8x256xf32>
    %20 = arith.maximumf %18, %19 : vector<12x8x256xf32>
    %21 = vector.extract_strided_slice %20 {offsets = [0, 0, 0], sizes = [8, 8, 256], strides = [1, 1, 1]} : vector<12x8x256xf32> to vector<8x8x256xf32>
    %22 = vector.shape_cast %21 : vector<8x8x256xf32> to vector<64x256xf32>
    %23 = arith.truncf %22 : vector<64x256xf32> to vector<64x256xbf16>
    %c0_8 = arith.constant 0 : index
    %c0_9 = arith.constant 0 : index
    %c0_10 = arith.constant 0 : index
    %24 = vector.load %arg4[%c0_8, %c0_9, %c0_10] : memref<5x256x512xbf16, #tpu.memory_space<vmem>>, vector<1x256x512xbf16>
    %25 = vector.shape_cast %24 : vector<1x256x512xbf16> to vector<256x512xbf16>
    %cst_11 = arith.constant dense<0.000000e+00> : vector<64x512xf32>
    %26 = tpu.matmul %23, %25, %cst_11 {dimension_numbers = #tpu.dot_dimension_numbers<[1], [0], [0], [1], [0, 0, 1, 1], [], []>} : vector<64x256xbf16>, vector<256x512xbf16>, vector<64x512xf32> -> vector<64x512xf32>
    %27 = vector.extract_strided_slice %20 {offsets = [1, 0, 0], sizes = [8, 8, 256], strides = [1, 1, 1]} : vector<12x8x256xf32> to vector<8x8x256xf32>
    %28 = vector.shape_cast %27 : vector<8x8x256xf32> to vector<64x256xf32>
    %29 = arith.truncf %28 : vector<64x256xf32> to vector<64x256xbf16>
    %c1 = arith.constant 1 : index
    %c0_12 = arith.constant 0 : index
    %c0_13 = arith.constant 0 : index
    %30 = vector.load %arg4[%c1, %c0_12, %c0_13] : memref<5x256x512xbf16, #tpu.memory_space<vmem>>, vector<1x256x512xbf16>
    %31 = vector.shape_cast %30 : vector<1x256x512xbf16> to vector<256x512xbf16>
    %cst_14 = arith.constant dense<0.000000e+00> : vector<64x512xf32>
    %32 = tpu.matmul %29, %31, %cst_14 {dimension_numbers = #tpu.dot_dimension_numbers<[1], [0], [0], [1], [0, 0, 1, 1], [], []>} : vector<64x256xbf16>, vector<256x512xbf16>, vector<64x512xf32> -> vector<64x512xf32>
    %33 = arith.addf %26, %32 : vector<64x512xf32>
    %34 = vector.extract_strided_slice %20 {offsets = [2, 0, 0], sizes = [8, 8, 256], strides = [1, 1, 1]} : vector<12x8x256xf32> to vector<8x8x256xf32>
    %35 = vector.shape_cast %34 : vector<8x8x256xf32> to vector<64x256xf32>
    %36 = arith.truncf %35 : vector<64x256xf32> to vector<64x256xbf16>
    %c2 = arith.constant 2 : index
    %c0_15 = arith.constant 0 : index
    %c0_16 = arith.constant 0 : index
    %37 = vector.load %arg4[%c2, %c0_15, %c0_16] : memref<5x256x512xbf16, #tpu.memory_space<vmem>>, vector<1x256x512xbf16>
    %38 = vector.shape_cast %37 : vector<1x256x512xbf16> to vector<256x512xbf16>
    %cst_17 = arith.constant dense<0.000000e+00> : vector<64x512xf32>
    %39 = tpu.matmul %36, %38, %cst_17 {dimension_numbers = #tpu.dot_dimension_numbers<[1], [0], [0], [1], [0, 0, 1, 1], [], []>} : vector<64x256xbf16>, vector<256x512xbf16>, vector<64x512xf32> -> vector<64x512xf32>
    %40 = arith.addf %33, %39 : vector<64x512xf32>
    %41 = vector.extract_strided_slice %20 {offsets = [3, 0, 0], sizes = [8, 8, 256], strides = [1, 1, 1]} : vector<12x8x256xf32> to vector<8x8x256xf32>
    %42 = vector.shape_cast %41 : vector<8x8x256xf32> to vector<64x256xf32>
    %43 = arith.truncf %42 : vector<64x256xf32> to vector<64x256xbf16>
    %c3 = arith.constant 3 : index
    %c0_18 = arith.constant 0 : index
    %c0_19 = arith.constant 0 : index
    %44 = vector.load %arg4[%c3, %c0_18, %c0_19] : memref<5x256x512xbf16, #tpu.memory_space<vmem>>, vector<1x256x512xbf16>
    %45 = vector.shape_cast %44 : vector<1x256x512xbf16> to vector<256x512xbf16>
    %cst_20 = arith.constant dense<0.000000e+00> : vector<64x512xf32>
    %46 = tpu.matmul %43, %45, %cst_20 {dimension_numbers = #tpu.dot_dimension_numbers<[1], [0], [0], [1], [0, 0, 1, 1], [], []>} : vector<64x256xbf16>, vector<256x512xbf16>, vector<64x512xf32> -> vector<64x512xf32>
    %47 = arith.addf %40, %46 : vector<64x512xf32>
    %48 = vector.extract_strided_slice %20 {offsets = [4, 0, 0], sizes = [8, 8, 256], strides = [1, 1, 1]} : vector<12x8x256xf32> to vector<8x8x256xf32>
    %49 = vector.shape_cast %48 : vector<8x8x256xf32> to vector<64x256xf32>
    %50 = arith.truncf %49 : vector<64x256xf32> to vector<64x256xbf16>
    %c4 = arith.constant 4 : index
    %c0_21 = arith.constant 0 : index
    %c0_22 = arith.constant 0 : index
    %51 = vector.load %arg4[%c4, %c0_21, %c0_22] : memref<5x256x512xbf16, #tpu.memory_space<vmem>>, vector<1x256x512xbf16>
    %52 = vector.shape_cast %51 : vector<1x256x512xbf16> to vector<256x512xbf16>
    %cst_23 = arith.constant dense<0.000000e+00> : vector<64x512xf32>
    %53 = tpu.matmul %50, %52, %cst_23 {dimension_numbers = #tpu.dot_dimension_numbers<[1], [0], [0], [1], [0, 0, 1, 1], [], []>} : vector<64x256xbf16>, vector<256x512xbf16>, vector<64x512xf32> -> vector<64x512xf32>
    %54 = arith.addf %47, %53 : vector<64x512xf32>
    %55 = vector.extract_strided_slice %54 {offsets = [0, 0], sizes = [64, 256], strides = [1, 1]} : vector<64x512xf32> to vector<64x256xf32>
    %56 = vector.extract_strided_slice %54 {offsets = [0, 256], sizes = [64, 256], strides = [1, 1]} : vector<64x512xf32> to vector<64x256xf32>
    %57 = arith.maximumf %55, %56 : vector<64x256xf32>
    %58 = vector.shape_cast %57 : vector<64x256xf32> to vector<4x2x8x256xf32>
    %59 = vector.extract_strided_slice %58 {offsets = [0, 0, 0, 0], sizes = [4, 1, 8, 256], strides = [1, 1, 1, 1]} : vector<4x2x8x256xf32> to vector<4x1x8x256xf32>
    %60 = vector.shape_cast %59 : vector<4x1x8x256xf32> to vector<4x8x256xf32>
    %61 = vector.extract_strided_slice %58 {offsets = [0, 1, 0, 0], sizes = [4, 1, 8, 256], strides = [1, 1, 1, 1]} : vector<4x2x8x256xf32> to vector<4x1x8x256xf32>
    %62 = vector.shape_cast %61 : vector<4x1x8x256xf32> to vector<4x8x256xf32>
    %63 = arith.maximumf %60, %62 : vector<4x8x256xf32>
    %c0_24 = arith.constant 0 : index
    %c0_25 = arith.constant 0 : index
    %64 = vector.load %arg5[%c0_24, %c0_25] : memref<1x256xf32, #tpu.memory_space<vmem>>, vector<1x256xf32>
    %65 = vector.shape_cast %64 : vector<1x256xf32> to vector<1x1x256xf32>
    %66 = vector.broadcast %65 : vector<1x1x256xf32> to vector<4x8x256xf32>
    %67 = arith.addf %63, %66 : vector<4x8x256xf32>
    %cst_26 = arith.constant 0.000000e+00 : f32
    %68 = vector.broadcast %cst_26 : f32 to vector<4x8x256xf32>
    %69 = arith.maximumf %67, %68 : vector<4x8x256xf32>
    %70 = vector.extract_strided_slice %69 {offsets = [0, 0, 0], sizes = [1, 8, 256], strides = [1, 1, 1]} : vector<4x8x256xf32> to vector<1x8x256xf32>
    %71 = vector.shape_cast %70 : vector<1x8x256xf32> to vector<8x256xf32>
    %72 = arith.truncf %71 : vector<8x256xf32> to vector<8x256xbf16>
    %c0_27 = arith.constant 0 : index
    %c0_28 = arith.constant 0 : index
    %c0_29 = arith.constant 0 : index
    %73 = vector.load %arg6[%c0_27, %c0_28, %c0_29] : memref<4x256x512xbf16, #tpu.memory_space<vmem>>, vector<1x256x512xbf16>
    %74 = vector.shape_cast %73 : vector<1x256x512xbf16> to vector<256x512xbf16>
    %cst_30 = arith.constant dense<0.000000e+00> : vector<8x512xf32>
    %75 = tpu.matmul %72, %74, %cst_30 {dimension_numbers = #tpu.dot_dimension_numbers<[1], [0], [0], [1], [0, 0, 1, 1], [], []>} : vector<8x256xbf16>, vector<256x512xbf16>, vector<8x512xf32> -> vector<8x512xf32>
    %76 = vector.extract_strided_slice %69 {offsets = [1, 0, 0], sizes = [1, 8, 256], strides = [1, 1, 1]} : vector<4x8x256xf32> to vector<1x8x256xf32>
    %77 = vector.shape_cast %76 : vector<1x8x256xf32> to vector<8x256xf32>
    %78 = arith.truncf %77 : vector<8x256xf32> to vector<8x256xbf16>
    %c1_31 = arith.constant 1 : index
    %c0_32 = arith.constant 0 : index
    %c0_33 = arith.constant 0 : index
    %79 = vector.load %arg6[%c1_31, %c0_32, %c0_33] : memref<4x256x512xbf16, #tpu.memory_space<vmem>>, vector<1x256x512xbf16>
    %80 = vector.shape_cast %79 : vector<1x256x512xbf16> to vector<256x512xbf16>
    %cst_34 = arith.constant dense<0.000000e+00> : vector<8x512xf32>
    %81 = tpu.matmul %78, %80, %cst_34 {dimension_numbers = #tpu.dot_dimension_numbers<[1], [0], [0], [1], [0, 0, 1, 1], [], []>} : vector<8x256xbf16>, vector<256x512xbf16>, vector<8x512xf32> -> vector<8x512xf32>
    %82 = arith.addf %75, %81 : vector<8x512xf32>
    %83 = vector.extract_strided_slice %69 {offsets = [2, 0, 0], sizes = [1, 8, 256], strides = [1, 1, 1]} : vector<4x8x256xf32> to vector<1x8x256xf32>
    %84 = vector.shape_cast %83 : vector<1x8x256xf32> to vector<8x256xf32>
    %85 = arith.truncf %84 : vector<8x256xf32> to vector<8x256xbf16>
    %c2_35 = arith.constant 2 : index
    %c0_36 = arith.constant 0 : index
    %c0_37 = arith.constant 0 : index
    %86 = vector.load %arg6[%c2_35, %c0_36, %c0_37] : memref<4x256x512xbf16, #tpu.memory_space<vmem>>, vector<1x256x512xbf16>
    %87 = vector.shape_cast %86 : vector<1x256x512xbf16> to vector<256x512xbf16>
    %cst_38 = arith.constant dense<0.000000e+00> : vector<8x512xf32>
    %88 = tpu.matmul %85, %87, %cst_38 {dimension_numbers = #tpu.dot_dimension_numbers<[1], [0], [0], [1], [0, 0, 1, 1], [], []>} : vector<8x256xbf16>, vector<256x512xbf16>, vector<8x512xf32> -> vector<8x512xf32>
    %89 = arith.addf %82, %88 : vector<8x512xf32>
    %90 = vector.extract_strided_slice %69 {offsets = [3, 0, 0], sizes = [1, 8, 256], strides = [1, 1, 1]} : vector<4x8x256xf32> to vector<1x8x256xf32>
    %91 = vector.shape_cast %90 : vector<1x8x256xf32> to vector<8x256xf32>
    %92 = arith.truncf %91 : vector<8x256xf32> to vector<8x256xbf16>
    %c3_39 = arith.constant 3 : index
    %c0_40 = arith.constant 0 : index
    %c0_41 = arith.constant 0 : index
    %93 = vector.load %arg6[%c3_39, %c0_40, %c0_41] : memref<4x256x512xbf16, #tpu.memory_space<vmem>>, vector<1x256x512xbf16>
    %94 = vector.shape_cast %93 : vector<1x256x512xbf16> to vector<256x512xbf16>
    %cst_42 = arith.constant dense<0.000000e+00> : vector<8x512xf32>
    %95 = tpu.matmul %92, %94, %cst_42 {dimension_numbers = #tpu.dot_dimension_numbers<[1], [0], [0], [1], [0, 0, 1, 1], [], []>} : vector<8x256xbf16>, vector<256x512xbf16>, vector<8x512xf32> -> vector<8x512xf32>
    %96 = arith.addf %89, %95 : vector<8x512xf32>
    %c0_43 = arith.constant 0 : index
    %c0_44 = arith.constant 0 : index
    %97 = vector.load %arg7[%c0_43, %c0_44] : memref<1x512xf32, #tpu.memory_space<vmem>>, vector<1x512xf32>
    %98 = vector.broadcast %97 : vector<1x512xf32> to vector<8x512xf32>
    %99 = arith.addf %96, %98 : vector<8x512xf32>
    %cst_45 = arith.constant 0.000000e+00 : f32
    %100 = vector.broadcast %cst_45 : f32 to vector<8x512xf32>
    %101 = arith.maximumf %99, %100 : vector<8x512xf32>
    %102 = arith.truncf %101 : vector<8x512xf32> to vector<8x512xbf16>
    %c0_46 = arith.constant 0 : index
    %c0_47 = arith.constant 0 : index
    %103 = vector.load %arg8[%c0_46, %c0_47] : memref<512x128xbf16, #tpu.memory_space<vmem>>, vector<512x128xbf16>
    %cst_48 = arith.constant dense<0.000000e+00> : vector<8x128xf32>
    %104 = tpu.matmul %102, %103, %cst_48 {dimension_numbers = #tpu.dot_dimension_numbers<[1], [0], [0], [1], [0, 0, 1, 1], [], []>} : vector<8x512xbf16>, vector<512x128xbf16>, vector<8x128xf32> -> vector<8x128xf32>
    %c0_49 = arith.constant 0 : index
    %c0_50 = arith.constant 0 : index
    %105 = vector.load %arg9[%c0_49, %c0_50] : memref<1x128xf32, #tpu.memory_space<vmem>>, vector<1x128xf32>
    %106 = vector.broadcast %105 : vector<1x128xf32> to vector<8x128xf32>
    %107 = arith.addf %104, %106 : vector<8x128xf32>
    %cst_51 = arith.constant dense<0xFF800000> : vector<8xf32>
    %108 = vector.multi_reduction <maximumf>, %107, %cst_51 [1] : vector<8x128xf32> to vector<8xf32>
    %109 = vector.shape_cast %108 : vector<8xf32> to vector<8x1xf32>
    %110 = vector.broadcast %109 : vector<8x1xf32> to vector<8x128xf32>
    %111 = arith.subf %107, %110 : vector<8x128xf32>
    %112 = math.exp %111 : vector<8x128xf32>
    %cst_52 = arith.constant dense<0.000000e+00> : vector<8xf32>
    %113 = vector.multi_reduction <add>, %112, %cst_52 [1] : vector<8x128xf32> to vector<8xf32>
    %114 = vector.shape_cast %113 : vector<8xf32> to vector<8x1xf32>
    %115 = math.log %114 : vector<8x1xf32>
    %116 = arith.addf %115, %109 : vector<8x1xf32>
    %117 = vector.broadcast %116 : vector<8x1xf32> to vector<8x128xf32>
    %118 = arith.subf %107, %117 : vector<8x128xf32>
    %c0_53 = arith.constant 0 : index
    %c0_54 = arith.constant 0 : index
    %119 = vector.load %arg10[%c0_53, %c0_54] : memref<8x128xf32, #tpu.memory_space<vmem>>, vector<8x128xf32>
    tpu.vector_store %arg10[%c0_53, %c0_54], %118 {strides = array<i32>} : memref<8x128xf32, #tpu.memory_space<vmem>>, vector<8x128xf32>,
    return
  }
  func.func @transform_0(%arg0: i32) -> (i32, i32, i32, i32) {
    %c0_i32 = arith.constant 0 : i32
    %c0_i32_0 = arith.constant 0 : i32
    %c0_i32_1 = arith.constant 0 : i32
    %c0_i32_2 = arith.constant 0 : i32
    return %arg0, %c0_i32, %c0_i32_0, %c0_i32_1 : i32, i32, i32, i32
  }
  func.func @transform_1(%arg0: i32) -> (i32, i32) {
    %c0_i32 = arith.constant 0 : i32
    %c0_i32_0 = arith.constant 0 : i32
    %c0_i32_1 = arith.constant 0 : i32
    return %c0_i32, %c0_i32_0 : i32, i32
  }
  func.func @transform_2(%arg0: i32) -> (i32, i32) {
    %c0_i32 = arith.constant 0 : i32
    %c0_i32_0 = arith.constant 0 : i32
    %c0_i32_1 = arith.constant 0 : i32
    return %c0_i32, %c0_i32_0 : i32, i32
  }
  func.func @transform_3(%arg0: i32) -> (i32, i32, i32) {
    %c0_i32 = arith.constant 0 : i32
    %c0_i32_0 = arith.constant 0 : i32
    %c0_i32_1 = arith.constant 0 : i32
    %c0_i32_2 = arith.constant 0 : i32
    return %c0_i32, %c0_i32_0, %c0_i32_1 : i32, i32, i32
  }
  func.func @transform_4(%arg0: i32) -> (i32, i32) {
    %c0_i32 = arith.constant 0 : i32
    %c0_i32_0 = arith.constant 0 : i32
    %c0_i32_1 = arith.constant 0 : i32
    return %c0_i32, %c0_i32_0 : i32, i32
  }
  func.func @transform_5(%arg0: i32) -> (i32, i32, i32) {
    %c0_i32 = arith.constant 0 : i32
    %c0_i32_0 = arith.constant 0 : i32
    %c0_i32_1 = arith.constant 0 : i32
    %c0_i32_2 = arith.constant 0 : i32
    return %c0_i32, %c0_i32_0, %c0_i32_1 : i32, i32, i32
  }
  func.func @transform_6(%arg0: i32) -> (i32, i32) {
    %c0_i32 = arith.constant 0 : i32
    %c0_i32_0 = arith.constant 0 : i32
    %c0_i32_1 = arith.constant 0 : i32
    return %c0_i32, %c0_i32_0 : i32, i32
  }
  func.func @transform_7(%arg0: i32) -> (i32, i32) {
    %c0_i32 = arith.constant 0 : i32
    %c0_i32_0 = arith.constant 0 : i32
    %c0_i32_1 = arith.constant 0 : i32
    return %c0_i32, %c0_i32_0 : i32, i32
  }
  func.func @transform_8(%arg0: i32) -> (i32, i32) {
    %c0_i32 = arith.constant 0 : i32
    %c0_i32_0 = arith.constant 0 : i32
    %c0_i32_1 = arith.constant 0 : i32
    return %c0_i32, %c0_i32_0 : i32, i32
  }
  func.func @transform_9(%arg0: i32) -> (i32, i32) {
    %c0_i32 = arith.constant 0 : i32
    %c0_i32_0 = arith.constant 0 : i32
    return %arg0, %c0_i32 : i32, i32
  }
}

</mosaic_0001>

<llo_original>
// kernel: tpu_custom_call.1
$region0: #{tpu_custom_call.1}
  #allocation0 [shape = 'u32[]', space=smem, size = 0x4, offset = 0x4, fixed_abs, tag = 'smem constant byte address 0x4 - core index']
  #allocation1 [shape = 'u32[72,128]{1,0:T(1,128)}', space=vmem, size = 0x9000, scoped, tag = 'internal scratch']
  %s0 = inlined_call_operand.hbm [shape: f32[2,24,8,140], index: 0, kind: input, shape index: {}]
  %s1 = inlined_call_operand.hbm [shape: bf16[140,512], index: 1, kind: input, shape index: {}]
  %s2 = inlined_call_operand.hbm [shape: f32[1,256], index: 2, kind: input, shape index: {}]
  %s3 = inlined_call_operand.hbm [shape: bf16[5,256,512], index: 3, kind: input, shape index: {}]
  %s4 = inlined_call_operand.hbm [shape: f32[1,256], index: 4, kind: input, shape index: {}]
  %s5 = inlined_call_operand.hbm [shape: bf16[4,256,512], index: 5, kind: input, shape index: {}]
  %s6 = inlined_call_operand.hbm [shape: f32[1,512], index: 6, kind: input, shape index: {}]
  %s7 = inlined_call_operand.hbm [shape: bf16[512,128], index: 7, kind: input, shape index: {}]
  %s8 = inlined_call_operand.hbm [shape: f32[1,128], index: 8, kind: input, shape index: {}]
  %s9 = inlined_call_operand.hbm [shape: f32[16,128], index: 9, kind: output, shape index: {}]
  %s10 = sld [smem:[#allocation0]]
  $region105: #{tpu_custom_call.1} parent=0
    _
  %s12 = ssub.s32 1, %s10
  %s13 = scalar_select 0, %s12, %s10
  $region1: #{tpu_custom_call.1} parent=0
    #allocation2 [shape = 'u8[393216]{0}', space=vmem, size = 0x60000, scoped, tag = 'input window, operand 0']
    #allocation3 [shape = 's32[2]{0}', space=sflag, size = 0x8, scoped, tag = 'scoped memory for tpu_custom_call.1']
    #allocation4 [shape = 's32[2]{0}', space=sflag, size = 0x8, scoped, tag = 'scoped memory for tpu_custom_call.1']
    #allocation5 [shape = 'u8[147456]{0}', space=vmem, size = 0x24000, scoped, tag = 'input window, operand 1, single buffered']
    #allocation6 [shape = 's32[1]{0}', space=sflag, size = 0x4, scoped, tag = 'scoped memory for tpu_custom_call.1']
    #allocation7 [shape = 'u8[1024]{0}', space=vmem, size = 0x400, scoped, tag = 'input window, operand 2, single buffered']
    #allocation8 [shape = 'u8[1310720]{0}', space=vmem, size = 0x140000, scoped, tag = 'input window, operand 3, single buffered']
    #allocation9 [shape = 's32[1]{0}', space=sflag, size = 0x4, scoped, tag = 'scoped memory for tpu_custom_call.1']
    #allocation10 [shape = 'u8[1024]{0}', space=vmem, size = 0x400, scoped, tag = 'input window, operand 4, single buffered']
    #allocation11 [shape = 'u8[1048576]{0}', space=vmem, size = 0x100000, scoped, tag = 'input window, operand 5, single buffered']
    #allocation12 [shape = 's32[1]{0}', space=sflag, size = 0x4, scoped, tag = 'scoped memory for tpu_custom_call.1']
    #allocation13 [shape = 'u8[2048]{0}', space=vmem, size = 0x800, scoped, tag = 'input window, operand 6, single buffered']
    #allocation14 [shape = 'u8[131072]{0}', space=vmem, size = 0x20000, scoped, tag = 'input window, operand 7, single buffered']
    #allocation15 [shape = 's32[1]{0}', space=sflag, size = 0x4, scoped, tag = 'scoped memory for tpu_custom_call.1']
    #allocation16 [shape = 'u8[512]{0}', space=vmem, size = 0x400, scoped, tag = 'input window, operand 8, single buffered']
    #allocation17 [shape = 'u8[8192]{0}', space=vmem, size = 0x2000, scoped, tag = 'output window, operand 0']
    %14 = vsyncpa [#allocation3], 0
    %s15 = scalar_lea.sflag [#allocation3], 1
    %16 = vsyncpa %s15, 0
    %17 = vsyncpa [#allocation6], 0
    %18 = vsyncpa [#allocation9], 0
    %19 = vsyncpa [#allocation12], 0
    %20 = vsyncpa [#allocation15], 0
    %21 = vsyncpa [#allocation4], 0
    %s22 = scalar_lea.sflag [#allocation4], 1
    %23 = vsyncpa %s22, 0
    loop: start=0, step=1, limit=4
    $region2: #{tpu_custom_call.1} parent=1 // loop_pre_header
      _
    $region3: #{tpu_custom_call.1} parent=1 // loop_header
      %s25 = sphi 0, %s29
      %p26 = scmp.ge.s32.totalorder %s25, 4
      %s35 = sphi 0, %s37
      %s38 = sphi 0, %s35
      %s39 = sphi 0, %s38
      %s55 = sphi 0, %s39
      %s59 = sphi 0, %s59
      %s61 = sphi 0, %s59
      %s62 = sphi 0, %s61
      %s76 = sphi 0, %s62
      %s80 = sphi 0, %s80
      %s82 = sphi 0, %s80
      %s83 = sphi 0, %s82
      %s97 = sphi 0, %s83
      %s101 = sphi 0, %s101
      %s103 = sphi 0, %s101
      %s104 = sphi 0, %s103
      %s118 = sphi 0, %s104
      %s122 = sphi 0, %s122
      %s124 = sphi 0, %s122
      %s125 = sphi 0, %s124
      %s139 = sphi 0, %s125
      %s143 = sphi 0, %s143
      %s145 = sphi 0, %s143
      %s146 = sphi 0, %s145
      %s160 = sphi 0, %s146
      %s164 = sphi 0, %s164
      %s166 = sphi 0, %s164
      %s167 = sphi 0, %s166
      %s181 = sphi 0, %s167
      %s185 = sphi 0, %s185
      %s187 = sphi 0, %s185
      %s188 = sphi 0, %s187
      %s202 = sphi 0, %s188
      %s206 = sphi 0, %s206
      %s208 = sphi 0, %s206
      %s209 = sphi 0, %s208
      %s223 = sphi 0, %s209
      %s229 = sphi 0, %s231
      %s232 = sphi 0, %s229
      %s233 = sphi 0, %s232
      %s249 = sphi 0, %s233
    $region4: #{tpu_custom_call.1} parent=1 // loop_header_branch
      %28 = sbr.rel (%p26) target = $region8
    $region5: #{tpu_custom_call.1} parent=1 // loop_body
      %s30 = ssub.s32 %s25, 1
      %s31 = ssub.s32 %s25, 2
      %s32 = sadd.s32 %s25, 1
      %s33 = ssub.s32 %s25, %s32
      %p34 = scmp.eq.s32.totalorder %s33, 0
      %s36 = sadd.s32 %s35, 1
      %s37 = scalar_select %p34, %s35, %s36
      %p40 = pneg %p34
      %p41 = scmp.eq.s32.totalorder %s25, 1
      %p42 = por %p40, %p41
      %p43 = scmp.ne.s32.totalorder %s35, %s38
      %p44 = scmp.eq.s32.totalorder %s25, 0
      %p45 = por %p43, %p44
      %p46 = scmp.ne.s32.totalorder %s35, %s38
      %p47 = scmp.eq.s32.totalorder %s30, 1
      %p48 = por %p46, %p47
      %p49 = scmp.ne.s32.totalorder %s38, %s39
      %p50 = scmp.eq.s32.totalorder %s30, 0
      %p51 = por %p49, %p50
      %p52 = scmp.ne.s32.totalorder %s38, %s39
      %p53 = scmp.eq.s32.totalorder %s31, 1
      %p54 = por %p52, %p53
      %p56 = scmp.ne.s32.totalorder %s39, %s55
      %p57 = scmp.eq.s32.totalorder %s31, 0
      %p58 = por %p56, %p57
      %s60 = sadd.s32 %s59, 1
      %p63 = scmp.eq.s32.totalorder %s25, 1
      %p64 = scmp.ne.s32.totalorder %s59, %s61
      %p65 = scmp.eq.s32.totalorder %s25, 0
      %p66 = por %p64, %p65
      %p67 = scmp.ne.s32.totalorder %s59, %s61
      %p68 = scmp.eq.s32.totalorder %s30, 1
      %p69 = por %p67, %p68
      %p70 = scmp.ne.s32.totalorder %s61, %s62
      %p71 = scmp.eq.s32.totalorder %s30, 0
      %p72 = por %p70, %p71
      %p73 = scmp.ne.s32.totalorder %s61, %s62
      %p74 = scmp.eq.s32.totalorder %s31, 1
      %p75 = por %p73, %p74
      %p77 = scmp.ne.s32.totalorder %s62, %s76
      %p78 = scmp.eq.s32.totalorder %s31, 0
      %p79 = por %p77, %p78
      %s81 = sadd.s32 %s80, 1
      %p84 = scmp.eq.s32.totalorder %s25, 1
      %p85 = scmp.ne.s32.totalorder %s80, %s82
      %p86 = scmp.eq.s32.totalorder %s25, 0
      %p87 = por %p85, %p86
      %p88 = scmp.ne.s32.totalorder %s80, %s82
      %p89 = scmp.eq.s32.totalorder %s30, 1
      %p90 = por %p88, %p89
      %p91 = scmp.ne.s32.totalorder %s82, %s83
      %p92 = scmp.eq.s32.totalorder %s30, 0
      %p93 = por %p91, %p92
      %p94 = scmp.ne.s32.totalorder %s82, %s83
      %p95 = scmp.eq.s32.totalorder %s31, 1
      %p96 = por %p94, %p95
      %p98 = scmp.ne.s32.totalorder %s83, %s97
      %p99 = scmp.eq.s32.totalorder %s31, 0
      %p100 = por %p98, %p99
      %s102 = sadd.s32 %s101, 1
      %p105 = scmp.eq.s32.totalorder %s25, 1
      %p106 = scmp.ne.s32.totalorder %s101, %s103
      %p107 = scmp.eq.s32.totalorder %s25, 0
      %p108 = por %p106, %p107
      %p109 = scmp.ne.s32.totalorder %s101, %s103
      %p110 = scmp.eq.s32.totalorder %s30, 1
      %p111 = por %p109, %p110
      %p112 = scmp.ne.s32.totalorder %s103, %s104
      %p113 = scmp.eq.s32.totalorder %s30, 0
      %p114 = por %p112, %p113
      %p115 = scmp.ne.s32.totalorder %s103, %s104
      %p116 = scmp.eq.s32.totalorder %s31, 1
      %p117 = por %p115, %p116
      %p119 = scmp.ne.s32.totalorder %s104, %s118
      %p120 = scmp.eq.s32.totalorder %s31, 0
      %p121 = por %p119, %p120
      %s123 = sadd.s32 %s122, 1
      %p126 = scmp.eq.s32.totalorder %s25, 1
      %p127 = scmp.ne.s32.totalorder %s122, %s124
      %p128 = scmp.eq.s32.totalorder %s25, 0
      %p129 = por %p127, %p128
      %p130 = scmp.ne.s32.totalorder %s122, %s124
      %p131 = scmp.eq.s32.totalorder %s30, 1
      %p132 = por %p130, %p131
      %p133 = scmp.ne.s32.totalorder %s124, %s125
      %p134 = scmp.eq.s32.totalorder %s30, 0
      %p135 = por %p133, %p134
      %p136 = scmp.ne.s32.totalorder %s124, %s125
      %p137 = scmp.eq.s32.totalorder %s31, 1
      %p138 = por %p136, %p137
      %p140 = scmp.ne.s32.totalorder %s125, %s139
      %p141 = scmp.eq.s32.totalorder %s31, 0
      %p142 = por %p140, %p141
      %s144 = sadd.s32 %s143, 1
      %p147 = scmp.eq.s32.totalorder %s25, 1
      %p148 = scmp.ne.s32.totalorder %s143, %s145
      %p149 = scmp.eq.s32.totalorder %s25, 0
      %p150 = por %p148, %p149
      %p151 = scmp.ne.s32.totalorder %s143, %s145
      %p152 = scmp.eq.s32.totalorder %s30, 1
      %p153 = por %p151, %p152
      %p154 = scmp.ne.s32.totalorder %s145, %s146
      %p155 = scmp.eq.s32.totalorder %s30, 0
      %p156 = por %p154, %p155
      %p157 = scmp.ne.s32.totalorder %s145, %s146
      %p158 = scmp.eq.s32.totalorder %s31, 1
      %p159 = por %p157, %p158
      %p161 = scmp.ne.s32.totalorder %s146, %s160
      %p162 = scmp.eq.s32.totalorder %s31, 0
      %p163 = por %p161, %p162
      %s165 = sadd.s32 %s164, 1
      %p168 = scmp.eq.s32.totalorder %s25, 1
      %p169 = scmp.ne.s32.totalorder %s164, %s166
      %p170 = scmp.eq.s32.totalorder %s25, 0
      %p171 = por %p169, %p170
      %p172 = scmp.ne.s32.totalorder %s164, %s166
      %p173 = scmp.eq.s32.totalorder %s30, 1
      %p174 = por %p172, %p173
      %p175 = scmp.ne.s32.totalorder %s166, %s167
      %p176 = scmp.eq.s32.totalorder %s30, 0
      %p177 = por %p175, %p176
      %p178 = scmp.ne.s32.totalorder %s166, %s167
      %p179 = scmp.eq.s32.totalorder %s31, 1
      %p180 = por %p178, %p179
      %p182 = scmp.ne.s32.totalorder %s167, %s181
      %p183 = scmp.eq.s32.totalorder %s31, 0
      %p184 = por %p182, %p183
      %s186 = sadd.s32 %s185, 1
      %p189 = scmp.eq.s32.totalorder %s25, 1
      %p190 = scmp.ne.s32.totalorder %s185, %s187
      %p191 = scmp.eq.s32.totalorder %s25, 0
      %p192 = por %p190, %p191
      %p193 = scmp.ne.s32.totalorder %s185, %s187
      %p194 = scmp.eq.s32.totalorder %s30, 1
      %p195 = por %p193, %p194
      %p196 = scmp.ne.s32.totalorder %s187, %s188
      %p197 = scmp.eq.s32.totalorder %s30, 0
      %p198 = por %p196, %p197
      %p199 = scmp.ne.s32.totalorder %s187, %s188
      %p200 = scmp.eq.s32.totalorder %s31, 1
      %p201 = por %p199, %p200
      %p203 = scmp.ne.s32.totalorder %s188, %s202
      %p204 = scmp.eq.s32.totalorder %s31, 0
      %p205 = por %p203, %p204
      %s207 = sadd.s32 %s206, 1
      %p210 = scmp.eq.s32.totalorder %s25, 1
      %p211 = scmp.ne.s32.totalorder %s206, %s208
      %p212 = scmp.eq.s32.totalorder %s25, 0
      %p213 = por %p211, %p212
      %p214 = scmp.ne.s32.totalorder %s206, %s208
      %p215 = scmp.eq.s32.totalorder %s30, 1
      %p216 = por %p214, %p215
      %p217 = scmp.ne.s32.totalorder %s208, %s209
      %p218 = scmp.eq.s32.totalorder %s30, 0
      %p219 = por %p217, %p218
      %p220 = scmp.ne.s32.totalorder %s208, %s209
      %p221 = scmp.eq.s32.totalorder %s31, 1
      %p222 = por %p220, %p221
      %p224 = scmp.ne.s32.totalorder %s209, %s223
      %p225 = scmp.eq.s32.totalorder %s31, 0
      %p226 = por %p224, %p225
      %s227 = ssub.s32 %s25, %s32
      %p228 = scmp.eq.s32.totalorder %s227, 0
      %s230 = sadd.s32 %s229, 1
      %s231 = scalar_select %p228, %s229, %s230
      %p234 = pneg %p228
      %p235 = scmp.eq.s32.totalorder %s25, 1
      %p236 = por %p234, %p235
      %p237 = scmp.ne.s32.totalorder %s229, %s232
      %p238 = scmp.eq.s32.totalorder %s25, 0
      %p239 = por %p237, %p238
      %p240 = scmp.ne.s32.totalorder %s229, %s232
      %p241 = scmp.eq.s32.totalorder %s30, 1
      %p242 = por %p240, %p241
      %p243 = scmp.ne.s32.totalorder %s232, %s233
      %p244 = scmp.eq.s32.totalorder %s30, 0
      %p245 = por %p243, %p244
      %p246 = scmp.ne.s32.totalorder %s232, %s233
      %p247 = scmp.eq.s32.totalorder %s31, 1
      %p248 = por %p246, %p247
      %p250 = scmp.ne.s32.totalorder %s233, %s249
      %p251 = scmp.eq.s32.totalorder %s31, 0
      %p252 = por %p250, %p251
      %p253 = scmp.le.s32.totalorder 1, %s25
      %p254 = scmp.lt.s32.totalorder %s25, 3
      %p255 = pnand %p253, %p254
      %p256 = pneg %p255
      // Predicated region
      $region9: #{tpu_custom_call.1} parent=5 // pred_check
        _
      $region10: #{tpu_custom_call.1} parent=5 // pred_check_branch
        %258 = sbr.rel (%p255) target = $region12
      $region11: #{tpu_custom_call.1} parent=5 // pred_region
        %s259 = ssub.s32 %s25, 1
        // Predicated region
        $region13: #{tpu_custom_call.1} parent=11 // pred_check
          %p260 = pneg %p72
        $region14: #{tpu_custom_call.1} parent=11 // pred_check_branch
          %262 = sbr.rel (%p260) target = $region16
        $region15: #{tpu_custom_call.1} parent=11 // pred_region
          %264 = vsyncadd [#allocation6], 0
          %s265 = sshll.u32 %s1, 4
          %s266 = int_to_ptr.hbm [resolvable:$true] %s265
          %s267 = sshll.u32 [#allocation5], 4
          %s268 = int_to_ptr.vmem [resolvable:$true] %s267
          %273 = dma.hbm_to_vmem [thread:$0]  %s266, 4608, %s268, [#allocation6], 256, 256, 16
        $region16: #{tpu_custom_call.1} parent=11 // pred_fallthru
          _
        // Predicated region
        $region17: #{tpu_custom_call.1} parent=11 // pred_check
          %p274 = pneg %p93
        $region18: #{tpu_custom_call.1} parent=11 // pred_check_branch
          %276 = sbr.rel (%p274) target = $region20
        $region19: #{tpu_custom_call.1} parent=11 // pred_region
          %278 = vsyncadd [#allocation6], 0
          %s280 = sshll.u32 %s2, 4
          %s281 = int_to_ptr.hbm [resolvable:$true] %s280
          %s282 = sshll.u32 [#allocation7], 4
          %s283 = int_to_ptr.vmem [resolvable:$true] %s282
          %285 = dma.hbm_to_vmem [thread:$0]  %s281, 32, %s283, [#allocation6]
        $region20: #{tpu_custom_call.1} parent=11 // pred_fallthru
          _
        // Predicated region
        $region21: #{tpu_custom_call.1} parent=11 // pred_check
          %p286 = pneg %p114
        $region22: #{tpu_custom_call.1} parent=11 // pred_check_branch
          %288 = sbr.rel (%p286) target = $region24
        $region23: #{tpu_custom_call.1} parent=11 // pred_region
          %290 = vsyncadd [#allocation9], 0
          %s291 = sshll.u32 %s3, 4
          %s292 = int_to_ptr.hbm [resolvable:$true] %s291
          %s293 = sshll.u32 [#allocation8], 4
          %s294 = int_to_ptr.vmem [resolvable:$true] %s293
          %299 = dma.hbm_to_vmem [thread:$0]  %s292, 40960, %s294, [#allocation9], 256, 256, 16
        $region24: #{tpu_custom_call.1} parent=11 // pred_fallthru
          _
        // Predicated region
        $region25: #{tpu_custom_call.1} parent=11 // pred_check
          %p300 = pneg %p135
        $region26: #{tpu_custom_call.1} parent=11 // pred_check_branch
          %302 = sbr.rel (%p300) target = $region28
        $region27: #{tpu_custom_call.1} parent=11 // pred_region
          %304 = vsyncadd [#allocation9], 0
          %s306 = sshll.u32 %s4, 4
          %s307 = int_to_ptr.hbm [resolvable:$true] %s306
          %s308 = sshll.u32 [#allocation10], 4
          %s309 = int_to_ptr.vmem [resolvable:$true] %s308
          %311 = dma.hbm_to_vmem [thread:$0]  %s307, 32, %s309, [#allocation9]
        $region28: #{tpu_custom_call.1} parent=11 // pred_fallthru
          _
        // Predicated region
        $region29: #{tpu_custom_call.1} parent=11 // pred_check
          %p312 = pneg %p156
        $region30: #{tpu_custom_call.1} parent=11 // pred_check_branch
          %314 = sbr.rel (%p312) target = $region32
        $region31: #{tpu_custom_call.1} parent=11 // pred_region
          %316 = vsyncadd [#allocation12], 0
          %s317 = sshll.u32 %s5, 4
          %s318 = int_to_ptr.hbm [resolvable:$true] %s317
          %s319 = sshll.u32 [#allocation11], 4
          %s320 = int_to_ptr.vmem [resolvable:$true] %s319
          %325 = dma.hbm_to_vmem [thread:$0]  %s318, 32768, %s320, [#allocation12], 256, 256, 16
        $region32: #{tpu_custom_call.1} parent=11 // pred_fallthru
          _
        // Predicated region
        $region33: #{tpu_custom_call.1} parent=11 // pred_check
          %p326 = pneg %p177
        $region34: #{tpu_custom_call.1} parent=11 // pred_check_branch
          %328 = sbr.rel (%p326) target = $region36
        $region35: #{tpu_custom_call.1} parent=11 // pred_region
          %330 = vsyncadd [#allocation12], 0
          %s332 = sshll.u32 %s6, 4
          %s333 = int_to_ptr.hbm [resolvable:$true] %s332
          %s334 = sshll.u32 [#allocation13], 4
          %s335 = int_to_ptr.vmem [resolvable:$true] %s334
          %337 = dma.hbm_to_vmem [thread:$0]  %s333, 64, %s335, [#allocation12]
        $region36: #{tpu_custom_call.1} parent=11 // pred_fallthru
          _
        // Predicated region
        $region37: #{tpu_custom_call.1} parent=11 // pred_check
          %p338 = pneg %p198
        $region38: #{tpu_custom_call.1} parent=11 // pred_check_branch
          %340 = sbr.rel (%p338) target = $region40
        $region39: #{tpu_custom_call.1} parent=11 // pred_region
          %342 = vsyncadd [#allocation15], 0
          %s343 = sshll.u32 %s7, 4
          %s344 = int_to_ptr.hbm [resolvable:$true] %s343
          %s345 = sshll.u32 [#allocation14], 4
          %s346 = int_to_ptr.vmem [resolvable:$true] %s345
          %351 = dma.hbm_to_vmem [thread:$0]  %s344, 4096, %s346, [#allocation15], 64, 64, 4
        $region40: #{tpu_custom_call.1} parent=11 // pred_fallthru
          _
        // Predicated region
        $region41: #{tpu_custom_call.1} parent=11 // pred_check
          %p352 = pneg %p219
        $region42: #{tpu_custom_call.1} parent=11 // pred_check_branch
          %354 = sbr.rel (%p352) target = $region44
        $region43: #{tpu_custom_call.1} parent=11 // pred_region
          %356 = vsyncadd [#allocation15], 0
          %s358 = sshll.u32 %s8, 4
          %s359 = int_to_ptr.hbm [resolvable:$true] %s358
          %s360 = sshll.u32 [#allocation16], 4
          %s361 = int_to_ptr.vmem [resolvable:$true] %s360
          %363 = dma.hbm_to_vmem [thread:$0]  %s359, 16, %s361, [#allocation15]
        $region44: #{tpu_custom_call.1} parent=11 // pred_fallthru
          _
      $region12: #{tpu_custom_call.1} parent=5 // pred_fallthru
        _
      %p364 = scmp.lt.s32.totalorder %s25, 2
      // Predicated region
      $region45: #{tpu_custom_call.1} parent=5 // pred_check
        %p365 = pneg %p364
      $region46: #{tpu_custom_call.1} parent=5 // pred_check_branch
        %367 = sbr.rel (%p365) target = $region48
      $region47: #{tpu_custom_call.1} parent=5 // pred_region
        // Predicated region
        $region49: #{tpu_custom_call.1} parent=47 // pred_check
          %p368 = pneg %p45
        $region50: #{tpu_custom_call.1} parent=47 // pred_check_branch
          %370 = sbr.rel (%p368) target = $region52
        $region51: #{tpu_custom_call.1} parent=47 // pred_region
          %s371 = sand.u32 %s35, 1
          %s372 = scalar_lea.sflag [#allocation3], %s371
          %s373 = sand.u32 %s35, 1
          %s374 = smul.addr %s373, 384
          %s375 = scalar_lea.vmem [#allocation2], %s374
          %377 = vsyncadd %s372, 0
          %s378 = smul.addr %s25, 48
          %s379 = smul.addr %s378, 8
          %s380 = scalar_lea.hbm %s0, %s379
          %s381 = sshll.u32 %s380, 4
          %s382 = int_to_ptr.hbm [resolvable:$true] %s381
          %s383 = sshll.u32 %s375, 4
          %s384 = int_to_ptr.vmem [resolvable:$true] %s383
          %389 = dma.hbm_to_vmem [thread:$0]  %s382, 6144, %s384, %s372, 256, 256, 16
        $region52: #{tpu_custom_call.1} parent=47 // pred_fallthru
          _
      $region48: #{tpu_custom_call.1} parent=5 // pred_fallthru
        _
      %p390 = scmp.le.s32.totalorder 1, %s25
      %p391 = scmp.lt.s32.totalorder %s25, 3
      %p392 = pnand %p390, %p391
      %p393 = pneg %p392
      // Predicated region
      $region53: #{tpu_custom_call.1} parent=5 // pred_check
        _
      $region54: #{tpu_custom_call.1} parent=5 // pred_check_branch
        %395 = sbr.rel (%p392) target = $region56
      $region55: #{tpu_custom_call.1} parent=5 // pred_region
        %s396 = ssub.s32 %s25, 1
        %s397 = sand.u32 %s38, 1
        %s398 = scalar_lea.sflag [#allocation3], %s397
        %s399 = sand.u32 %s38, 1
        %s400 = smul.addr %s399, 384
        %s401 = scalar_lea.vmem [#allocation2], %s400
        // Predicated region
        $region57: #{tpu_custom_call.1} parent=55 // pred_check
          %p402 = pneg %p51
        $region58: #{tpu_custom_call.1} parent=55 // pred_check_branch
          %404 = sbr.rel (%p402) target = $region60
        $region59: #{tpu_custom_call.1} parent=55 // pred_region
          %406 = dma.done %s398, 6144
        $region60: #{tpu_custom_call.1} parent=55 // pred_fallthru
          _
        // Predicated region
        $region61: #{tpu_custom_call.1} parent=55 // pred_check
          %p407 = pneg %p72
        $region62: #{tpu_custom_call.1} parent=55 // pred_check_branch
          %409 = sbr.rel (%p407) target = $region64
        $region63: #{tpu_custom_call.1} parent=55 // pred_region
          %411 = dma.done [#allocation6], 4608
        $region64: #{tpu_custom_call.1} parent=55 // pred_fallthru
          _
        // Predicated region
        $region65: #{tpu_custom_call.1} parent=55 // pred_check
          %p412 = pneg %p93
        $region66: #{tpu_custom_call.1} parent=55 // pred_check_branch
          %414 = sbr.rel (%p412) target = $region68
        $region67: #{tpu_custom_call.1} parent=55 // pred_region
          %416 = dma.done [#allocation6], 32
        $region68: #{tpu_custom_call.1} parent=55 // pred_fallthru
          _
        // Predicated region
        $region69: #{tpu_custom_call.1} parent=55 // pred_check
          %p417 = pneg %p114
        $region70: #{tpu_custom_call.1} parent=55 // pred_check_branch
          %419 = sbr.rel (%p417) target = $region72
        $region71: #{tpu_custom_call.1} parent=55 // pred_region
          %421 = dma.done [#allocation9], 40960
        $region72: #{tpu_custom_call.1} parent=55 // pred_fallthru
          _
        // Predicated region
        $region73: #{tpu_custom_call.1} parent=55 // pred_check
          %p422 = pneg %p135
        $region74: #{tpu_custom_call.1} parent=55 // pred_check_branch
          %424 = sbr.rel (%p422) target = $region76
        $region75: #{tpu_custom_call.1} parent=55 // pred_region
          %426 = dma.done [#allocation9], 32
        $region76: #{tpu_custom_call.1} parent=55 // pred_fallthru
          _
        // Predicated region
        $region77: #{tpu_custom_call.1} parent=55 // pred_check
          %p427 = pneg %p156
        $region78: #{tpu_custom_call.1} parent=55 // pred_check_branch
          %429 = sbr.rel (%p427) target = $region80
        $region79: #{tpu_custom_call.1} parent=55 // pred_region
          %431 = dma.done [#allocation12], 32768
        $region80: #{tpu_custom_call.1} parent=55 // pred_fallthru
          _
        // Predicated region
        $region81: #{tpu_custom_call.1} parent=55 // pred_check
          %p432 = pneg %p177
        $region82: #{tpu_custom_call.1} parent=55 // pred_check_branch
          %434 = sbr.rel (%p432) target = $region84
        $region83: #{tpu_custom_call.1} parent=55 // pred_region
          %436 = dma.done [#allocation12], 64
        $region84: #{tpu_custom_call.1} parent=55 // pred_fallthru
          _
        // Predicated region
        $region85: #{tpu_custom_call.1} parent=55 // pred_check
          %p437 = pneg %p198
        $region86: #{tpu_custom_call.1} parent=55 // pred_check_branch
          %439 = sbr.rel (%p437) target = $region88
        $region87: #{tpu_custom_call.1} parent=55 // pred_region
          %441 = dma.done [#allocation15], 4096
        $region88: #{tpu_custom_call.1} parent=55 // pred_fallthru
          _
        // Predicated region
        $region89: #{tpu_custom_call.1} parent=55 // pred_check
          %p442 = pneg %p219
        $region90: #{tpu_custom_call.1} parent=55 // pred_check_branch
          %444 = sbr.rel (%p442) target = $region92
        $region91: #{tpu_custom_call.1} parent=55 // pred_region
          %446 = dma.done [#allocation15], 16
        $region92: #{tpu_custom_call.1} parent=55 // pred_fallthru
          _
        %s447 = sand.u32 %s38, 1
        %s448 = scalar_lea.sflag [#allocation3], %s447
        %s449 = sand.u32 %s38, 1
        %s450 = smul.addr %s449, 384
        %s451 = scalar_lea.vmem [#allocation2], %s450
        %p452 = pneg %p51
        %p453 = pneg %p48
        %p454 = pneg %p72
        %p455 = pneg %p69
        %p456 = pneg %p93
        %p457 = pneg %p90
        %p458 = pneg %p114
        %p459 = pneg %p111
        %p460 = pneg %p135
        %p461 = pneg %p132
        %p462 = pneg %p156
        %p463 = pneg %p153
        %p464 = pneg %p177
        %p465 = pneg %p174
        %p466 = pneg %p198
        %p467 = pneg %p195
        %p468 = pneg %p219
        %p469 = pneg %p216
        %p470 = pneg %p245
        %p471 = pneg %p242
        %s472 = sand.u32 %s232, 1
        %s473 = scalar_lea.sflag [#allocation4], %s472
        %s474 = sand.u32 %s232, 1
        %s475 = smul.addr %s474, 8
        %s476 = scalar_lea.vmem [#allocation17], %s475
        %v478 = vld [vmem:[%s401] sm:$0xff]
        %v479 = vld [vmem:[%s401 + $0x8] sm:$0xff]
        %v480 = vld [vmem:[%s401 + $0x10] sm:$0xff]
        %v481 = vld [vmem:[%s401 + $0x18] sm:$0xff]
        %v482 = vld [vmem:[%s401 + $0x20] sm:$0xff]
        %v483 = vld [vmem:[%s401 + $0x28] sm:$0xff]
        %v484 = vld [vmem:[%s401 + $0x30] sm:$0xff]
        %v485 = vld [vmem:[%s401 + $0x38] sm:$0xff]
        %v486 = vld [vmem:[%s401 + $0x40] sm:$0xff]
        %v487 = vld [vmem:[%s401 + $0x48] sm:$0xff]
        %v488 = vld [vmem:[%s401 + $0x50] sm:$0xff]
        %v489 = vld [vmem:[%s401 + $0x58] sm:$0xff]
        %v490 = vld [vmem:[%s401 + $0x60] sm:$0xff]
        %v491 = vld [vmem:[%s401 + $0x68] sm:$0xff]
        %v492 = vld [vmem:[%s401 + $0x70] sm:$0xff]
        %v493 = vld [vmem:[%s401 + $0x78] sm:$0xff]
        %v494 = vld [vmem:[%s401 + $0x80] sm:$0xff]
        %v495 = vld [vmem:[%s401 + $0x88] sm:$0xff]
        %v496 = vld [vmem:[%s401 + $0x90] sm:$0xff]
        %v497 = vld [vmem:[%s401 + $0x98] sm:$0xff]
        %v498 = vld [vmem:[%s401 + $0xa0] sm:$0xff]
        %v499 = vld [vmem:[%s401 + $0xa8] sm:$0xff]
        %v500 = vld [vmem:[%s401 + $0xb0] sm:$0xff]
        %v501 = vld [vmem:[%s401 + $0xb8] sm:$0xff]
        %v502 = vld [vmem:[%s401 + $0xc0] sm:$0xff]
        %v503 = vld [vmem:[%s401 + $0xc8] sm:$0xff]
        %v504 = vld [vmem:[%s401 + $0xd0] sm:$0xff]
        %v505 = vld [vmem:[%s401 + $0xd8] sm:$0xff]
        %v506 = vld [vmem:[%s401 + $0xe0] sm:$0xff]
        %v507 = vld [vmem:[%s401 + $0xe8] sm:$0xff]
        %v508 = vld [vmem:[%s401 + $0xf0] sm:$0xff]
        %v509 = vld [vmem:[%s401 + $0xf8] sm:$0xff]
        %v510 = vld [vmem:[%s401 + $0x100] sm:$0xff]
        %v511 = vld [vmem:[%s401 + $0x108] sm:$0xff]
        %v512 = vld [vmem:[%s401 + $0x110] sm:$0xff]
        %v513 = vld [vmem:[%s401 + $0x118] sm:$0xff]
        %v514 = vld [vmem:[%s401 + $0x120] sm:$0xff]
        %v515 = vld [vmem:[%s401 + $0x128] sm:$0xff]
        %v516 = vld [vmem:[%s401 + $0x130] sm:$0xff]
        %v517 = vld [vmem:[%s401 + $0x138] sm:$0xff]
        %v518 = vld [vmem:[%s401 + $0x140] sm:$0xff]
        %v519 = vld [vmem:[%s401 + $0x148] sm:$0xff]
        %v520 = vld [vmem:[%s401 + $0x150] sm:$0xff]
        %v521 = vld [vmem:[%s401 + $0x158] sm:$0xff]
        %v522 = vld [vmem:[%s401 + $0x160] sm:$0xff]
        %v523 = vld [vmem:[%s401 + $0x168] sm:$0xff]
        %v524 = vld [vmem:[%s401 + $0x170] sm:$0xff]
        %v525 = vld [vmem:[%s401 + $0x178] sm:$0xff]
        %v526 = vpack.c.bf16 %v480, %v478
        %v527 = vpack.c.bf16 %v481, %v479
        %v528 = vpack.c.bf16 %v484, %v482
        %v529 = vpack.c.bf16 %v485, %v483
        %v530 = vpack.c.bf16 %v488, %v486
        %v531 = vpack.c.bf16 %v489, %v487
        %v532 = vpack.c.bf16 %v492, %v490
        %v533 = vpack.c.bf16 %v493, %v491
        %v534 = vpack.c.bf16 %v496, %v494
        %v535 = vpack.c.bf16 %v497, %v495
        %v536 = vpack.c.bf16 %v500, %v498
        %v537 = vpack.c.bf16 %v501, %v499
        %v538 = vpack.c.bf16 %v504, %v502
        %v539 = vpack.c.bf16 %v505, %v503
        %v540 = vpack.c.bf16 %v508, %v506
        %v541 = vpack.c.bf16 %v509, %v507
        %v542 = vpack.c.bf16 %v512, %v510
        %v543 = vpack.c.bf16 %v513, %v511
        %v544 = vpack.c.bf16 %v516, %v514
        %v545 = vpack.c.bf16 %v517, %v515
        %v546 = vpack.c.bf16 %v520, %v518
        %v547 = vpack.c.bf16 %v521, %v519
        %v548 = vpack.c.bf16 %v524, %v522
        %v549 = vpack.c.bf16 %v525, %v523
        %v550 = vld [vmem:[#allocation5] sm:$0xff]
        %v551 = vld [vmem:[#allocation5 + $0x8] sm:$0xff]
        %v552 = vld [vmem:[#allocation5 + $0x10] sm:$0xff]
        %v553 = vld [vmem:[#allocation5 + $0x18] sm:$0xff]
        %v554 = vld [vmem:[#allocation5 + $0x20] sm:$0xff]
        %v555 = vld [vmem:[#allocation5 + $0x28] sm:$0xff]
        %v556 = vld [vmem:[#allocation5 + $0x30] sm:$0xff]
        %v557 = vld [vmem:[#allocation5 + $0x38] sm:$0xff]
        %v558 = vld [vmem:[#allocation5 + $0x40] sm:$0xff]
        %v559 = vld [vmem:[#allocation5 + $0x48] sm:$0xff]
        %v560 = vld [vmem:[#allocation5 + $0x50] sm:$0xff]
        %v561 = vld [vmem:[#allocation5 + $0x58] sm:$0xff]
        %v562 = vld [vmem:[#allocation5 + $0x60] sm:$0xff]
        %v563 = vld [vmem:[#allocation5 + $0x68] sm:$0xff]
        %v564 = vld [vmem:[#allocation5 + $0x70] sm:$0xff]
        %v565 = vld [vmem:[#allocation5 + $0x78] sm:$0xff]
        %v566 = vld [vmem:[#allocation5 + $0x80] sm:$0xff]
        %v567 = vld [vmem:[#allocation5 + $0x88] sm:$0xff]
        %v568 = vld [vmem:[#allocation5 + $0x90] sm:$0xff]
        %v569 = vld [vmem:[#allocation5 + $0x98] sm:$0xff]
        %v570 = vld [vmem:[#allocation5 + $0xa0] sm:$0xff]
        %v571 = vld [vmem:[#allocation5 + $0xa8] sm:$0xff]
        %v572 = vld [vmem:[#allocation5 + $0xb0] sm:$0xff]
        %v573 = vld [vmem:[#allocation5 + $0xb8] sm:$0xff]
        %v574 = vld [vmem:[#allocation5 + $0xc0] sm:$0xff]
        %v575 = vld [vmem:[#allocation5 + $0xc8] sm:$0xff]
        %v576 = vld [vmem:[#allocation5 + $0xd0] sm:$0xff]
        %v577 = vld [vmem:[#allocation5 + $0xd8] sm:$0xff]
        %v578 = vld [vmem:[#allocation5 + $0xe0] sm:$0xff]
        %v579 = vld [vmem:[#allocation5 + $0xe8] sm:$0xff]
        %v580 = vld [vmem:[#allocation5 + $0xf0] sm:$0xff]
        %v581 = vld [vmem:[#allocation5 + $0xf8] sm:$0xff]
        %v582 = vld [vmem:[#allocation5 + $0x100] sm:$0xff]
        %v583 = vld [vmem:[#allocation5 + $0x108] sm:$0xff]
        %v584 = vld [vmem:[#allocation5 + $0x110] sm:$0x33]
        %v585 = vld [vmem:[#allocation5 + $0x118] sm:$0x33]
        %v622 = vunpack.c.l.b16 %v550
        %v623 = vunpack.c.h.b16 %v550
        %v624 = vunpack.c.l.b16 %v551
        %v625 = vunpack.c.h.b16 %v551
        %v626 = vunpack.c.l.b16 %v552
        %v627 = vunpack.c.h.b16 %v552
        %v628 = vunpack.c.l.b16 %v553
        %v629 = vunpack.c.h.b16 %v553
        %v630 = vunpack.c.l.b16 %v554
        %v631 = vunpack.c.h.b16 %v554
        %v632 = vunpack.c.l.b16 %v555
        %v633 = vunpack.c.h.b16 %v555
        %v634 = vunpack.c.l.b16 %v556
        %v635 = vunpack.c.h.b16 %v556
        %v636 = vunpack.c.l.b16 %v557
        %v637 = vunpack.c.h.b16 %v557
        %v638 = vunpack.c.l.b16 %v558
        %v639 = vunpack.c.h.b16 %v558
        %v640 = vunpack.c.l.b16 %v559
        %v641 = vunpack.c.h.b16 %v559
        %v642 = vunpack.c.l.b16 %v560
        %v643 = vunpack.c.h.b16 %v560
        %v644 = vunpack.c.l.b16 %v561
        %v645 = vunpack.c.h.b16 %v561
        %v646 = vunpack.c.l.b16 %v562
        %v647 = vunpack.c.h.b16 %v562
        %v648 = vunpack.c.l.b16 %v563
        %v649 = vunpack.c.h.b16 %v563
        %v650 = vunpack.c.l.b16 %v564
        %v651 = vunpack.c.h.b16 %v564
        %v652 = vunpack.c.l.b16 %v565
        %v653 = vunpack.c.h.b16 %v565
        %v654 = vunpack.c.l.b16 %v566
        %v655 = vunpack.c.h.b16 %v566
        %v656 = vunpack.c.l.b16 %v567
        %v657 = vunpack.c.h.b16 %v567
        %v658 = vunpack.c.l.b16 %v568
        %v659 = vunpack.c.h.b16 %v568
        %v660 = vunpack.c.l.b16 %v569
        %v661 = vunpack.c.h.b16 %v569
        %v662 = vunpack.c.l.b16 %v570
        %v663 = vunpack.c.h.b16 %v570
        %v664 = vunpack.c.l.b16 %v571
        %v665 = vunpack.c.h.b16 %v571
        %v666 = vunpack.c.l.b16 %v572
        %v667 = vunpack.c.h.b16 %v572
        %v668 = vunpack.c.l.b16 %v573
        %v669 = vunpack.c.h.b16 %v573
        %v670 = vunpack.c.l.b16 %v574
        %v671 = vunpack.c.h.b16 %v574
        %v672 = vunpack.c.l.b16 %v575
        %v673 = vunpack.c.h.b16 %v575
        %v674 = vunpack.c.l.b16 %v576
        %v675 = vunpack.c.h.b16 %v576
        %v676 = vunpack.c.l.b16 %v577
        %v677 = vunpack.c.h.b16 %v577
        %v678 = vunpack.c.l.b16 %v578
        %v679 = vunpack.c.h.b16 %v578
        %v680 = vunpack.c.l.b16 %v579
        %v681 = vunpack.c.h.b16 %v579
        %v682 = vunpack.c.l.b16 %v580
        %v683 = vunpack.c.h.b16 %v580
        %v684 = vunpack.c.l.b16 %v581
        %v685 = vunpack.c.h.b16 %v581
        %v686 = vunpack.c.l.b16 %v582
        %v687 = vunpack.c.h.b16 %v582
        %v688 = vunpack.c.l.b16 %v583
        %v689 = vunpack.c.h.b16 %v583
        %v690 = vunpack.c.l.b16 %v584
        %v691 = vunpack.c.h.b16 %v584
        %v692 = vunpack.c.l.b16 %v585
        %v693 = vunpack.c.h.b16 %v585
        %v694 = vpack.c.b16 %v626, %v622
        %v695 = vpack.c.b16 %v627, %v623
        %v696 = vpack.c.b16 %v628, %v624
        %v697 = vpack.c.b16 %v629, %v625
        %v698 = vpack.c.b16 %v634, %v630
        %v699 = vpack.c.b16 %v635, %v631
        %v700 = vpack.c.b16 %v636, %v632
        %v701 = vpack.c.b16 %v637, %v633
        %v702 = vpack.c.b16 %v642, %v638
        %v703 = vpack.c.b16 %v643, %v639
        %v704 = vpack.c.b16 %v644, %v640
        %v705 = vpack.c.b16 %v645, %v641
        %v706 = vpack.c.b16 %v650, %v646
        %v707 = vpack.c.b16 %v651, %v647
        %v708 = vpack.c.b16 %v652, %v648
        %v709 = vpack.c.b16 %v653, %v649
        %v710 = vpack.c.b16 %v658, %v654
        %v711 = vpack.c.b16 %v659, %v655
        %v712 = vpack.c.b16 %v660, %v656
        %v713 = vpack.c.b16 %v661, %v657
        %v714 = vpack.c.b16 %v666, %v662
        %v715 = vpack.c.b16 %v667, %v663
        %v716 = vpack.c.b16 %v668, %v664
        %v717 = vpack.c.b16 %v669, %v665
        %v718 = vpack.c.b16 %v674, %v670
        %v719 = vpack.c.b16 %v675, %v671
        %v720 = vpack.c.b16 %v676, %v672
        %v721 = vpack.c.b16 %v677, %v673
        %v722 = vpack.c.b16 %v682, %v678
        %v723 = vpack.c.b16 %v683, %v679
        %v724 = vpack.c.b16 %v684, %v680
        %v725 = vpack.c.b16 %v685, %v681
        %v726 = vpack.c.b16 %v690, %v686
        %v727 = vpack.c.b16 %v691, %v687
        %v728 = vpack.c.b16 %v692, %v688
        %v729 = vpack.c.b16 %v693, %v689
        %vm762 = vcmask 97280
        %v764 = vsel %vm762, %v527, 0
        %v767 = vsel %vm762, %v529, 0
        %v770 = vsel %vm762, %v531, 0
        %v773 = vsel %vm762, %v533, 0
        %v776 = vsel %vm762, %v535, 0
        %v779 = vsel %vm762, %v537, 0
        %v782 = vsel %vm762, %v539, 0
        %v785 = vsel %vm762, %v541, 0
        %v788 = vsel %vm762, %v543, 0
        %v791 = vsel %vm762, %v545, 0
        %v794 = vsel %vm762, %v547, 0
        %v797 = vsel %vm762, %v549, 0
        %vm799 = vcmask 1045504
        %v801 = vsel %vm799, %v726, 0
        %v804 = vsel %vm799, %v727, 0
        %v807 = vsel %vm799, %v728, 0
        %v810 = vsel %vm799, %v729, 0
        %812 = vmatpush.bf16.msra.mxu0 %v722
        %813 = vmatpush.bf16.msra.mxu0 %v718
        %814 = vmatpush.bf16.msra.mxu0 %v714
        %815 = vmatpush.bf16.msra.mxu0 %v710
        %816 = vmatpush.bf16.msra.mxu0 %v706
        %817 = vmatpush.bf16.msra.mxu0 %v702
        %818 = vmatpush.bf16.msra.mxu0 %v698
        %819 = vmatpush.bf16.msra.mxu0 %v694
        %820 = vmatmul.bf16.gmra.mxu0 %v526
        %v821 = vpop.f32.mrf.mxu0
        %v822 = vadd.f32 0.0, %v821
        %v823 = vpop.f32.mrf.mxu0
        %v824 = vadd.f32 0.0, %v823
        %825 = vmatmul.bf16.gmra.mxu0 %v528
        %v826 = vpop.f32.mrf.mxu0
        %v827 = vadd.f32 0.0, %v826
        %v828 = vpop.f32.mrf.mxu0
        %v829 = vadd.f32 0.0, %v828
        %830 = vmatmul.bf16.gmra.mxu0 %v530
        %v831 = vpop.f32.mrf.mxu0
        %v832 = vadd.f32 0.0, %v831
        %v833 = vpop.f32.mrf.mxu0
        %v834 = vadd.f32 0.0, %v833
        %835 = vmatmul.bf16.gmra.mxu0 %v532
        %v836 = vpop.f32.mrf.mxu0
        %v837 = vadd.f32 0.0, %v836
        %v838 = vpop.f32.mrf.mxu0
        %v839 = vadd.f32 0.0, %v838
        %840 = vmatmul.bf16.gmra.mxu0 %v534
        %v841 = vpop.f32.mrf.mxu0
        %v842 = vadd.f32 0.0, %v841
        %v843 = vpop.f32.mrf.mxu0
        %v844 = vadd.f32 0.0, %v843
        %845 = vmatmul.bf16.gmra.mxu0 %v536
        %v846 = vpop.f32.mrf.mxu0
        %v847 = vadd.f32 0.0, %v846
        %v848 = vpop.f32.mrf.mxu0
        %v849 = vadd.f32 0.0, %v848
        %850 = vmatmul.bf16.gmra.mxu0 %v538
        %v851 = vpop.f32.mrf.mxu0
        %v852 = vadd.f32 0.0, %v851
        %v853 = vpop.f32.mrf.mxu0
        %v854 = vadd.f32 0.0, %v853
        %855 = vmatmul.bf16.gmra.mxu0 %v540
        %v856 = vpop.f32.mrf.mxu0
        %v857 = vadd.f32 0.0, %v856
        %v858 = vpop.f32.mrf.mxu0
        %v859 = vadd.f32 0.0, %v858
        %860 = vmatmul.bf16.gmra.mxu0 %v542
        %v861 = vpop.f32.mrf.mxu0
        %v862 = vadd.f32 0.0, %v861
        %v863 = vpop.f32.mrf.mxu0
        %v864 = vadd.f32 0.0, %v863
        %865 = vmatmul.bf16.gmra.mxu0 %v544
        %v866 = vpop.f32.mrf.mxu0
        %v867 = vadd.f32 0.0, %v866
        %v868 = vpop.f32.mrf.mxu0
        %v869 = vadd.f32 0.0, %v868
        %870 = vmatmul.bf16.gmra.mxu0 %v546
        %v871 = vpop.f32.mrf.mxu0
        %v872 = vadd.f32 0.0, %v871
        %v873 = vpop.f32.mrf.mxu0
        %v874 = vadd.f32 0.0, %v873
        %875 = vmatmul.bf16.gmra.mxu0 %v548
        %v876 = vpop.f32.mrf.mxu0
        %v877 = vadd.f32 0.0, %v876
        %v878 = vpop.f32.mrf.mxu0
        %v879 = vadd.f32 0.0, %v878
        %880 = vdwg.mxu0
        %881 = vmatpush.bf16.msra.mxu0 0
        %882 = vmatpush.bf16.msra.mxu0 0
        %883 = vmatpush.bf16.msra.mxu0 0
        %884 = vmatpush.bf16.msra.mxu0 0
        %885 = vmatpush.bf16.msra.mxu0 0
        %886 = vmatpush.bf16.msra.mxu0 0
        %887 = vmatpush.bf16.msra.mxu0 0
        %888 = vmatpush.bf16.msra.mxu0 %v801
        %889 = vmatmul.bf16.gmra.mxu0 %v764
        %v890 = vpop.f32.mrf.mxu0
        %v891 = vadd.f32 %v822, %v890
        %v892 = vpop.f32.mrf.mxu0
        %v893 = vadd.f32 %v824, %v892
        %894 = vmatmul.bf16.gmra.mxu0 %v767
        %v895 = vpop.f32.mrf.mxu0
        %v896 = vadd.f32 %v827, %v895
        %v897 = vpop.f32.mrf.mxu0
        %v898 = vadd.f32 %v829, %v897
        %899 = vmatmul.bf16.gmra.mxu0 %v770
        %v900 = vpop.f32.mrf.mxu0
        %v901 = vadd.f32 %v832, %v900
        %v902 = vpop.f32.mrf.mxu0
        %v903 = vadd.f32 %v834, %v902
        %904 = vmatmul.bf16.gmra.mxu0 %v773
        %v905 = vpop.f32.mrf.mxu0
        %v906 = vadd.f32 %v837, %v905
        %v907 = vpop.f32.mrf.mxu0
        %v908 = vadd.f32 %v839, %v907
        %909 = vmatmul.bf16.gmra.mxu0 %v776
        %v910 = vpop.f32.mrf.mxu0
        %v911 = vadd.f32 %v842, %v910
        %v912 = vpop.f32.mrf.mxu0
        %v913 = vadd.f32 %v844, %v912
        %914 = vmatmul.bf16.gmra.mxu0 %v779
        %v915 = vpop.f32.mrf.mxu0
        %v916 = vadd.f32 %v847, %v915
        %v917 = vpop.f32.mrf.mxu0
        %v918 = vadd.f32 %v849, %v917
        %919 = vmatmul.bf16.gmra.mxu0 %v782
        %v920 = vpop.f32.mrf.mxu0
        %v921 = vadd.f32 %v852, %v920
        %v922 = vpop.f32.mrf.mxu0
        %v923 = vadd.f32 %v854, %v922
        %924 = vmatmul.bf16.gmra.mxu0 %v785
        %v925 = vpop.f32.mrf.mxu0
        %v926 = vadd.f32 %v857, %v925
        %v927 = vpop.f32.mrf.mxu0
        %v928 = vadd.f32 %v859, %v927
        %929 = vmatmul.bf16.gmra.mxu0 %v788
        %v930 = vpop.f32.mrf.mxu0
        %v931 = vadd.f32 %v862, %v930
        %v932 = vpop.f32.mrf.mxu0
        %v933 = vadd.f32 %v864, %v932
        %934 = vmatmul.bf16.gmra.mxu0 %v791
        %v935 = vpop.f32.mrf.mxu0
        %v936 = vadd.f32 %v867, %v935
        %v937 = vpop.f32.mrf.mxu0
        %v938 = vadd.f32 %v869, %v937
        %939 = vmatmul.bf16.gmra.mxu0 %v794
        %v940 = vpop.f32.mrf.mxu0
        %v941 = vadd.f32 %v872, %v940
        %v942 = vpop.f32.mrf.mxu0
        %v943 = vadd.f32 %v874, %v942
        %944 = vmatmul.bf16.gmra.mxu0 %v797
        %v945 = vpop.f32.mrf.mxu0
        %v946 = vadd.f32 %v877, %v945
        %v947 = vpop.f32.mrf.mxu0
        %v948 = vadd.f32 %v879, %v947
        %949 = vdwg.mxu0
        %950 = vmatpush.bf16.msra.mxu0 %v723
        %951 = vmatpush.bf16.msra.mxu0 %v719
        %952 = vmatpush.bf16.msra.mxu0 %v715
        %953 = vmatpush.bf16.msra.mxu0 %v711
        %954 = vmatpush.bf16.msra.mxu0 %v707
        %955 = vmatpush.bf16.msra.mxu0 %v703
        %956 = vmatpush.bf16.msra.mxu0 %v699
        %957 = vmatpush.bf16.msra.mxu0 %v695
        %958 = vmatmul.bf16.gmra.mxu0 %v526
        %v959 = vpop.f32.mrf.mxu0
        %v960 = vadd.f32 0.0, %v959
        %v961 = vpop.f32.mrf.mxu0
        %v962 = vadd.f32 0.0, %v961
        %963 = vmatmul.bf16.gmra.mxu0 %v528
        %v964 = vpop.f32.mrf.mxu0
        %v965 = vadd.f32 0.0, %v964
        %v966 = vpop.f32.mrf.mxu0
        %v967 = vadd.f32 0.0, %v966
        %968 = vmatmul.bf16.gmra.mxu0 %v530
        %v969 = vpop.f32.mrf.mxu0
        %v970 = vadd.f32 0.0, %v969
        %v971 = vpop.f32.mrf.mxu0
        %v972 = vadd.f32 0.0, %v971
        %973 = vmatmul.bf16.gmra.mxu0 %v532
        %v974 = vpop.f32.mrf.mxu0
        %v975 = vadd.f32 0.0, %v974
        %v976 = vpop.f32.mrf.mxu0
        %v977 = vadd.f32 0.0, %v976
        %978 = vmatmul.bf16.gmra.mxu0 %v534
        %v979 = vpop.f32.mrf.mxu0
        %v980 = vadd.f32 0.0, %v979
        %v981 = vpop.f32.mrf.mxu0
        %v982 = vadd.f32 0.0, %v981
        %983 = vmatmul.bf16.gmra.mxu0 %v536
        %v984 = vpop.f32.mrf.mxu0
        %v985 = vadd.f32 0.0, %v984
        %v986 = vpop.f32.mrf.mxu0
        %v987 = vadd.f32 0.0, %v986
        %988 = vmatmul.bf16.gmra.mxu0 %v538
        %v989 = vpop.f32.mrf.mxu0
        %v990 = vadd.f32 0.0, %v989
        %v991 = vpop.f32.mrf.mxu0
        %v992 = vadd.f32 0.0, %v991
        %993 = vmatmul.bf16.gmra.mxu0 %v540
        %v994 = vpop.f32.mrf.mxu0
        %v995 = vadd.f32 0.0, %v994
        %v996 = vpop.f32.mrf.mxu0
        %v997 = vadd.f32 0.0, %v996
        %998 = vmatmul.bf16.gmra.mxu0 %v542
        %v999 = vpop.f32.mrf.mxu0
        %v1000 = vadd.f32 0.0, %v999
        %v1001 = vpop.f32.mrf.mxu0
        %v1002 = vadd.f32 0.0, %v1001
        %1003 = vmatmul.bf16.gmra.mxu0 %v544
        %v1004 = vpop.f32.mrf.mxu0
        %v1005 = vadd.f32 0.0, %v1004
        %v1006 = vpop.f32.mrf.mxu0
        %v1007 = vadd.f32 0.0, %v1006
        %1008 = vmatmul.bf16.gmra.mxu0 %v546
        %v1009 = vpop.f32.mrf.mxu0
        %v1010 = vadd.f32 0.0, %v1009
        %v1011 = vpop.f32.mrf.mxu0
        %v1012 = vadd.f32 0.0, %v1011
        %1013 = vmatmul.bf16.gmra.mxu0 %v548
        %v1014 = vpop.f32.mrf.mxu0
        %v1015 = vadd.f32 0.0, %v1014
        %v1016 = vpop.f32.mrf.mxu0
        %v1017 = vadd.f32 0.0, %v1016
        %1018 = vdwg.mxu0
        %1019 = vmatpush.bf16.msra.mxu0 0
        %1020 = vmatpush.bf16.msra.mxu0 0
        %1021 = vmatpush.bf16.msra.mxu0 0
        %1022 = vmatpush.bf16.msra.mxu0 0
        %1023 = vmatpush.bf16.msra.mxu0 0
        %1024 = vmatpush.bf16.msra.mxu0 0
        %1025 = vmatpush.bf16.msra.mxu0 0
        %1026 = vmatpush.bf16.msra.mxu0 %v804
        %1027 = vmatmul.bf16.gmra.mxu0 %v764
        %v1028 = vpop.f32.mrf.mxu0
        %v1029 = vadd.f32 %v960, %v1028
        %v1030 = vpop.f32.mrf.mxu0
        %v1031 = vadd.f32 %v962, %v1030
        %1032 = vmatmul.bf16.gmra.mxu0 %v767
        %v1033 = vpop.f32.mrf.mxu0
        %v1034 = vadd.f32 %v965, %v1033
        %v1035 = vpop.f32.mrf.mxu0
        %v1036 = vadd.f32 %v967, %v1035
        %1037 = vmatmul.bf16.gmra.mxu0 %v770
        %v1038 = vpop.f32.mrf.mxu0
        %v1039 = vadd.f32 %v970, %v1038
        %v1040 = vpop.f32.mrf.mxu0
        %v1041 = vadd.f32 %v972, %v1040
        %1042 = vmatmul.bf16.gmra.mxu0 %v773
        %v1043 = vpop.f32.mrf.mxu0
        %v1044 = vadd.f32 %v975, %v1043
        %v1045 = vpop.f32.mrf.mxu0
        %v1046 = vadd.f32 %v977, %v1045
        %1047 = vmatmul.bf16.gmra.mxu0 %v776
        %v1048 = vpop.f32.mrf.mxu0
        %v1049 = vadd.f32 %v980, %v1048
        %v1050 = vpop.f32.mrf.mxu0
        %v1051 = vadd.f32 %v982, %v1050
        %1052 = vmatmul.bf16.gmra.mxu0 %v779
        %v1053 = vpop.f32.mrf.mxu0
        %v1054 = vadd.f32 %v985, %v1053
        %v1055 = vpop.f32.mrf.mxu0
        %v1056 = vadd.f32 %v987, %v1055
        %1057 = vmatmul.bf16.gmra.mxu0 %v782
        %v1058 = vpop.f32.mrf.mxu0
        %v1059 = vadd.f32 %v990, %v1058
        %v1060 = vpop.f32.mrf.mxu0
        %v1061 = vadd.f32 %v992, %v1060
        %1062 = vmatmul.bf16.gmra.mxu0 %v785
        %v1063 = vpop.f32.mrf.mxu0
        %v1064 = vadd.f32 %v995, %v1063
        %v1065 = vpop.f32.mrf.mxu0
        %v1066 = vadd.f32 %v997, %v1065
        %1067 = vmatmul.bf16.gmra.mxu0 %v788
        %v1068 = vpop.f32.mrf.mxu0
        %v1069 = vadd.f32 %v1000, %v1068
        %v1070 = vpop.f32.mrf.mxu0
        %v1071 = vadd.f32 %v1002, %v1070
        %1072 = vmatmul.bf16.gmra.mxu0 %v791
        %v1073 = vpop.f32.mrf.mxu0
        %v1074 = vadd.f32 %v1005, %v1073
        %v1075 = vpop.f32.mrf.mxu0
        %v1076 = vadd.f32 %v1007, %v1075
        %1077 = vmatmul.bf16.gmra.mxu0 %v794
        %v1078 = vpop.f32.mrf.mxu0
        %v1079 = vadd.f32 %v1010, %v1078
        %v1080 = vpop.f32.mrf.mxu0
        %v1081 = vadd.f32 %v1012, %v1080
        %1082 = vmatmul.bf16.gmra.mxu0 %v797
        %v1083 = vpop.f32.mrf.mxu0
        %v1084 = vadd.f32 %v1015, %v1083
        %v1085 = vpop.f32.mrf.mxu0
        %v1086 = vadd.f32 %v1017, %v1085
        %1087 = vdwg.mxu0
        %1088 = vmatpush.bf16.msra.mxu0 %v724
        %1089 = vmatpush.bf16.msra.mxu0 %v720
        %1090 = vmatpush.bf16.msra.mxu0 %v716
        %1091 = vmatpush.bf16.msra.mxu0 %v712
        %1092 = vmatpush.bf16.msra.mxu0 %v708
        %1093 = vmatpush.bf16.msra.mxu0 %v704
        %1094 = vmatpush.bf16.msra.mxu0 %v700
        %1095 = vmatpush.bf16.msra.mxu0 %v696
        %1096 = vmatmul.bf16.gmra.mxu0 %v526
        %v1097 = vpop.f32.mrf.mxu0
        %v1098 = vadd.f32 0.0, %v1097
        %v1099 = vpop.f32.mrf.mxu0
        %v1100 = vadd.f32 0.0, %v1099
        %1101 = vmatmul.bf16.gmra.mxu0 %v528
        %v1102 = vpop.f32.mrf.mxu0
        %v1103 = vadd.f32 0.0, %v1102
        %v1104 = vpop.f32.mrf.mxu0
        %v1105 = vadd.f32 0.0, %v1104
        %1106 = vmatmul.bf16.gmra.mxu0 %v530
        %v1107 = vpop.f32.mrf.mxu0
        %v1108 = vadd.f32 0.0, %v1107
        %v1109 = vpop.f32.mrf.mxu0
        %v1110 = vadd.f32 0.0, %v1109
        %1111 = vmatmul.bf16.gmra.mxu0 %v532
        %v1112 = vpop.f32.mrf.mxu0
        %v1113 = vadd.f32 0.0, %v1112
        %v1114 = vpop.f32.mrf.mxu0
        %v1115 = vadd.f32 0.0, %v1114
        %1116 = vmatmul.bf16.gmra.mxu0 %v534
        %v1117 = vpop.f32.mrf.mxu0
        %v1118 = vadd.f32 0.0, %v1117
        %v1119 = vpop.f32.mrf.mxu0
        %v1120 = vadd.f32 0.0, %v1119
        %1121 = vmatmul.bf16.gmra.mxu0 %v536
        %v1122 = vpop.f32.mrf.mxu0
        %v1123 = vadd.f32 0.0, %v1122
        %v1124 = vpop.f32.mrf.mxu0
        %v1125 = vadd.f32 0.0, %v1124
        %1126 = vmatmul.bf16.gmra.mxu0 %v538
        %v1127 = vpop.f32.mrf.mxu0
        %v1128 = vadd.f32 0.0, %v1127
        %v1129 = vpop.f32.mrf.mxu0
        %v1130 = vadd.f32 0.0, %v1129
        %1131 = vmatmul.bf16.gmra.mxu0 %v540
        %v1132 = vpop.f32.mrf.mxu0
        %v1133 = vadd.f32 0.0, %v1132
        %v1134 = vpop.f32.mrf.mxu0
        %v1135 = vadd.f32 0.0, %v1134
        %1136 = vmatmul.bf16.gmra.mxu0 %v542
        %v1137 = vpop.f32.mrf.mxu0
        %v1138 = vadd.f32 0.0, %v1137
        %v1139 = vpop.f32.mrf.mxu0
        %v1140 = vadd.f32 0.0, %v1139
        %1141 = vmatmul.bf16.gmra.mxu0 %v544
        %v1142 = vpop.f32.mrf.mxu0
        %v1143 = vadd.f32 0.0, %v1142
        %v1144 = vpop.f32.mrf.mxu0
        %v1145 = vadd.f32 0.0, %v1144
        %1146 = vmatmul.bf16.gmra.mxu0 %v546
        %v1147 = vpop.f32.mrf.mxu0
        %v1148 = vadd.f32 0.0, %v1147
        %v1149 = vpop.f32.mrf.mxu0
        %v1150 = vadd.f32 0.0, %v1149
        %1151 = vmatmul.bf16.gmra.mxu0 %v548
        %v1152 = vpop.f32.mrf.mxu0
        %v1153 = vadd.f32 0.0, %v1152
        %v1154 = vpop.f32.mrf.mxu0
        %v1155 = vadd.f32 0.0, %v1154
        %1156 = vdwg.mxu0
        %1157 = vmatpush.bf16.msra.mxu0 0
        %1158 = vmatpush.bf16.msra.mxu0 0
        %1159 = vmatpush.bf16.msra.mxu0 0
        %1160 = vmatpush.bf16.msra.mxu0 0
        %1161 = vmatpush.bf16.msra.mxu0 0
        %1162 = vmatpush.bf16.msra.mxu0 0
        %1163 = vmatpush.bf16.msra.mxu0 0
        %1164 = vmatpush.bf16.msra.mxu0 %v807
        %1165 = vmatmul.bf16.gmra.mxu0 %v764
        %v1166 = vpop.f32.mrf.mxu0
        %v1167 = vadd.f32 %v1098, %v1166
        %v1168 = vpop.f32.mrf.mxu0
        %v1169 = vadd.f32 %v1100, %v1168
        %1170 = vmatmul.bf16.gmra.mxu0 %v767
        %v1171 = vpop.f32.mrf.mxu0
        %v1172 = vadd.f32 %v1103, %v1171
        %v1173 = vpop.f32.mrf.mxu0
        %v1174 = vadd.f32 %v1105, %v1173
        %1175 = vmatmul.bf16.gmra.mxu0 %v770
        %v1176 = vpop.f32.mrf.mxu0
        %v1177 = vadd.f32 %v1108, %v1176
        %v1178 = vpop.f32.mrf.mxu0
        %v1179 = vadd.f32 %v1110, %v1178
        %1180 = vmatmul.bf16.gmra.mxu0 %v773
        %v1181 = vpop.f32.mrf.mxu0
        %v1182 = vadd.f32 %v1113, %v1181
        %v1183 = vpop.f32.mrf.mxu0
        %v1184 = vadd.f32 %v1115, %v1183
        %1185 = vmatmul.bf16.gmra.mxu0 %v776
        %v1186 = vpop.f32.mrf.mxu0
        %v1187 = vadd.f32 %v1118, %v1186
        %v1188 = vpop.f32.mrf.mxu0
        %v1189 = vadd.f32 %v1120, %v1188
        %1190 = vmatmul.bf16.gmra.mxu0 %v779
        %v1191 = vpop.f32.mrf.mxu0
        %v1192 = vadd.f32 %v1123, %v1191
        %v1193 = vpop.f32.mrf.mxu0
        %v1194 = vadd.f32 %v1125, %v1193
        %1195 = vmatmul.bf16.gmra.mxu0 %v782
        %v1196 = vpop.f32.mrf.mxu0
        %v1197 = vadd.f32 %v1128, %v1196
        %v1198 = vpop.f32.mrf.mxu0
        %v1199 = vadd.f32 %v1130, %v1198
        %1200 = vmatmul.bf16.gmra.mxu0 %v785
        %v1201 = vpop.f32.mrf.mxu0
        %v1202 = vadd.f32 %v1133, %v1201
        %v1203 = vpop.f32.mrf.mxu0
        %v1204 = vadd.f32 %v1135, %v1203
        %1205 = vmatmul.bf16.gmra.mxu0 %v788
        %v1206 = vpop.f32.mrf.mxu0
        %v1207 = vadd.f32 %v1138, %v1206
        %v1208 = vpop.f32.mrf.mxu0
        %v1209 = vadd.f32 %v1140, %v1208
        %1210 = vmatmul.bf16.gmra.mxu0 %v791
        %v1211 = vpop.f32.mrf.mxu0
        %v1212 = vadd.f32 %v1143, %v1211
        %v1213 = vpop.f32.mrf.mxu0
        %v1214 = vadd.f32 %v1145, %v1213
        %1215 = vmatmul.bf16.gmra.mxu0 %v794
        %v1216 = vpop.f32.mrf.mxu0
        %v1217 = vadd.f32 %v1148, %v1216
        %v1218 = vpop.f32.mrf.mxu0
        %v1219 = vadd.f32 %v1150, %v1218
        %1220 = vmatmul.bf16.gmra.mxu0 %v797
        %v1221 = vpop.f32.mrf.mxu0
        %v1222 = vadd.f32 %v1153, %v1221
        %v1223 = vpop.f32.mrf.mxu0
        %v1224 = vadd.f32 %v1155, %v1223
        %1225 = vdwg.mxu0
        %1226 = vmatpush.bf16.msra.mxu0 %v725
        %1227 = vmatpush.bf16.msra.mxu0 %v721
        %1228 = vmatpush.bf16.msra.mxu0 %v717
        %1229 = vmatpush.bf16.msra.mxu0 %v713
        %1230 = vmatpush.bf16.msra.mxu0 %v709
        %1231 = vmatpush.bf16.msra.mxu0 %v705
        %1232 = vmatpush.bf16.msra.mxu0 %v701
        %1233 = vmatpush.bf16.msra.mxu0 %v697
        %1234 = vmatmul.bf16.gmra.mxu0 %v526
        %v1235 = vpop.f32.mrf.mxu0
        %v1236 = vadd.f32 0.0, %v1235
        %v1237 = vpop.f32.mrf.mxu0
        %v1238 = vadd.f32 0.0, %v1237
        %1239 = vmatmul.bf16.gmra.mxu0 %v528
        %v1240 = vpop.f32.mrf.mxu0
        %v1241 = vadd.f32 0.0, %v1240
        %v1242 = vpop.f32.mrf.mxu0
        %v1243 = vadd.f32 0.0, %v1242
        %1244 = vmatmul.bf16.gmra.mxu0 %v530
        %v1245 = vpop.f32.mrf.mxu0
        %v1246 = vadd.f32 0.0, %v1245
        %v1247 = vpop.f32.mrf.mxu0
        %v1248 = vadd.f32 0.0, %v1247
        %1249 = vmatmul.bf16.gmra.mxu0 %v532
        %v1250 = vpop.f32.mrf.mxu0
        %v1251 = vadd.f32 0.0, %v1250
        %v1252 = vpop.f32.mrf.mxu0
        %v1253 = vadd.f32 0.0, %v1252
        %1254 = vmatmul.bf16.gmra.mxu0 %v534
        %v1255 = vpop.f32.mrf.mxu0
        %v1256 = vadd.f32 0.0, %v1255
        %v1257 = vpop.f32.mrf.mxu0
        %v1258 = vadd.f32 0.0, %v1257
        %1259 = vmatmul.bf16.gmra.mxu0 %v536
        %v1260 = vpop.f32.mrf.mxu0
        %v1261 = vadd.f32 0.0, %v1260
        %v1262 = vpop.f32.mrf.mxu0
        %v1263 = vadd.f32 0.0, %v1262
        %1264 = vmatmul.bf16.gmra.mxu0 %v538
        %v1265 = vpop.f32.mrf.mxu0
        %v1266 = vadd.f32 0.0, %v1265
        %v1267 = vpop.f32.mrf.mxu0
        %v1268 = vadd.f32 0.0, %v1267
        %1269 = vmatmul.bf16.gmra.mxu0 %v540
        %v1270 = vpop.f32.mrf.mxu0
        %v1271 = vadd.f32 0.0, %v1270
        %v1272 = vpop.f32.mrf.mxu0
        %v1273 = vadd.f32 0.0, %v1272
        %1274 = vmatmul.bf16.gmra.mxu0 %v542
        %v1275 = vpop.f32.mrf.mxu0
        %v1276 = vadd.f32 0.0, %v1275
        %v1277 = vpop.f32.mrf.mxu0
        %v1278 = vadd.f32 0.0, %v1277
        %1279 = vmatmul.bf16.gmra.mxu0 %v544
        %v1280 = vpop.f32.mrf.mxu0
        %v1281 = vadd.f32 0.0, %v1280
        %v1282 = vpop.f32.mrf.mxu0
        %v1283 = vadd.f32 0.0, %v1282
        %1284 = vmatmul.bf16.gmra.mxu0 %v546
        %v1285 = vpop.f32.mrf.mxu0
        %v1286 = vadd.f32 0.0, %v1285
        %v1287 = vpop.f32.mrf.mxu0
        %v1288 = vadd.f32 0.0, %v1287
        %1289 = vmatmul.bf16.gmra.mxu0 %v548
        %v1290 = vpop.f32.mrf.mxu0
        %v1291 = vadd.f32 0.0, %v1290
        %v1292 = vpop.f32.mrf.mxu0
        %v1293 = vadd.f32 0.0, %v1292
        %1294 = vdwg.mxu0
        %1295 = vmatpush.bf16.msra.mxu0 0
        %1296 = vmatpush.bf16.msra.mxu0 0
        %1297 = vmatpush.bf16.msra.mxu0 0
        %1298 = vmatpush.bf16.msra.mxu0 0
        %1299 = vmatpush.bf16.msra.mxu0 0
        %1300 = vmatpush.bf16.msra.mxu0 0
        %1301 = vmatpush.bf16.msra.mxu0 0
        %1302 = vmatpush.bf16.msra.mxu0 %v810
        %1303 = vmatmul.bf16.gmra.mxu0 %v764
        %v1304 = vpop.f32.mrf.mxu0
        %v1305 = vadd.f32 %v1236, %v1304
        %v1306 = vpop.f32.mrf.mxu0
        %v1307 = vadd.f32 %v1238, %v1306
        %1308 = vmatmul.bf16.gmra.mxu0 %v767
        %v1309 = vpop.f32.mrf.mxu0
        %v1310 = vadd.f32 %v1241, %v1309
        %v1311 = vpop.f32.mrf.mxu0
        %v1312 = vadd.f32 %v1243, %v1311
        %1313 = vmatmul.bf16.gmra.mxu0 %v770
        %v1314 = vpop.f32.mrf.mxu0
        %v1315 = vadd.f32 %v1246, %v1314
        %v1316 = vpop.f32.mrf.mxu0
        %v1317 = vadd.f32 %v1248, %v1316
        %1318 = vmatmul.bf16.gmra.mxu0 %v773
        %v1319 = vpop.f32.mrf.mxu0
        %v1320 = vadd.f32 %v1251, %v1319
        %v1321 = vpop.f32.mrf.mxu0
        %v1322 = vadd.f32 %v1253, %v1321
        %1323 = vmatmul.bf16.gmra.mxu0 %v776
        %v1324 = vpop.f32.mrf.mxu0
        %v1325 = vadd.f32 %v1256, %v1324
        %v1326 = vpop.f32.mrf.mxu0
        %v1327 = vadd.f32 %v1258, %v1326
        %1328 = vmatmul.bf16.gmra.mxu0 %v779
        %v1329 = vpop.f32.mrf.mxu0
        %v1330 = vadd.f32 %v1261, %v1329
        %v1331 = vpop.f32.mrf.mxu0
        %v1332 = vadd.f32 %v1263, %v1331
        %1333 = vmatmul.bf16.gmra.mxu0 %v782
        %v1334 = vpop.f32.mrf.mxu0
        %v1335 = vadd.f32 %v1266, %v1334
        %v1336 = vpop.f32.mrf.mxu0
        %v1337 = vadd.f32 %v1268, %v1336
        %1338 = vmatmul.bf16.gmra.mxu0 %v785
        %v1339 = vpop.f32.mrf.mxu0
        %v1340 = vadd.f32 %v1271, %v1339
        %v1341 = vpop.f32.mrf.mxu0
        %v1342 = vadd.f32 %v1273, %v1341
        %1343 = vmatmul.bf16.gmra.mxu0 %v788
        %v1344 = vpop.f32.mrf.mxu0
        %v1345 = vadd.f32 %v1276, %v1344
        %v1346 = vpop.f32.mrf.mxu0
        %v1347 = vadd.f32 %v1278, %v1346
        %1348 = vmatmul.bf16.gmra.mxu0 %v791
        %v1349 = vpop.f32.mrf.mxu0
        %v1350 = vadd.f32 %v1281, %v1349
        %v1351 = vpop.f32.mrf.mxu0
        %v1352 = vadd.f32 %v1283, %v1351
        %1353 = vmatmul.bf16.gmra.mxu0 %v794
        %v1354 = vpop.f32.mrf.mxu0
        %v1355 = vadd.f32 %v1286, %v1354
        %v1356 = vpop.f32.mrf.mxu0
        %v1357 = vadd.f32 %v1288, %v1356
        %1358 = vmatmul.bf16.gmra.mxu0 %v797
        %v1359 = vpop.f32.mrf.mxu0
        %v1360 = vadd.f32 %v1291, %v1359
        %v1361 = vpop.f32.mrf.mxu0
        %v1362 = vadd.f32 %v1293, %v1361
        %1363 = vdwg.mxu0
        %v1364 = vmax.f32 %v891, %v1167
        %v1365 = vmax.f32 %v1029, %v1305
        %v1366 = vmax.f32 %v893, %v1169
        %v1367 = vmax.f32 %v1031, %v1307
        %v1368 = vmax.f32 %v896, %v1172
        %v1369 = vmax.f32 %v1034, %v1310
        %v1370 = vmax.f32 %v898, %v1174
        %v1371 = vmax.f32 %v1036, %v1312
        %v1372 = vmax.f32 %v901, %v1177
        %v1373 = vmax.f32 %v1039, %v1315
        %v1374 = vmax.f32 %v903, %v1179
        %v1375 = vmax.f32 %v1041, %v1317
        %v1376 = vmax.f32 %v906, %v1182
        %v1377 = vmax.f32 %v1044, %v1320
        %v1378 = vmax.f32 %v908, %v1184
        %v1379 = vmax.f32 %v1046, %v1322
        %v1380 = vmax.f32 %v911, %v1187
        %v1381 = vmax.f32 %v1049, %v1325
        %v1382 = vmax.f32 %v913, %v1189
        %v1383 = vmax.f32 %v1051, %v1327
        %v1384 = vmax.f32 %v916, %v1192
        %v1385 = vmax.f32 %v1054, %v1330
        %v1386 = vmax.f32 %v918, %v1194
        %v1387 = vmax.f32 %v1056, %v1332
        %v1388 = vmax.f32 %v921, %v1197
        %v1389 = vmax.f32 %v1059, %v1335
        %v1390 = vmax.f32 %v923, %v1199
        %v1391 = vmax.f32 %v1061, %v1337
        %v1392 = vmax.f32 %v926, %v1202
        %v1393 = vmax.f32 %v1064, %v1340
        %v1394 = vmax.f32 %v928, %v1204
        %v1395 = vmax.f32 %v1066, %v1342
        %v1396 = vmax.f32 %v931, %v1207
        %v1397 = vmax.f32 %v1069, %v1345
        %v1398 = vmax.f32 %v933, %v1209
        %v1399 = vmax.f32 %v1071, %v1347
        %v1400 = vmax.f32 %v936, %v1212
        %v1401 = vmax.f32 %v1074, %v1350
        %v1402 = vmax.f32 %v938, %v1214
        %v1403 = vmax.f32 %v1076, %v1352
        %v1404 = vmax.f32 %v941, %v1217
        %v1405 = vmax.f32 %v1079, %v1355
        %v1406 = vmax.f32 %v943, %v1219
        %v1407 = vmax.f32 %v1081, %v1357
        %v1408 = vmax.f32 %v946, %v1222
        %v1409 = vmax.f32 %v1084, %v1360
        %v1410 = vmax.f32 %v948, %v1224
        %v1411 = vmax.f32 %v1086, %v1362
        %v1412 = vmax.f32 %v1364, %v1366
        %v1413 = vmax.f32 %v1365, %v1367
        %v1414 = vmax.f32 %v1368, %v1370
        %v1415 = vmax.f32 %v1369, %v1371
        %v1416 = vmax.f32 %v1372, %v1374
        %v1417 = vmax.f32 %v1373, %v1375
        %v1418 = vmax.f32 %v1376, %v1378
        %v1419 = vmax.f32 %v1377, %v1379
        %v1420 = vmax.f32 %v1380, %v1382
        %v1421 = vmax.f32 %v1381, %v1383
        %v1422 = vmax.f32 %v1384, %v1386
        %v1423 = vmax.f32 %v1385, %v1387
        %v1424 = vmax.f32 %v1388, %v1390
        %v1425 = vmax.f32 %v1389, %v1391
        %v1426 = vmax.f32 %v1392, %v1394
        %v1427 = vmax.f32 %v1393, %v1395
        %v1428 = vmax.f32 %v1396, %v1398
        %v1429 = vmax.f32 %v1397, %v1399
        %v1430 = vmax.f32 %v1400, %v1402
        %v1431 = vmax.f32 %v1401, %v1403
        %v1432 = vmax.f32 %v1404, %v1406
        %v1433 = vmax.f32 %v1405, %v1407
        %v1434 = vmax.f32 %v1408, %v1410
        %v1435 = vmax.f32 %v1409, %v1411
        %v1436 = vld [vmem:[#allocation7] sm:$0x3]
        %v1438 = vperm.slane %v1436, 0
        %v1439 = vperm.slane %v1436, 1
        %v1442 = vadd.f32 %v1412, %v1438
        %v1443 = vadd.f32 %v1413, %v1439
        %v1444 = vadd.f32 %v1414, %v1438
        %v1445 = vadd.f32 %v1415, %v1439
        %v1446 = vadd.f32 %v1416, %v1438
        %v1447 = vadd.f32 %v1417, %v1439
        %v1448 = vadd.f32 %v1418, %v1438
        %v1449 = vadd.f32 %v1419, %v1439
        %v1450 = vadd.f32 %v1420, %v1438
        %v1451 = vadd.f32 %v1421, %v1439
        %v1452 = vadd.f32 %v1422, %v1438
        %v1453 = vadd.f32 %v1423, %v1439
        %v1454 = vadd.f32 %v1424, %v1438
        %v1455 = vadd.f32 %v1425, %v1439
        %v1456 = vadd.f32 %v1426, %v1438
        %v1457 = vadd.f32 %v1427, %v1439
        %v1458 = vadd.f32 %v1428, %v1438
        %v1459 = vadd.f32 %v1429, %v1439
        %v1460 = vadd.f32 %v1430, %v1438
        %v1461 = vadd.f32 %v1431, %v1439
        %v1462 = vadd.f32 %v1432, %v1438
        %v1463 = vadd.f32 %v1433, %v1439
        %v1464 = vadd.f32 %v1434, %v1438
        %v1465 = vadd.f32 %v1435, %v1439
        %v1466 = vmax.f32 %v1442, 0.0
        %v1467 = vmax.f32 %v1443, 0.0
        %v1468 = vmax.f32 %v1444, 0.0
        %v1469 = vmax.f32 %v1445, 0.0
        %v1470 = vmax.f32 %v1446, 0.0
        %v1471 = vmax.f32 %v1447, 0.0
        %v1472 = vmax.f32 %v1448, 0.0
        %v1473 = vmax.f32 %v1449, 0.0
        %v1474 = vmax.f32 %v1450, 0.0
        %v1475 = vmax.f32 %v1451, 0.0
        %v1476 = vmax.f32 %v1452, 0.0
        %v1477 = vmax.f32 %v1453, 0.0
        %v1478 = vmax.f32 %v1454, 0.0
        %v1479 = vmax.f32 %v1455, 0.0
        %v1480 = vmax.f32 %v1456, 0.0
        %v1481 = vmax.f32 %v1457, 0.0
        %v1482 = vmax.f32 %v1458, 0.0
        %v1483 = vmax.f32 %v1459, 0.0
        %v1484 = vmax.f32 %v1460, 0.0
        %v1485 = vmax.f32 %v1461, 0.0
        %v1486 = vmax.f32 %v1462, 0.0
        %v1487 = vmax.f32 %v1463, 0.0
        %v1488 = vmax.f32 %v1464, 0.0
        %v1489 = vmax.f32 %v1465, 0.0
        %v1490 = vpack.c.bf16 %v1468, %v1466
        %v1491 = vpack.c.bf16 %v1469, %v1467
        %v1492 = vpack.c.bf16 %v1472, %v1470
        %v1493 = vpack.c.bf16 %v1473, %v1471
        %v1494 = vpack.c.bf16 %v1476, %v1474
        %v1495 = vpack.c.bf16 %v1477, %v1475
        %v1496 = vpack.c.bf16 %v1480, %v1478
        %v1497 = vpack.c.bf16 %v1481, %v1479
        %v1498 = vld [vmem:[#allocation8] sm:$0xff]
        %v1499 = vld [vmem:[#allocation8 + $0x8] sm:$0xff]
        %v1500 = vld [vmem:[#allocation8 + $0x10] sm:$0xff]
        %v1501 = vld [vmem:[#allocation8 + $0x18] sm:$0xff]
        %v1502 = vld [vmem:[#allocation8 + $0x20] sm:$0xff]
        %v1503 = vld [vmem:[#allocation8 + $0x28] sm:$0xff]
        %v1504 = vld [vmem:[#allocation8 + $0x30] sm:$0xff]
        %v1505 = vld [vmem:[#allocation8 + $0x38] sm:$0xff]
        %v1506 = vld [vmem:[#allocation8 + $0x40] sm:$0xff]
        %v1507 = vld [vmem:[#allocation8 + $0x48] sm:$0xff]
        %v1508 = vld [vmem:[#allocation8 + $0x50] sm:$0xff]
        %v1509 = vld [vmem:[#allocation8 + $0x58] sm:$0xff]
        %v1510 = vld [vmem:[#allocation8 + $0x60] sm:$0xff]
        %v1511 = vld [vmem:[#allocation8 + $0x68] sm:$0xff]
        %v1512 = vld [vmem:[#allocation8 + $0x70] sm:$0xff]
        %v1513 = vld [vmem:[#allocation8 + $0x78] sm:$0xff]
        %v1514 = vld [vmem:[#allocation8 + $0x80] sm:$0xff]
        %v1515 = vld [vmem:[#allocation8 + $0x88] sm:$0xff]
        %v1516 = vld [vmem:[#allocation8 + $0x90] sm:$0xff]
        %v1517 = vld [vmem:[#allocation8 + $0x98] sm:$0xff]
        %v1518 = vld [vmem:[#allocation8 + $0xa0] sm:$0xff]
        %v1519 = vld [vmem:[#allocation8 + $0xa8] sm:$0xff]
        %v1520 = vld [vmem:[#allocation8 + $0xb0] sm:$0xff]
        %v1521 = vld [vmem:[#allocation8 + $0xb8] sm:$0xff]
        %v1522 = vld [vmem:[#allocation8 + $0xc0] sm:$0xff]
        %v1523 = vld [vmem:[#allocation8 + $0xc8] sm:$0xff]
        %v1524 = vld [vmem:[#allocation8 + $0xd0] sm:$0xff]
        %v1525 = vld [vmem:[#allocation8 + $0xd8] sm:$0xff]
        %v1526 = vld [vmem:[#allocation8 + $0xe0] sm:$0xff]
        %v1527 = vld [vmem:[#allocation8 + $0xe8] sm:$0xff]
        %v1528 = vld [vmem:[#allocation8 + $0xf0] sm:$0xff]
        %v1529 = vld [vmem:[#allocation8 + $0xf8] sm:$0xff]
        %v1530 = vld [vmem:[#allocation8 + $0x100] sm:$0xff]
        %v1531 = vld [vmem:[#allocation8 + $0x108] sm:$0xff]
        %v1532 = vld [vmem:[#allocation8 + $0x110] sm:$0xff]
        %v1533 = vld [vmem:[#allocation8 + $0x118] sm:$0xff]
        %v1534 = vld [vmem:[#allocation8 + $0x120] sm:$0xff]
        %v1535 = vld [vmem:[#allocation8 + $0x128] sm:$0xff]
        %v1536 = vld [vmem:[#allocation8 + $0x130] sm:$0xff]
        %v1537 = vld [vmem:[#allocation8 + $0x138] sm:$0xff]
        %v1538 = vld [vmem:[#allocation8 + $0x140] sm:$0xff]
        %v1539 = vld [vmem:[#allocation8 + $0x148] sm:$0xff]
        %v1540 = vld [vmem:[#allocation8 + $0x150] sm:$0xff]
        %v1541 = vld [vmem:[#allocation8 + $0x158] sm:$0xff]
        %v1542 = vld [vmem:[#allocation8 + $0x160] sm:$0xff]
        %v1543 = vld [vmem:[#allocation8 + $0x168] sm:$0xff]
        %v1544 = vld [vmem:[#allocation8 + $0x170] sm:$0xff]
        %v1545 = vld [vmem:[#allocation8 + $0x178] sm:$0xff]
        %v1546 = vld [vmem:[#allocation8 + $0x180] sm:$0xff]
        %v1547 = vld [vmem:[#allocation8 + $0x188] sm:$0xff]
        %v1548 = vld [vmem:[#allocation8 + $0x190] sm:$0xff]
        %v1549 = vld [vmem:[#allocation8 + $0x198] sm:$0xff]
        %v1550 = vld [vmem:[#allocation8 + $0x1a0] sm:$0xff]
        %v1551 = vld [vmem:[#allocation8 + $0x1a8] sm:$0xff]
        %v1552 = vld [vmem:[#allocation8 + $0x1b0] sm:$0xff]
        %v1553 = vld [vmem:[#allocation8 + $0x1b8] sm:$0xff]
        %v1554 = vld [vmem:[#allocation8 + $0x1c0] sm:$0xff]
        %v1555 = vld [vmem:[#allocation8 + $0x1c8] sm:$0xff]
        %v1556 = vld [vmem:[#allocation8 + $0x1d0] sm:$0xff]
        %v1557 = vld [vmem:[#allocation8 + $0x1d8] sm:$0xff]
        %v1558 = vld [vmem:[#allocation8 + $0x1e0] sm:$0xff]
        %v1559 = vld [vmem:[#allocation8 + $0x1e8] sm:$0xff]
        %v1560 = vld [vmem:[#allocation8 + $0x1f0] sm:$0xff]
        %v1561 = vld [vmem:[#allocation8 + $0x1f8] sm:$0xff]
        %v1562 = vpack.c.bf16 %v1470, %v1468
        %v1563 = vpack.c.bf16 %v1471, %v1469
        %v1564 = vpack.c.bf16 %v1474, %v1472
        %v1565 = vpack.c.bf16 %v1475, %v1473
        %v1566 = vpack.c.bf16 %v1478, %v1476
        %v1567 = vpack.c.bf16 %v1479, %v1477
        %v1568 = vpack.c.bf16 %v1482, %v1480
        %v1569 = vpack.c.bf16 %v1483, %v1481
        %s1570 = scalar_lea.vmem [#allocation8], 512
        %v1571 = vld [vmem:[%s1570] sm:$0xff]
        %v1572 = vld [vmem:[%s1570 + $0x8] sm:$0xff]
        %v1573 = vld [vmem:[%s1570 + $0x10] sm:$0xff]
        %v1574 = vld [vmem:[%s1570 + $0x18] sm:$0xff]
        %v1575 = vld [vmem:[%s1570 + $0x20] sm:$0xff]
        %v1576 = vld [vmem:[%s1570 + $0x28] sm:$0xff]
        %v1577 = vld [vmem:[%s1570 + $0x30] sm:$0xff]
        %v1578 = vld [vmem:[%s1570 + $0x38] sm:$0xff]
        %v1579 = vld [vmem:[%s1570 + $0x40] sm:$0xff]
        %v1580 = vld [vmem:[%s1570 + $0x48] sm:$0xff]
        %v1581 = vld [vmem:[%s1570 + $0x50] sm:$0xff]
        %v1582 = vld [vmem:[%s1570 + $0x58] sm:$0xff]
        %v1583 = vld [vmem:[%s1570 + $0x60] sm:$0xff]
        %v1584 = vld [vmem:[%s1570 + $0x68] sm:$0xff]
        %v1585 = vld [vmem:[%s1570 + $0x70] sm:$0xff]
        %v1586 = vld [vmem:[%s1570 + $0x78] sm:$0xff]
        %v1587 = vld [vmem:[%s1570 + $0x80] sm:$0xff]
        %v1588 = vld [vmem:[%s1570 + $0x88] sm:$0xff]
        %v1589 = vld [vmem:[%s1570 + $0x90] sm:$0xff]
        %v1590 = vld [vmem:[%s1570 + $0x98] sm:$0xff]
        %v1591 = vld [vmem:[%s1570 + $0xa0] sm:$0xff]
        %v1592 = vld [vmem:[%s1570 + $0xa8] sm:$0xff]
        %v1593 = vld [vmem:[%s1570 + $0xb0] sm:$0xff]
        %v1594 = vld [vmem:[%s1570 + $0xb8] sm:$0xff]
        %v1595 = vld [vmem:[%s1570 + $0xc0] sm:$0xff]
        %v1596 = vld [vmem:[%s1570 + $0xc8] sm:$0xff]
        %v1597 = vld [vmem:[%s1570 + $0xd0] sm:$0xff]
        %v1598 = vld [vmem:[%s1570 + $0xd8] sm:$0xff]
        %v1599 = vld [vmem:[%s1570 + $0xe0] sm:$0xff]
        %v1600 = vld [vmem:[%s1570 + $0xe8] sm:$0xff]
        %v1601 = vld [vmem:[%s1570 + $0xf0] sm:$0xff]
        %v1602 = vld [vmem:[%s1570 + $0xf8] sm:$0xff]
        %v1603 = vld [vmem:[%s1570 + $0x100] sm:$0xff]
        %v1604 = vld [vmem:[%s1570 + $0x108] sm:$0xff]
        %v1605 = vld [vmem:[%s1570 + $0x110] sm:$0xff]
        %v1606 = vld [vmem:[%s1570 + $0x118] sm:$0xff]
        %v1607 = vld [vmem:[%s1570 + $0x120] sm:$0xff]
        %v1608 = vld [vmem:[%s1570 + $0x128] sm:$0xff]
        %v1609 = vld [vmem:[%s1570 + $0x130] sm:$0xff]
        %v1610 = vld [vmem:[%s1570 + $0x138] sm:$0xff]
        %v1611 = vld [vmem:[%s1570 + $0x140] sm:$0xff]
        %v1612 = vld [vmem:[%s1570 + $0x148] sm:$0xff]
        %v1613 = vld [vmem:[%s1570 + $0x150] sm:$0xff]
        %v1614 = vld [vmem:[%s1570 + $0x158] sm:$0xff]
        %v1615 = vld [vmem:[%s1570 + $0x160] sm:$0xff]
        %v1616 = vld [vmem:[%s1570 + $0x168] sm:$0xff]
        %v1617 = vld [vmem:[%s1570 + $0x170] sm:$0xff]
        %v1618 = vld [vmem:[%s1570 + $0x178] sm:$0xff]
        %v1619 = vld [vmem:[%s1570 + $0x180] sm:$0xff]
        %v1620 = vld [vmem:[%s1570 + $0x188] sm:$0xff]
        %v1621 = vld [vmem:[%s1570 + $0x190] sm:$0xff]
        %v1622 = vld [vmem:[%s1570 + $0x198] sm:$0xff]
        %v1623 = vld [vmem:[%s1570 + $0x1a0] sm:$0xff]
        %v1624 = vld [vmem:[%s1570 + $0x1a8] sm:$0xff]
        %v1625 = vld [vmem:[%s1570 + $0x1b0] sm:$0xff]
        %v1626 = vld [vmem:[%s1570 + $0x1b8] sm:$0xff]
        %v1627 = vld [vmem:[%s1570 + $0x1c0] sm:$0xff]
        %v1628 = vld [vmem:[%s1570 + $0x1c8] sm:$0xff]
        %v1629 = vld [vmem:[%s1570 + $0x1d0] sm:$0xff]
        %v1630 = vld [vmem:[%s1570 + $0x1d8] sm:$0xff]
        %v1631 = vld [vmem:[%s1570 + $0x1e0] sm:$0xff]
        %v1632 = vld [vmem:[%s1570 + $0x1e8] sm:$0xff]
        %v1633 = vld [vmem:[%s1570 + $0x1f0] sm:$0xff]
        %v1634 = vld [vmem:[%s1570 + $0x1f8] sm:$0xff]
        %v1699 = vunpack.c.l.b16 %v1571
        %v1700 = vunpack.c.h.b16 %v1571
        %v1701 = vunpack.c.l.b16 %v1572
        %v1702 = vunpack.c.h.b16 %v1572
        %v1703 = vunpack.c.l.b16 %v1573
        %v1704 = vunpack.c.h.b16 %v1573
        %v1705 = vunpack.c.l.b16 %v1574
        %v1706 = vunpack.c.h.b16 %v1574
        %v1707 = vunpack.c.l.b16 %v1575
        %v1708 = vunpack.c.h.b16 %v1575
        %v1709 = vunpack.c.l.b16 %v1576
        %v1710 = vunpack.c.h.b16 %v1576
        %v1711 = vunpack.c.l.b16 %v1577
        %v1712 = vunpack.c.h.b16 %v1577
        %v1713 = vunpack.c.l.b16 %v1578
        %v1714 = vunpack.c.h.b16 %v1578
        %v1715 = vunpack.c.l.b16 %v1579
        %v1716 = vunpack.c.h.b16 %v1579
        %v1717 = vunpack.c.l.b16 %v1580
        %v1718 = vunpack.c.h.b16 %v1580
        %v1719 = vunpack.c.l.b16 %v1581
        %v1720 = vunpack.c.h.b16 %v1581
        %v1721 = vunpack.c.l.b16 %v1582
        %v1722 = vunpack.c.h.b16 %v1582
        %v1723 = vunpack.c.l.b16 %v1583
        %v1724 = vunpack.c.h.b16 %v1583
        %v1725 = vunpack.c.l.b16 %v1584
        %v1726 = vunpack.c.h.b16 %v1584
        %v1727 = vunpack.c.l.b16 %v1585
        %v1728 = vunpack.c.h.b16 %v1585
        %v1729 = vunpack.c.l.b16 %v1586
        %v1730 = vunpack.c.h.b16 %v1586
        %v1731 = vunpack.c.l.b16 %v1587
        %v1732 = vunpack.c.h.b16 %v1587
        %v1733 = vunpack.c.l.b16 %v1588
        %v1734 = vunpack.c.h.b16 %v1588
        %v1735 = vunpack.c.l.b16 %v1589
        %v1736 = vunpack.c.h.b16 %v1589
        %v1737 = vunpack.c.l.b16 %v1590
        %v1738 = vunpack.c.h.b16 %v1590
        %v1739 = vunpack.c.l.b16 %v1591
        %v1740 = vunpack.c.h.b16 %v1591
        %v1741 = vunpack.c.l.b16 %v1592
        %v1742 = vunpack.c.h.b16 %v1592
        %v1743 = vunpack.c.l.b16 %v1593
        %v1744 = vunpack.c.h.b16 %v1593
        %v1745 = vunpack.c.l.b16 %v1594
        %v1746 = vunpack.c.h.b16 %v1594
        %v1747 = vunpack.c.l.b16 %v1595
        %v1748 = vunpack.c.h.b16 %v1595
        %v1749 = vunpack.c.l.b16 %v1596
        %v1750 = vunpack.c.h.b16 %v1596
        %v1751 = vunpack.c.l.b16 %v1597
        %v1752 = vunpack.c.h.b16 %v1597
        %v1753 = vunpack.c.l.b16 %v1598
        %v1754 = vunpack.c.h.b16 %v1598
        %v1755 = vunpack.c.l.b16 %v1599
        %v1756 = vunpack.c.h.b16 %v1599
        %v1757 = vunpack.c.l.b16 %v1600
        %v1758 = vunpack.c.h.b16 %v1600
        %v1759 = vunpack.c.l.b16 %v1601
        %v1760 = vunpack.c.h.b16 %v1601
        %v1761 = vunpack.c.l.b16 %v1602
        %v1762 = vunpack.c.h.b16 %v1602
        %v1763 = vunpack.c.l.b16 %v1603
        %v1764 = vunpack.c.h.b16 %v1603
        %v1765 = vunpack.c.l.b16 %v1604
        %v1766 = vunpack.c.h.b16 %v1604
        %v1767 = vunpack.c.l.b16 %v1605
        %v1768 = vunpack.c.h.b16 %v1605
        %v1769 = vunpack.c.l.b16 %v1606
        %v1770 = vunpack.c.h.b16 %v1606
        %v1771 = vunpack.c.l.b16 %v1607
        %v1772 = vunpack.c.h.b16 %v1607
        %v1773 = vunpack.c.l.b16 %v1608
        %v1774 = vunpack.c.h.b16 %v1608
        %v1775 = vunpack.c.l.b16 %v1609
        %v1776 = vunpack.c.h.b16 %v1609
        %v1777 = vunpack.c.l.b16 %v1610
        %v1778 = vunpack.c.h.b16 %v1610
        %v1779 = vunpack.c.l.b16 %v1611
        %v1780 = vunpack.c.h.b16 %v1611
        %v1781 = vunpack.c.l.b16 %v1612
        %v1782 = vunpack.c.h.b16 %v1612
        %v1783 = vunpack.c.l.b16 %v1613
        %v1784 = vunpack.c.h.b16 %v1613
        %v1785 = vunpack.c.l.b16 %v1614
        %v1786 = vunpack.c.h.b16 %v1614
        %v1787 = vunpack.c.l.b16 %v1615
        %v1788 = vunpack.c.h.b16 %v1615
        %v1789 = vunpack.c.l.b16 %v1616
        %v1790 = vunpack.c.h.b16 %v1616
        %v1791 = vunpack.c.l.b16 %v1617
        %v1792 = vunpack.c.h.b16 %v1617
        %v1793 = vunpack.c.l.b16 %v1618
        %v1794 = vunpack.c.h.b16 %v1618
        %v1795 = vunpack.c.l.b16 %v1619
        %v1796 = vunpack.c.h.b16 %v1619
        %v1797 = vunpack.c.l.b16 %v1620
        %v1798 = vunpack.c.h.b16 %v1620
        %v1799 = vunpack.c.l.b16 %v1621
        %v1800 = vunpack.c.h.b16 %v1621
        %v1801 = vunpack.c.l.b16 %v1622
        %v1802 = vunpack.c.h.b16 %v1622
        %v1803 = vunpack.c.l.b16 %v1623
        %v1804 = vunpack.c.h.b16 %v1623
        %v1805 = vunpack.c.l.b16 %v1624
        %v1806 = vunpack.c.h.b16 %v1624
        %v1807 = vunpack.c.l.b16 %v1625
        %v1808 = vunpack.c.h.b16 %v1625
        %v1809 = vunpack.c.l.b16 %v1626
        %v1810 = vunpack.c.h.b16 %v1626
        %v1811 = vunpack.c.l.b16 %v1627
        %v1812 = vunpack.c.h.b16 %v1627
        %v1813 = vunpack.c.l.b16 %v1628
        %v1814 = vunpack.c.h.b16 %v1628
        %v1815 = vunpack.c.l.b16 %v1629
        %v1816 = vunpack.c.h.b16 %v1629
        %v1817 = vunpack.c.l.b16 %v1630
        %v1818 = vunpack.c.h.b16 %v1630
        %v1819 = vunpack.c.l.b16 %v1631
        %v1820 = vunpack.c.h.b16 %v1631
        %v1821 = vunpack.c.l.b16 %v1632
        %v1822 = vunpack.c.h.b16 %v1632
        %v1823 = vunpack.c.l.b16 %v1633
        %v1824 = vunpack.c.h.b16 %v1633
        %v1825 = vunpack.c.l.b16 %v1634
        %v1826 = vunpack.c.h.b16 %v1634
        %v1827 = vpack.c.b16 %v1703, %v1699
        %v1828 = vpack.c.b16 %v1704, %v1700
        %v1829 = vpack.c.b16 %v1705, %v1701
        %v1830 = vpack.c.b16 %v1706, %v1702
        %v1831 = vpack.c.b16 %v1711, %v1707
        %v1832 = vpack.c.b16 %v1712, %v1708
        %v1833 = vpack.c.b16 %v1713, %v1709
        %v1834 = vpack.c.b16 %v1714, %v1710
        %v1835 = vpack.c.b16 %v1719, %v1715
        %v1836 = vpack.c.b16 %v1720, %v1716
        %v1837 = vpack.c.b16 %v1721, %v1717
        %v1838 = vpack.c.b16 %v1722, %v1718
        %v1839 = vpack.c.b16 %v1727, %v1723
        %v1840 = vpack.c.b16 %v1728, %v1724
        %v1841 = vpack.c.b16 %v1729, %v1725
        %v1842 = vpack.c.b16 %v1730, %v1726
        %v1843 = vpack.c.b16 %v1735, %v1731
        %v1844 = vpack.c.b16 %v1736, %v1732
        %v1845 = vpack.c.b16 %v1737, %v1733
        %v1846 = vpack.c.b16 %v1738, %v1734
        %v1847 = vpack.c.b16 %v1743, %v1739
        %v1848 = vpack.c.b16 %v1744, %v1740
        %v1849 = vpack.c.b16 %v1745, %v1741
        %v1850 = vpack.c.b16 %v1746, %v1742
        %v1851 = vpack.c.b16 %v1751, %v1747
        %v1852 = vpack.c.b16 %v1752, %v1748
        %v1853 = vpack.c.b16 %v1753, %v1749
        %v1854 = vpack.c.b16 %v1754, %v1750
        %v1855 = vpack.c.b16 %v1759, %v1755
        %v1856 = vpack.c.b16 %v1760, %v1756
        %v1857 = vpack.c.b16 %v1761, %v1757
        %v1858 = vpack.c.b16 %v1762, %v1758
        %v1859 = vpack.c.b16 %v1767, %v1763
        %v1860 = vpack.c.b16 %v1768, %v1764
        %v1861 = vpack.c.b16 %v1769, %v1765
        %v1862 = vpack.c.b16 %v1770, %v1766
        %v1863 = vpack.c.b16 %v1775, %v1771
        %v1864 = vpack.c.b16 %v1776, %v1772
        %v1865 = vpack.c.b16 %v1777, %v1773
        %v1866 = vpack.c.b16 %v1778, %v1774
        %v1867 = vpack.c.b16 %v1783, %v1779
        %v1868 = vpack.c.b16 %v1784, %v1780
        %v1869 = vpack.c.b16 %v1785, %v1781
        %v1870 = vpack.c.b16 %v1786, %v1782
        %v1871 = vpack.c.b16 %v1791, %v1787
        %v1872 = vpack.c.b16 %v1792, %v1788
        %v1873 = vpack.c.b16 %v1793, %v1789
        %v1874 = vpack.c.b16 %v1794, %v1790
        %v1875 = vpack.c.b16 %v1799, %v1795
        %v1876 = vpack.c.b16 %v1800, %v1796
        %v1877 = vpack.c.b16 %v1801, %v1797
        %v1878 = vpack.c.b16 %v1802, %v1798
        %v1879 = vpack.c.b16 %v1807, %v1803
        %v1880 = vpack.c.b16 %v1808, %v1804
        %v1881 = vpack.c.b16 %v1809, %v1805
        %v1882 = vpack.c.b16 %v1810, %v1806
        %v1883 = vpack.c.b16 %v1815, %v1811
        %v1884 = vpack.c.b16 %v1816, %v1812
        %v1885 = vpack.c.b16 %v1817, %v1813
        %v1886 = vpack.c.b16 %v1818, %v1814
        %v1887 = vpack.c.b16 %v1823, %v1819
        %v1888 = vpack.c.b16 %v1824, %v1820
        %v1889 = vpack.c.b16 %v1825, %v1821
        %v1890 = vpack.c.b16 %v1826, %v1822
        %1955 = vmatpush.bf16.msra.mxu0 %v1855
        %1956 = vmatpush.bf16.msra.mxu0 %v1851
        %1957 = vmatpush.bf16.msra.mxu0 %v1847
        %1958 = vmatpush.bf16.msra.mxu0 %v1843
        %1959 = vmatpush.bf16.msra.mxu0 %v1839
        %1960 = vmatpush.bf16.msra.mxu0 %v1835
        %1961 = vmatpush.bf16.msra.mxu0 %v1831
        %1962 = vmatpush.bf16.msra.mxu0 %v1827
        %1963 = vmatmul.bf16.gmra.mxu0 %v1562
        %v1964 = vpop.f32.mrf.mxu0
        %v1965 = vadd.f32 0.0, %v1964
        %v1966 = vpop.f32.mrf.mxu0
        %v1967 = vadd.f32 0.0, %v1966
        %1968 = vmatmul.bf16.gmra.mxu0 %v1564
        %v1969 = vpop.f32.mrf.mxu0
        %v1970 = vadd.f32 0.0, %v1969
        %v1971 = vpop.f32.mrf.mxu0
        %v1972 = vadd.f32 0.0, %v1971
        %1973 = vmatmul.bf16.gmra.mxu0 %v1566
        %v1974 = vpop.f32.mrf.mxu0
        %v1975 = vadd.f32 0.0, %v1974
        %v1976 = vpop.f32.mrf.mxu0
        %v1977 = vadd.f32 0.0, %v1976
        %1978 = vmatmul.bf16.gmra.mxu0 %v1568
        %v1979 = vpop.f32.mrf.mxu0
        %v1980 = vadd.f32 0.0, %v1979
        %v1981 = vpop.f32.mrf.mxu0
        %v1982 = vadd.f32 0.0, %v1981
        %1983 = vdwg.mxu0
        %1984 = vmatpush.bf16.msra.mxu0 %v1887
        %1985 = vmatpush.bf16.msra.mxu0 %v1883
        %1986 = vmatpush.bf16.msra.mxu0 %v1879
        %1987 = vmatpush.bf16.msra.mxu0 %v1875
        %1988 = vmatpush.bf16.msra.mxu0 %v1871
        %1989 = vmatpush.bf16.msra.mxu0 %v1867
        %1990 = vmatpush.bf16.msra.mxu0 %v1863
        %1991 = vmatpush.bf16.msra.mxu0 %v1859
        %1992 = vmatmul.bf16.gmra.mxu0 %v1563
        %v1993 = vpop.f32.mrf.mxu0
        %v1994 = vadd.f32 %v1965, %v1993
        %v1995 = vpop.f32.mrf.mxu0
        %v1996 = vadd.f32 %v1967, %v1995
        %1997 = vmatmul.bf16.gmra.mxu0 %v1565
        %v1998 = vpop.f32.mrf.mxu0
        %v1999 = vadd.f32 %v1970, %v1998
        %v2000 = vpop.f32.mrf.mxu0
        %v2001 = vadd.f32 %v1972, %v2000
        %2002 = vmatmul.bf16.gmra.mxu0 %v1567
        %v2003 = vpop.f32.mrf.mxu0
        %v2004 = vadd.f32 %v1975, %v2003
        %v2005 = vpop.f32.mrf.mxu0
        %v2006 = vadd.f32 %v1977, %v2005
        %2007 = vmatmul.bf16.gmra.mxu0 %v1569
        %v2008 = vpop.f32.mrf.mxu0
        %v2009 = vadd.f32 %v1980, %v2008
        %v2010 = vpop.f32.mrf.mxu0
        %v2011 = vadd.f32 %v1982, %v2010
        %2012 = vdwg.mxu0
        %2013 = vmatpush.bf16.msra.mxu0 %v1856
        %2014 = vmatpush.bf16.msra.mxu0 %v1852
        %2015 = vmatpush.bf16.msra.mxu0 %v1848
        %2016 = vmatpush.bf16.msra.mxu0 %v1844
        %2017 = vmatpush.bf16.msra.mxu0 %v1840
        %2018 = vmatpush.bf16.msra.mxu0 %v1836
        %2019 = vmatpush.bf16.msra.mxu0 %v1832
        %2020 = vmatpush.bf16.msra.mxu0 %v1828
        %2021 = vmatmul.bf16.gmra.mxu0 %v1562
        %v2022 = vpop.f32.mrf.mxu0
        %v2023 = vadd.f32 0.0, %v2022
        %v2024 = vpop.f32.mrf.mxu0
        %v2025 = vadd.f32 0.0, %v2024
        %2026 = vmatmul.bf16.gmra.mxu0 %v1564
        %v2027 = vpop.f32.mrf.mxu0
        %v2028 = vadd.f32 0.0, %v2027
        %v2029 = vpop.f32.mrf.mxu0
        %v2030 = vadd.f32 0.0, %v2029
        %2031 = vmatmul.bf16.gmra.mxu0 %v1566
        %v2032 = vpop.f32.mrf.mxu0
        %v2033 = vadd.f32 0.0, %v2032
        %v2034 = vpop.f32.mrf.mxu0
        %v2035 = vadd.f32 0.0, %v2034
        %2036 = vmatmul.bf16.gmra.mxu0 %v1568
        %v2037 = vpop.f32.mrf.mxu0
        %v2038 = vadd.f32 0.0, %v2037
        %v2039 = vpop.f32.mrf.mxu0
        %v2040 = vadd.f32 0.0, %v2039
        %2041 = vdwg.mxu0
        %2042 = vmatpush.bf16.msra.mxu0 %v1888
        %2043 = vmatpush.bf16.msra.mxu0 %v1884
        %2044 = vmatpush.bf16.msra.mxu0 %v1880
        %2045 = vmatpush.bf16.msra.mxu0 %v1876
        %2046 = vmatpush.bf16.msra.mxu0 %v1872
        %2047 = vmatpush.bf16.msra.mxu0 %v1868
        %2048 = vmatpush.bf16.msra.mxu0 %v1864
        %2049 = vmatpush.bf16.msra.mxu0 %v1860
        %2050 = vmatmul.bf16.gmra.mxu0 %v1563
        %v2051 = vpop.f32.mrf.mxu0
        %v2052 = vadd.f32 %v2023, %v2051
        %v2053 = vpop.f32.mrf.mxu0
        %v2054 = vadd.f32 %v2025, %v2053
        %2055 = vmatmul.bf16.gmra.mxu0 %v1565
        %v2056 = vpop.f32.mrf.mxu0
        %v2057 = vadd.f32 %v2028, %v2056
        %v2058 = vpop.f32.mrf.mxu0
        %v2059 = vadd.f32 %v2030, %v2058
        %2060 = vmatmul.bf16.gmra.mxu0 %v1567
        %v2061 = vpop.f32.mrf.mxu0
        %v2062 = vadd.f32 %v2033, %v2061
        %v2063 = vpop.f32.mrf.mxu0
        %v2064 = vadd.f32 %v2035, %v2063
        %2065 = vmatmul.bf16.gmra.mxu0 %v1569
        %v2066 = vpop.f32.mrf.mxu0
        %v2067 = vadd.f32 %v2038, %v2066
        %v2068 = vpop.f32.mrf.mxu0
        %v2069 = vadd.f32 %v2040, %v2068
        %2070 = vdwg.mxu0
        %2071 = vmatpush.bf16.msra.mxu0 %v1857
        %2072 = vmatpush.bf16.msra.mxu0 %v1853
        %2073 = vmatpush.bf16.msra.mxu0 %v1849
        %2074 = vmatpush.bf16.msra.mxu0 %v1845
        %2075 = vmatpush.bf16.msra.mxu0 %v1841
        %2076 = vmatpush.bf16.msra.mxu0 %v1837
        %2077 = vmatpush.bf16.msra.mxu0 %v1833
        %2078 = vmatpush.bf16.msra.mxu0 %v1829
        %2079 = vmatmul.bf16.gmra.mxu0 %v1562
        %v2080 = vpop.f32.mrf.mxu0
        %v2081 = vadd.f32 0.0, %v2080
        %v2082 = vpop.f32.mrf.mxu0
        %v2083 = vadd.f32 0.0, %v2082
        %2084 = vmatmul.bf16.gmra.mxu0 %v1564
        %v2085 = vpop.f32.mrf.mxu0
        %v2086 = vadd.f32 0.0, %v2085
        %v2087 = vpop.f32.mrf.mxu0
        %v2088 = vadd.f32 0.0, %v2087
        %2089 = vmatmul.bf16.gmra.mxu0 %v1566
        %v2090 = vpop.f32.mrf.mxu0
        %v2091 = vadd.f32 0.0, %v2090
        %v2092 = vpop.f32.mrf.mxu0
        %v2093 = vadd.f32 0.0, %v2092
        %2094 = vmatmul.bf16.gmra.mxu0 %v1568
        %v2095 = vpop.f32.mrf.mxu0
        %v2096 = vadd.f32 0.0, %v2095
        %v2097 = vpop.f32.mrf.mxu0
        %v2098 = vadd.f32 0.0, %v2097
        %2099 = vdwg.mxu0
        %2100 = vmatpush.bf16.msra.mxu0 %v1889
        %2101 = vmatpush.bf16.msra.mxu0 %v1885
        %2102 = vmatpush.bf16.msra.mxu0 %v1881
        %2103 = vmatpush.bf16.msra.mxu0 %v1877
        %2104 = vmatpush.bf16.msra.mxu0 %v1873
        %2105 = vmatpush.bf16.msra.mxu0 %v1869
        %2106 = vmatpush.bf16.msra.mxu0 %v1865
        %2107 = vmatpush.bf16.msra.mxu0 %v1861
        %2108 = vmatmul.bf16.gmra.mxu0 %v1563
        %v2109 = vpop.f32.mrf.mxu0
        %v2110 = vadd.f32 %v2081, %v2109
        %v2111 = vpop.f32.mrf.mxu0
        %v2112 = vadd.f32 %v2083, %v2111
        %2113 = vmatmul.bf16.gmra.mxu0 %v1565
        %v2114 = vpop.f32.mrf.mxu0
        %v2115 = vadd.f32 %v2086, %v2114
        %v2116 = vpop.f32.mrf.mxu0
        %v2117 = vadd.f32 %v2088, %v2116
        %2118 = vmatmul.bf16.gmra.mxu0 %v1567
        %v2119 = vpop.f32.mrf.mxu0
        %v2120 = vadd.f32 %v2091, %v2119
        %v2121 = vpop.f32.mrf.mxu0
        %v2122 = vadd.f32 %v2093, %v2121
        %2123 = vmatmul.bf16.gmra.mxu0 %v1569
        %v2124 = vpop.f32.mrf.mxu0
        %v2125 = vadd.f32 %v2096, %v2124
        %v2126 = vpop.f32.mrf.mxu0
        %v2127 = vadd.f32 %v2098, %v2126
        %2128 = vdwg.mxu0
        %2129 = vmatpush.bf16.msra.mxu0 %v1858
        %2130 = vmatpush.bf16.msra.mxu0 %v1854
        %2131 = vmatpush.bf16.msra.mxu0 %v1850
        %2132 = vmatpush.bf16.msra.mxu0 %v1846
        %2133 = vmatpush.bf16.msra.mxu0 %v1842
        %2134 = vmatpush.bf16.msra.mxu0 %v1838
        %2135 = vmatpush.bf16.msra.mxu0 %v1834
        %2136 = vmatpush.bf16.msra.mxu0 %v1830
        %2137 = vmatmul.bf16.gmra.mxu0 %v1562
        %v2138 = vpop.f32.mrf.mxu0
        %v2139 = vadd.f32 0.0, %v2138
        %v2140 = vpop.f32.mrf.mxu0
        %v2141 = vadd.f32 0.0, %v2140
        %2142 = vmatmul.bf16.gmra.mxu0 %v1564
        %v2143 = vpop.f32.mrf.mxu0
        %v2144 = vadd.f32 0.0, %v2143
        %v2145 = vpop.f32.mrf.mxu0
        %v2146 = vadd.f32 0.0, %v2145
        %2147 = vmatmul.bf16.gmra.mxu0 %v1566
        %v2148 = vpop.f32.mrf.mxu0
        %v2149 = vadd.f32 0.0, %v2148
        %v2150 = vpop.f32.mrf.mxu0
        %v2151 = vadd.f32 0.0, %v2150
        %2152 = vmatmul.bf16.gmra.mxu0 %v1568
        %v2153 = vpop.f32.mrf.mxu0
        %v2154 = vadd.f32 0.0, %v2153
        %v2155 = vpop.f32.mrf.mxu0
        %v2156 = vadd.f32 0.0, %v2155
        %2157 = vdwg.mxu0
        %2158 = vmatpush.bf16.msra.mxu0 %v1890
        %2159 = vmatpush.bf16.msra.mxu0 %v1886
        %2160 = vmatpush.bf16.msra.mxu0 %v1882
        %2161 = vmatpush.bf16.msra.mxu0 %v1878
        %2162 = vmatpush.bf16.msra.mxu0 %v1874
        %2163 = vmatpush.bf16.msra.mxu0 %v1870
        %2164 = vmatpush.bf16.msra.mxu0 %v1866
        %2165 = vmatpush.bf16.msra.mxu0 %v1862
        %2166 = vmatmul.bf16.gmra.mxu0 %v1563
        %v2167 = vpop.f32.mrf.mxu0
        %v2168 = vadd.f32 %v2139, %v2167
        %v2169 = vpop.f32.mrf.mxu0
        %v2170 = vadd.f32 %v2141, %v2169
        %2171 = vmatmul.bf16.gmra.mxu0 %v1565
        %v2172 = vpop.f32.mrf.mxu0
        %v2173 = vadd.f32 %v2144, %v2172
        %v2174 = vpop.f32.mrf.mxu0
        %v2175 = vadd.f32 %v2146, %v2174
        %2176 = vmatmul.bf16.gmra.mxu0 %v1567
        %v2177 = vpop.f32.mrf.mxu0
        %v2178 = vadd.f32 %v2149, %v2177
        %v2179 = vpop.f32.mrf.mxu0
        %v2180 = vadd.f32 %v2151, %v2179
        %2181 = vmatmul.bf16.gmra.mxu0 %v1569
        %v2182 = vpop.f32.mrf.mxu0
        %v2183 = vadd.f32 %v2154, %v2182
        %v2184 = vpop.f32.mrf.mxu0
        %v2185 = vadd.f32 %v2156, %v2184
        %2186 = vdwg.mxu0
        %v2251 = vunpack.c.l.b16 %v1498
        %v2252 = vunpack.c.h.b16 %v1498
        %v2253 = vunpack.c.l.b16 %v1499
        %v2254 = vunpack.c.h.b16 %v1499
        %v2255 = vunpack.c.l.b16 %v1500
        %v2256 = vunpack.c.h.b16 %v1500
        %v2257 = vunpack.c.l.b16 %v1501
        %v2258 = vunpack.c.h.b16 %v1501
        %v2259 = vunpack.c.l.b16 %v1502
        %v2260 = vunpack.c.h.b16 %v1502
        %v2261 = vunpack.c.l.b16 %v1503
        %v2262 = vunpack.c.h.b16 %v1503
        %v2263 = vunpack.c.l.b16 %v1504
        %v2264 = vunpack.c.h.b16 %v1504
        %v2265 = vunpack.c.l.b16 %v1505
        %v2266 = vunpack.c.h.b16 %v1505
        %v2267 = vunpack.c.l.b16 %v1506
        %v2268 = vunpack.c.h.b16 %v1506
        %v2269 = vunpack.c.l.b16 %v1507
        %v2270 = vunpack.c.h.b16 %v1507
        %v2271 = vunpack.c.l.b16 %v1508
        %v2272 = vunpack.c.h.b16 %v1508
        %v2273 = vunpack.c.l.b16 %v1509
        %v2274 = vunpack.c.h.b16 %v1509
        %v2275 = vunpack.c.l.b16 %v1510
        %v2276 = vunpack.c.h.b16 %v1510
        %v2277 = vunpack.c.l.b16 %v1511
        %v2278 = vunpack.c.h.b16 %v1511
        %v2279 = vunpack.c.l.b16 %v1512
        %v2280 = vunpack.c.h.b16 %v1512
        %v2281 = vunpack.c.l.b16 %v1513
        %v2282 = vunpack.c.h.b16 %v1513
        %v2283 = vunpack.c.l.b16 %v1514
        %v2284 = vunpack.c.h.b16 %v1514
        %v2285 = vunpack.c.l.b16 %v1515
        %v2286 = vunpack.c.h.b16 %v1515
        %v2287 = vunpack.c.l.b16 %v1516
        %v2288 = vunpack.c.h.b16 %v1516
        %v2289 = vunpack.c.l.b16 %v1517
        %v2290 = vunpack.c.h.b16 %v1517
        %v2291 = vunpack.c.l.b16 %v1518
        %v2292 = vunpack.c.h.b16 %v1518
        %v2293 = vunpack.c.l.b16 %v1519
        %v2294 = vunpack.c.h.b16 %v1519
        %v2295 = vunpack.c.l.b16 %v1520
        %v2296 = vunpack.c.h.b16 %v1520
        %v2297 = vunpack.c.l.b16 %v1521
        %v2298 = vunpack.c.h.b16 %v1521
        %v2299 = vunpack.c.l.b16 %v1522
        %v2300 = vunpack.c.h.b16 %v1522
        %v2301 = vunpack.c.l.b16 %v1523
        %v2302 = vunpack.c.h.b16 %v1523
        %v2303 = vunpack.c.l.b16 %v1524
        %v2304 = vunpack.c.h.b16 %v1524
        %v2305 = vunpack.c.l.b16 %v1525
        %v2306 = vunpack.c.h.b16 %v1525
        %v2307 = vunpack.c.l.b16 %v1526
        %v2308 = vunpack.c.h.b16 %v1526
        %v2309 = vunpack.c.l.b16 %v1527
        %v2310 = vunpack.c.h.b16 %v1527
        %v2311 = vunpack.c.l.b16 %v1528
        %v2312 = vunpack.c.h.b16 %v1528
        %v2313 = vunpack.c.l.b16 %v1529
        %v2314 = vunpack.c.h.b16 %v1529
        %v2315 = vunpack.c.l.b16 %v1530
        %v2316 = vunpack.c.h.b16 %v1530
        %v2317 = vunpack.c.l.b16 %v1531
        %v2318 = vunpack.c.h.b16 %v1531
        %v2319 = vunpack.c.l.b16 %v1532
        %v2320 = vunpack.c.h.b16 %v1532
        %v2321 = vunpack.c.l.b16 %v1533
        %v2322 = vunpack.c.h.b16 %v1533
        %v2323 = vunpack.c.l.b16 %v1534
        %v2324 = vunpack.c.h.b16 %v1534
        %v2325 = vunpack.c.l.b16 %v1535
        %v2326 = vunpack.c.h.b16 %v1535
        %v2327 = vunpack.c.l.b16 %v1536
        %v2328 = vunpack.c.h.b16 %v1536
        %v2329 = vunpack.c.l.b16 %v1537
        %v2330 = vunpack.c.h.b16 %v1537
        %v2331 = vunpack.c.l.b16 %v1538
        %v2332 = vunpack.c.h.b16 %v1538
        %v2333 = vunpack.c.l.b16 %v1539
        %v2334 = vunpack.c.h.b16 %v1539
        %v2335 = vunpack.c.l.b16 %v1540
        %v2336 = vunpack.c.h.b16 %v1540
        %v2337 = vunpack.c.l.b16 %v1541
        %v2338 = vunpack.c.h.b16 %v1541
        %v2339 = vunpack.c.l.b16 %v1542
        %v2340 = vunpack.c.h.b16 %v1542
        %v2341 = vunpack.c.l.b16 %v1543
        %v2342 = vunpack.c.h.b16 %v1543
        %v2343 = vunpack.c.l.b16 %v1544
        %v2344 = vunpack.c.h.b16 %v1544
        %v2345 = vunpack.c.l.b16 %v1545
        %v2346 = vunpack.c.h.b16 %v1545
        %v2347 = vunpack.c.l.b16 %v1546
        %v2348 = vunpack.c.h.b16 %v1546
        %v2349 = vunpack.c.l.b16 %v1547
        %v2350 = vunpack.c.h.b16 %v1547
        %v2351 = vunpack.c.l.b16 %v1548
        %v2352 = vunpack.c.h.b16 %v1548
        %v2353 = vunpack.c.l.b16 %v1549
        %v2354 = vunpack.c.h.b16 %v1549
        %v2355 = vunpack.c.l.b16 %v1550
        %v2356 = vunpack.c.h.b16 %v1550
        %v2357 = vunpack.c.l.b16 %v1551
        %v2358 = vunpack.c.h.b16 %v1551
        %v2359 = vunpack.c.l.b16 %v1552
        %v2360 = vunpack.c.h.b16 %v1552
        %v2361 = vunpack.c.l.b16 %v1553
        %v2362 = vunpack.c.h.b16 %v1553
        %v2363 = vunpack.c.l.b16 %v1554
        %v2364 = vunpack.c.h.b16 %v1554
        %v2365 = vunpack.c.l.b16 %v1555
        %v2366 = vunpack.c.h.b16 %v1555
        %v2367 = vunpack.c.l.b16 %v1556
        %v2368 = vunpack.c.h.b16 %v1556
        %v2369 = vunpack.c.l.b16 %v1557
        %v2370 = vunpack.c.h.b16 %v1557
        %v2371 = vunpack.c.l.b16 %v1558
        %v2372 = vunpack.c.h.b16 %v1558
        %v2373 = vunpack.c.l.b16 %v1559
        %v2374 = vunpack.c.h.b16 %v1559
        %v2375 = vunpack.c.l.b16 %v1560
        %v2376 = vunpack.c.h.b16 %v1560
        %v2377 = vunpack.c.l.b16 %v1561
        %v2378 = vunpack.c.h.b16 %v1561
        %v2379 = vpack.c.b16 %v2255, %v2251
        %v2380 = vpack.c.b16 %v2256, %v2252
        %v2381 = vpack.c.b16 %v2257, %v2253
        %v2382 = vpack.c.b16 %v2258, %v2254
        %v2383 = vpack.c.b16 %v2263, %v2259
        %v2384 = vpack.c.b16 %v2264, %v2260
        %v2385 = vpack.c.b16 %v2265, %v2261
        %v2386 = vpack.c.b16 %v2266, %v2262
        %v2387 = vpack.c.b16 %v2271, %v2267
        %v2388 = vpack.c.b16 %v2272, %v2268
        %v2389 = vpack.c.b16 %v2273, %v2269
        %v2390 = vpack.c.b16 %v2274, %v2270
        %v2391 = vpack.c.b16 %v2279, %v2275
        %v2392 = vpack.c.b16 %v2280, %v2276
        %v2393 = vpack.c.b16 %v2281, %v2277
        %v2394 = vpack.c.b16 %v2282, %v2278
        %v2395 = vpack.c.b16 %v2287, %v2283
        %v2396 = vpack.c.b16 %v2288, %v2284
        %v2397 = vpack.c.b16 %v2289, %v2285
        %v2398 = vpack.c.b16 %v2290, %v2286
        %v2399 = vpack.c.b16 %v2295, %v2291
        %v2400 = vpack.c.b16 %v2296, %v2292
        %v2401 = vpack.c.b16 %v2297, %v2293
        %v2402 = vpack.c.b16 %v2298, %v2294
        %v2403 = vpack.c.b16 %v2303, %v2299
        %v2404 = vpack.c.b16 %v2304, %v2300
        %v2405 = vpack.c.b16 %v2305, %v2301
        %v2406 = vpack.c.b16 %v2306, %v2302
        %v2407 = vpack.c.b16 %v2311, %v2307
        %v2408 = vpack.c.b16 %v2312, %v2308
        %v2409 = vpack.c.b16 %v2313, %v2309
        %v2410 = vpack.c.b16 %v2314, %v2310
        %v2411 = vpack.c.b16 %v2319, %v2315
        %v2412 = vpack.c.b16 %v2320, %v2316
        %v2413 = vpack.c.b16 %v2321, %v2317
        %v2414 = vpack.c.b16 %v2322, %v2318
        %v2415 = vpack.c.b16 %v2327, %v2323
        %v2416 = vpack.c.b16 %v2328, %v2324
        %v2417 = vpack.c.b16 %v2329, %v2325
        %v2418 = vpack.c.b16 %v2330, %v2326
        %v2419 = vpack.c.b16 %v2335, %v2331
        %v2420 = vpack.c.b16 %v2336, %v2332
        %v2421 = vpack.c.b16 %v2337, %v2333
        %v2422 = vpack.c.b16 %v2338, %v2334
        %v2423 = vpack.c.b16 %v2343, %v2339
        %v2424 = vpack.c.b16 %v2344, %v2340
        %v2425 = vpack.c.b16 %v2345, %v2341
        %v2426 = vpack.c.b16 %v2346, %v2342
        %v2427 = vpack.c.b16 %v2351, %v2347
        %v2428 = vpack.c.b16 %v2352, %v2348
        %v2429 = vpack.c.b16 %v2353, %v2349
        %v2430 = vpack.c.b16 %v2354, %v2350
        %v2431 = vpack.c.b16 %v2359, %v2355
        %v2432 = vpack.c.b16 %v2360, %v2356
        %v2433 = vpack.c.b16 %v2361, %v2357
        %v2434 = vpack.c.b16 %v2362, %v2358
        %v2435 = vpack.c.b16 %v2367, %v2363
        %v2436 = vpack.c.b16 %v2368, %v2364
        %v2437 = vpack.c.b16 %v2369, %v2365
        %v2438 = vpack.c.b16 %v2370, %v2366
        %v2439 = vpack.c.b16 %v2375, %v2371
        %v2440 = vpack.c.b16 %v2376, %v2372
        %v2441 = vpack.c.b16 %v2377, %v2373
        %v2442 = vpack.c.b16 %v2378, %v2374
        %2507 = vmatpush.bf16.msra.mxu0 %v2407
        %2508 = vmatpush.bf16.msra.mxu0 %v2403
        %2509 = vmatpush.bf16.msra.mxu0 %v2399
        %2510 = vmatpush.bf16.msra.mxu0 %v2395
        %2511 = vmatpush.bf16.msra.mxu0 %v2391
        %2512 = vmatpush.bf16.msra.mxu0 %v2387
        %2513 = vmatpush.bf16.msra.mxu0 %v2383
        %2514 = vmatpush.bf16.msra.mxu0 %v2379
        %2515 = vmatmul.bf16.gmra.mxu0 %v1490
        %v2516 = vpop.f32.mrf.mxu0
        %v2517 = vadd.f32 %v1994, %v2516
        %v2518 = vpop.f32.mrf.mxu0
        %v2519 = vadd.f32 %v1996, %v2518
        %2520 = vmatmul.bf16.gmra.mxu0 %v1492
        %v2521 = vpop.f32.mrf.mxu0
        %v2522 = vadd.f32 %v1999, %v2521
        %v2523 = vpop.f32.mrf.mxu0
        %v2524 = vadd.f32 %v2001, %v2523
        %2525 = vmatmul.bf16.gmra.mxu0 %v1494
        %v2526 = vpop.f32.mrf.mxu0
        %v2527 = vadd.f32 %v2004, %v2526
        %v2528 = vpop.f32.mrf.mxu0
        %v2529 = vadd.f32 %v2006, %v2528
        %2530 = vmatmul.bf16.gmra.mxu0 %v1496
        %v2531 = vpop.f32.mrf.mxu0
        %v2532 = vadd.f32 %v2009, %v2531
        %v2533 = vpop.f32.mrf.mxu0
        %v2534 = vadd.f32 %v2011, %v2533
        %2535 = vdwg.mxu0
        %2536 = vmatpush.bf16.msra.mxu0 %v2439
        %2537 = vmatpush.bf16.msra.mxu0 %v2435
        %2538 = vmatpush.bf16.msra.mxu0 %v2431
        %2539 = vmatpush.bf16.msra.mxu0 %v2427
        %2540 = vmatpush.bf16.msra.mxu0 %v2423
        %2541 = vmatpush.bf16.msra.mxu0 %v2419
        %2542 = vmatpush.bf16.msra.mxu0 %v2415
        %2543 = vmatpush.bf16.msra.mxu0 %v2411
        %2544 = vmatmul.bf16.gmra.mxu0 %v1491
        %v2545 = vpop.f32.mrf.mxu0
        %v2546 = vadd.f32 %v2517, %v2545
        %v2547 = vpop.f32.mrf.mxu0
        %v2548 = vadd.f32 %v2519, %v2547
        %2549 = vmatmul.bf16.gmra.mxu0 %v1493
        %v2550 = vpop.f32.mrf.mxu0
        %v2551 = vadd.f32 %v2522, %v2550
        %v2552 = vpop.f32.mrf.mxu0
        %v2553 = vadd.f32 %v2524, %v2552
        %2554 = vmatmul.bf16.gmra.mxu0 %v1495
        %v2555 = vpop.f32.mrf.mxu0
        %v2556 = vadd.f32 %v2527, %v2555
        %v2557 = vpop.f32.mrf.mxu0
        %v2558 = vadd.f32 %v2529, %v2557
        %2559 = vmatmul.bf16.gmra.mxu0 %v1497
        %v2560 = vpop.f32.mrf.mxu0
        %v2561 = vadd.f32 %v2532, %v2560
        %v2562 = vpop.f32.mrf.mxu0
        %v2563 = vadd.f32 %v2534, %v2562
        %2564 = vdwg.mxu0
        %2565 = vmatpush.bf16.msra.mxu0 %v2408
        %2566 = vmatpush.bf16.msra.mxu0 %v2404
        %2567 = vmatpush.bf16.msra.mxu0 %v2400
        %2568 = vmatpush.bf16.msra.mxu0 %v2396
        %2569 = vmatpush.bf16.msra.mxu0 %v2392
        %2570 = vmatpush.bf16.msra.mxu0 %v2388
        %2571 = vmatpush.bf16.msra.mxu0 %v2384
        %2572 = vmatpush.bf16.msra.mxu0 %v2380
        %2573 = vmatmul.bf16.gmra.mxu0 %v1490
        %v2574 = vpop.f32.mrf.mxu0
        %v2575 = vadd.f32 %v2052, %v2574
        %v2576 = vpop.f32.mrf.mxu0
        %v2577 = vadd.f32 %v2054, %v2576
        %2578 = vmatmul.bf16.gmra.mxu0 %v1492
        %v2579 = vpop.f32.mrf.mxu0
        %v2580 = vadd.f32 %v2057, %v2579
        %v2581 = vpop.f32.mrf.mxu0
        %v2582 = vadd.f32 %v2059, %v2581
        %2583 = vmatmul.bf16.gmra.mxu0 %v1494
        %v2584 = vpop.f32.mrf.mxu0
        %v2585 = vadd.f32 %v2062, %v2584
        %v2586 = vpop.f32.mrf.mxu0
        %v2587 = vadd.f32 %v2064, %v2586
        %2588 = vmatmul.bf16.gmra.mxu0 %v1496
        %v2589 = vpop.f32.mrf.mxu0
        %v2590 = vadd.f32 %v2067, %v2589
        %v2591 = vpop.f32.mrf.mxu0
        %v2592 = vadd.f32 %v2069, %v2591
        %2593 = vdwg.mxu0
        %2594 = vmatpush.bf16.msra.mxu0 %v2440
        %2595 = vmatpush.bf16.msra.mxu0 %v2436
        %2596 = vmatpush.bf16.msra.mxu0 %v2432
        %2597 = vmatpush.bf16.msra.mxu0 %v2428
        %2598 = vmatpush.bf16.msra.mxu0 %v2424
        %2599 = vmatpush.bf16.msra.mxu0 %v2420
        %2600 = vmatpush.bf16.msra.mxu0 %v2416
        %2601 = vmatpush.bf16.msra.mxu0 %v2412
        %2602 = vmatmul.bf16.gmra.mxu0 %v1491
        %v2603 = vpop.f32.mrf.mxu0
        %v2604 = vadd.f32 %v2575, %v2603
        %v2605 = vpop.f32.mrf.mxu0
        %v2606 = vadd.f32 %v2577, %v2605
        %2607 = vmatmul.bf16.gmra.mxu0 %v1493
        %v2608 = vpop.f32.mrf.mxu0
        %v2609 = vadd.f32 %v2580, %v2608
        %v2610 = vpop.f32.mrf.mxu0
        %v2611 = vadd.f32 %v2582, %v2610
        %2612 = vmatmul.bf16.gmra.mxu0 %v1495
        %v2613 = vpop.f32.mrf.mxu0
        %v2614 = vadd.f32 %v2585, %v2613
        %v2615 = vpop.f32.mrf.mxu0
        %v2616 = vadd.f32 %v2587, %v2615
        %2617 = vmatmul.bf16.gmra.mxu0 %v1497
        %v2618 = vpop.f32.mrf.mxu0
        %v2619 = vadd.f32 %v2590, %v2618
        %v2620 = vpop.f32.mrf.mxu0
        %v2621 = vadd.f32 %v2592, %v2620
        %2622 = vdwg.mxu0
        %2623 = vmatpush.bf16.msra.mxu0 %v2409
        %2624 = vmatpush.bf16.msra.mxu0 %v2405
        %2625 = vmatpush.bf16.msra.mxu0 %v2401
        %2626 = vmatpush.bf16.msra.mxu0 %v2397
        %2627 = vmatpush.bf16.msra.mxu0 %v2393
        %2628 = vmatpush.bf16.msra.mxu0 %v2389
        %2629 = vmatpush.bf16.msra.mxu0 %v2385
        %2630 = vmatpush.bf16.msra.mxu0 %v2381
        %2631 = vmatmul.bf16.gmra.mxu0 %v1490
        %v2632 = vpop.f32.mrf.mxu0
        %v2633 = vadd.f32 %v2110, %v2632
        %v2634 = vpop.f32.mrf.mxu0
        %v2635 = vadd.f32 %v2112, %v2634
        %2636 = vmatmul.bf16.gmra.mxu0 %v1492
        %v2637 = vpop.f32.mrf.mxu0
        %v2638 = vadd.f32 %v2115, %v2637
        %v2639 = vpop.f32.mrf.mxu0
        %v2640 = vadd.f32 %v2117, %v2639
        %2641 = vmatmul.bf16.gmra.mxu0 %v1494
        %v2642 = vpop.f32.mrf.mxu0
        %v2643 = vadd.f32 %v2120, %v2642
        %v2644 = vpop.f32.mrf.mxu0
        %v2645 = vadd.f32 %v2122, %v2644
        %2646 = vmatmul.bf16.gmra.mxu0 %v1496
        %v2647 = vpop.f32.mrf.mxu0
        %v2648 = vadd.f32 %v2125, %v2647
        %v2649 = vpop.f32.mrf.mxu0
        %v2650 = vadd.f32 %v2127, %v2649
        %2651 = vdwg.mxu0
        %2652 = vmatpush.bf16.msra.mxu0 %v2441
        %2653 = vmatpush.bf16.msra.mxu0 %v2437
        %2654 = vmatpush.bf16.msra.mxu0 %v2433
        %2655 = vmatpush.bf16.msra.mxu0 %v2429
        %2656 = vmatpush.bf16.msra.mxu0 %v2425
        %2657 = vmatpush.bf16.msra.mxu0 %v2421
        %2658 = vmatpush.bf16.msra.mxu0 %v2417
        %2659 = vmatpush.bf16.msra.mxu0 %v2413
        %2660 = vmatmul.bf16.gmra.mxu0 %v1491
        %v2661 = vpop.f32.mrf.mxu0
        %v2662 = vadd.f32 %v2633, %v2661
        %v2663 = vpop.f32.mrf.mxu0
        %v2664 = vadd.f32 %v2635, %v2663
        %2665 = vmatmul.bf16.gmra.mxu0 %v1493
        %v2666 = vpop.f32.mrf.mxu0
        %v2667 = vadd.f32 %v2638, %v2666
        %v2668 = vpop.f32.mrf.mxu0
        %v2669 = vadd.f32 %v2640, %v2668
        %2670 = vmatmul.bf16.gmra.mxu0 %v1495
        %v2671 = vpop.f32.mrf.mxu0
        %v2672 = vadd.f32 %v2643, %v2671
        %v2673 = vpop.f32.mrf.mxu0
        %v2674 = vadd.f32 %v2645, %v2673
        %2675 = vmatmul.bf16.gmra.mxu0 %v1497
        %v2676 = vpop.f32.mrf.mxu0
        %v2677 = vadd.f32 %v2648, %v2676
        %v2678 = vpop.f32.mrf.mxu0
        %v2679 = vadd.f32 %v2650, %v2678
        %2680 = vdwg.mxu0
        %2681 = vmatpush.bf16.msra.mxu0 %v2410
        %2682 = vmatpush.bf16.msra.mxu0 %v2406
        %2683 = vmatpush.bf16.msra.mxu0 %v2402
        %2684 = vmatpush.bf16.msra.mxu0 %v2398
        %2685 = vmatpush.bf16.msra.mxu0 %v2394
        %2686 = vmatpush.bf16.msra.mxu0 %v2390
        %2687 = vmatpush.bf16.msra.mxu0 %v2386
        %2688 = vmatpush.bf16.msra.mxu0 %v2382
        %2689 = vmatmul.bf16.gmra.mxu0 %v1490
        %v2690 = vpop.f32.mrf.mxu0
        %v2691 = vadd.f32 %v2168, %v2690
        %v2692 = vpop.f32.mrf.mxu0
        %v2693 = vadd.f32 %v2170, %v2692
        %2694 = vmatmul.bf16.gmra.mxu0 %v1492
        %v2695 = vpop.f32.mrf.mxu0
        %v2696 = vadd.f32 %v2173, %v2695
        %v2697 = vpop.f32.mrf.mxu0
        %v2698 = vadd.f32 %v2175, %v2697
        %2699 = vmatmul.bf16.gmra.mxu0 %v1494
        %v2700 = vpop.f32.mrf.mxu0
        %v2701 = vadd.f32 %v2178, %v2700
        %v2702 = vpop.f32.mrf.mxu0
        %v2703 = vadd.f32 %v2180, %v2702
        %2704 = vmatmul.bf16.gmra.mxu0 %v1496
        %v2705 = vpop.f32.mrf.mxu0
        %v2706 = vadd.f32 %v2183, %v2705
        %v2707 = vpop.f32.mrf.mxu0
        %v2708 = vadd.f32 %v2185, %v2707
        %2709 = vdwg.mxu0
        %2710 = vmatpush.bf16.msra.mxu0 %v2442
        %2711 = vmatpush.bf16.msra.mxu0 %v2438
        %2712 = vmatpush.bf16.msra.mxu0 %v2434
        %2713 = vmatpush.bf16.msra.mxu0 %v2430
        %2714 = vmatpush.bf16.msra.mxu0 %v2426
        %2715 = vmatpush.bf16.msra.mxu0 %v2422
        %2716 = vmatpush.bf16.msra.mxu0 %v2418
        %2717 = vmatpush.bf16.msra.mxu0 %v2414
        %2718 = vmatmul.bf16.gmra.mxu0 %v1491
        %v2719 = vpop.f32.mrf.mxu0
        %v2720 = vadd.f32 %v2691, %v2719
        %v2721 = vpop.f32.mrf.mxu0
        %v2722 = vadd.f32 %v2693, %v2721
        %2723 = vmatmul.bf16.gmra.mxu0 %v1493
        %v2724 = vpop.f32.mrf.mxu0
        %v2725 = vadd.f32 %v2696, %v2724
        %v2726 = vpop.f32.mrf.mxu0
        %v2727 = vadd.f32 %v2698, %v2726
        %2728 = vmatmul.bf16.gmra.mxu0 %v1495
        %v2729 = vpop.f32.mrf.mxu0
        %v2730 = vadd.f32 %v2701, %v2729
        %v2731 = vpop.f32.mrf.mxu0
        %v2732 = vadd.f32 %v2703, %v2731
        %2733 = vmatmul.bf16.gmra.mxu0 %v1497
        %v2734 = vpop.f32.mrf.mxu0
        %v2735 = vadd.f32 %v2706, %v2734
        %v2736 = vpop.f32.mrf.mxu0
        %v2737 = vadd.f32 %v2708, %v2736
        %2738 = vdwg.mxu0
        %v2739 = vpack.c.bf16 %v1484, %v1482
        %v2740 = vpack.c.bf16 %v1485, %v1483
        %s2741 = scalar_lea.vmem [#allocation8], 1024
        %v2742 = vld [vmem:[%s2741] sm:$0xff]
        %v2743 = vld [vmem:[%s2741 + $0x8] sm:$0xff]
        %v2744 = vld [vmem:[%s2741 + $0x10] sm:$0xff]
        %v2745 = vld [vmem:[%s2741 + $0x18] sm:$0xff]
        %v2746 = vld [vmem:[%s2741 + $0x20] sm:$0xff]
        %v2747 = vld [vmem:[%s2741 + $0x28] sm:$0xff]
        %v2748 = vld [vmem:[%s2741 + $0x30] sm:$0xff]
        %v2749 = vld [vmem:[%s2741 + $0x38] sm:$0xff]
        %v2750 = vld [vmem:[%s2741 + $0x40] sm:$0xff]
        %v2751 = vld [vmem:[%s2741 + $0x48] sm:$0xff]
        %v2752 = vld [vmem:[%s2741 + $0x50] sm:$0xff]
        %v2753 = vld [vmem:[%s2741 + $0x58] sm:$0xff]
        %v2754 = vld [vmem:[%s2741 + $0x60] sm:$0xff]
        %v2755 = vld [vmem:[%s2741 + $0x68] sm:$0xff]
        %v2756 = vld [vmem:[%s2741 + $0x70] sm:$0xff]
        %v2757 = vld [vmem:[%s2741 + $0x78] sm:$0xff]
        %v2758 = vld [vmem:[%s2741 + $0x80] sm:$0xff]
        %v2759 = vld [vmem:[%s2741 + $0x88] sm:$0xff]
        %v2760 = vld [vmem:[%s2741 + $0x90] sm:$0xff]
        %v2761 = vld [vmem:[%s2741 + $0x98] sm:$0xff]
        %v2762 = vld [vmem:[%s2741 + $0xa0] sm:$0xff]
        %v2763 = vld [vmem:[%s2741 + $0xa8] sm:$0xff]
        %v2764 = vld [vmem:[%s2741 + $0xb0] sm:$0xff]
        %v2765 = vld [vmem:[%s2741 + $0xb8] sm:$0xff]
        %v2766 = vld [vmem:[%s2741 + $0xc0] sm:$0xff]
        %v2767 = vld [vmem:[%s2741 + $0xc8] sm:$0xff]
        %v2768 = vld [vmem:[%s2741 + $0xd0] sm:$0xff]
        %v2769 = vld [vmem:[%s2741 + $0xd8] sm:$0xff]
        %v2770 = vld [vmem:[%s2741 + $0xe0] sm:$0xff]
        %v2771 = vld [vmem:[%s2741 + $0xe8] sm:$0xff]
        %v2772 = vld [vmem:[%s2741 + $0xf0] sm:$0xff]
        %v2773 = vld [vmem:[%s2741 + $0xf8] sm:$0xff]
        %v2774 = vld [vmem:[%s2741 + $0x100] sm:$0xff]
        %v2775 = vld [vmem:[%s2741 + $0x108] sm:$0xff]
        %v2776 = vld [vmem:[%s2741 + $0x110] sm:$0xff]
        %v2777 = vld [vmem:[%s2741 + $0x118] sm:$0xff]
        %v2778 = vld [vmem:[%s2741 + $0x120] sm:$0xff]
        %v2779 = vld [vmem:[%s2741 + $0x128] sm:$0xff]
        %v2780 = vld [vmem:[%s2741 + $0x130] sm:$0xff]
        %v2781 = vld [vmem:[%s2741 + $0x138] sm:$0xff]
        %v2782 = vld [vmem:[%s2741 + $0x140] sm:$0xff]
        %v2783 = vld [vmem:[%s2741 + $0x148] sm:$0xff]
        %v2784 = vld [vmem:[%s2741 + $0x150] sm:$0xff]
        %v2785 = vld [vmem:[%s2741 + $0x158] sm:$0xff]
        %v2786 = vld [vmem:[%s2741 + $0x160] sm:$0xff]
        %v2787 = vld [vmem:[%s2741 + $0x168] sm:$0xff]
        %v2788 = vld [vmem:[%s2741 + $0x170] sm:$0xff]
        %v2789 = vld [vmem:[%s2741 + $0x178] sm:$0xff]
        %v2790 = vld [vmem:[%s2741 + $0x180] sm:$0xff]
        %v2791 = vld [vmem:[%s2741 + $0x188] sm:$0xff]
        %v2792 = vld [vmem:[%s2741 + $0x190] sm:$0xff]
        %v2793 = vld [vmem:[%s2741 + $0x198] sm:$0xff]
        %v2794 = vld [vmem:[%s2741 + $0x1a0] sm:$0xff]
        %v2795 = vld [vmem:[%s2741 + $0x1a8] sm:$0xff]
        %v2796 = vld [vmem:[%s2741 + $0x1b0] sm:$0xff]
        %v2797 = vld [vmem:[%s2741 + $0x1b8] sm:$0xff]
        %v2798 = vld [vmem:[%s2741 + $0x1c0] sm:$0xff]
        %v2799 = vld [vmem:[%s2741 + $0x1c8] sm:$0xff]
        %v2800 = vld [vmem:[%s2741 + $0x1d0] sm:$0xff]
        %v2801 = vld [vmem:[%s2741 + $0x1d8] sm:$0xff]
        %v2802 = vld [vmem:[%s2741 + $0x1e0] sm:$0xff]
        %v2803 = vld [vmem:[%s2741 + $0x1e8] sm:$0xff]
        %v2804 = vld [vmem:[%s2741 + $0x1f0] sm:$0xff]
        %v2805 = vld [vmem:[%s2741 + $0x1f8] sm:$0xff]
        %v2870 = vunpack.c.l.b16 %v2742
        %v2871 = vunpack.c.h.b16 %v2742
        %v2872 = vunpack.c.l.b16 %v2743
        %v2873 = vunpack.c.h.b16 %v2743
        %v2874 = vunpack.c.l.b16 %v2744
        %v2875 = vunpack.c.h.b16 %v2744
        %v2876 = vunpack.c.l.b16 %v2745
        %v2877 = vunpack.c.h.b16 %v2745
        %v2878 = vunpack.c.l.b16 %v2746
        %v2879 = vunpack.c.h.b16 %v2746
        %v2880 = vunpack.c.l.b16 %v2747
        %v2881 = vunpack.c.h.b16 %v2747
        %v2882 = vunpack.c.l.b16 %v2748
        %v2883 = vunpack.c.h.b16 %v2748
        %v2884 = vunpack.c.l.b16 %v2749
        %v2885 = vunpack.c.h.b16 %v2749
        %v2886 = vunpack.c.l.b16 %v2750
        %v2887 = vunpack.c.h.b16 %v2750
        %v2888 = vunpack.c.l.b16 %v2751
        %v2889 = vunpack.c.h.b16 %v2751
        %v2890 = vunpack.c.l.b16 %v2752
        %v2891 = vunpack.c.h.b16 %v2752
        %v2892 = vunpack.c.l.b16 %v2753
        %v2893 = vunpack.c.h.b16 %v2753
        %v2894 = vunpack.c.l.b16 %v2754
        %v2895 = vunpack.c.h.b16 %v2754
        %v2896 = vunpack.c.l.b16 %v2755
        %v2897 = vunpack.c.h.b16 %v2755
        %v2898 = vunpack.c.l.b16 %v2756
        %v2899 = vunpack.c.h.b16 %v2756
        %v2900 = vunpack.c.l.b16 %v2757
        %v2901 = vunpack.c.h.b16 %v2757
        %v2902 = vunpack.c.l.b16 %v2758
        %v2903 = vunpack.c.h.b16 %v2758
        %v2904 = vunpack.c.l.b16 %v2759
        %v2905 = vunpack.c.h.b16 %v2759
        %v2906 = vunpack.c.l.b16 %v2760
        %v2907 = vunpack.c.h.b16 %v2760
        %v2908 = vunpack.c.l.b16 %v2761
        %v2909 = vunpack.c.h.b16 %v2761
        %v2910 = vunpack.c.l.b16 %v2762
        %v2911 = vunpack.c.h.b16 %v2762
        %v2912 = vunpack.c.l.b16 %v2763
        %v2913 = vunpack.c.h.b16 %v2763
        %v2914 = vunpack.c.l.b16 %v2764
        %v2915 = vunpack.c.h.b16 %v2764
        %v2916 = vunpack.c.l.b16 %v2765
        %v2917 = vunpack.c.h.b16 %v2765
        %v2918 = vunpack.c.l.b16 %v2766
        %v2919 = vunpack.c.h.b16 %v2766
        %v2920 = vunpack.c.l.b16 %v2767
        %v2921 = vunpack.c.h.b16 %v2767
        %v2922 = vunpack.c.l.b16 %v2768
        %v2923 = vunpack.c.h.b16 %v2768
        %v2924 = vunpack.c.l.b16 %v2769
        %v2925 = vunpack.c.h.b16 %v2769
        %v2926 = vunpack.c.l.b16 %v2770
        %v2927 = vunpack.c.h.b16 %v2770
        %v2928 = vunpack.c.l.b16 %v2771
        %v2929 = vunpack.c.h.b16 %v2771
        %v2930 = vunpack.c.l.b16 %v2772
        %v2931 = vunpack.c.h.b16 %v2772
        %v2932 = vunpack.c.l.b16 %v2773
        %v2933 = vunpack.c.h.b16 %v2773
        %v2934 = vunpack.c.l.b16 %v2774
        %v2935 = vunpack.c.h.b16 %v2774
        %v2936 = vunpack.c.l.b16 %v2775
        %v2937 = vunpack.c.h.b16 %v2775
        %v2938 = vunpack.c.l.b16 %v2776
        %v2939 = vunpack.c.h.b16 %v2776
        %v2940 = vunpack.c.l.b16 %v2777
        %v2941 = vunpack.c.h.b16 %v2777
        %v2942 = vunpack.c.l.b16 %v2778
        %v2943 = vunpack.c.h.b16 %v2778
        %v2944 = vunpack.c.l.b16 %v2779
        %v2945 = vunpack.c.h.b16 %v2779
        %v2946 = vunpack.c.l.b16 %v2780
        %v2947 = vunpack.c.h.b16 %v2780
        %v2948 = vunpack.c.l.b16 %v2781
        %v2949 = vunpack.c.h.b16 %v2781
        %v2950 = vunpack.c.l.b16 %v2782
        %v2951 = vunpack.c.h.b16 %v2782
        %v2952 = vunpack.c.l.b16 %v2783
        %v2953 = vunpack.c.h.b16 %v2783
        %v2954 = vunpack.c.l.b16 %v2784
        %v2955 = vunpack.c.h.b16 %v2784
        %v2956 = vunpack.c.l.b16 %v2785
        %v2957 = vunpack.c.h.b16 %v2785
        %v2958 = vunpack.c.l.b16 %v2786
        %v2959 = vunpack.c.h.b16 %v2786
        %v2960 = vunpack.c.l.b16 %v2787
        %v2961 = vunpack.c.h.b16 %v2787
        %v2962 = vunpack.c.l.b16 %v2788
        %v2963 = vunpack.c.h.b16 %v2788
        %v2964 = vunpack.c.l.b16 %v2789
        %v2965 = vunpack.c.h.b16 %v2789
        %v2966 = vunpack.c.l.b16 %v2790
        %v2967 = vunpack.c.h.b16 %v2790
        %v2968 = vunpack.c.l.b16 %v2791
        %v2969 = vunpack.c.h.b16 %v2791
        %v2970 = vunpack.c.l.b16 %v2792
        %v2971 = vunpack.c.h.b16 %v2792
        %v2972 = vunpack.c.l.b16 %v2793
        %v2973 = vunpack.c.h.b16 %v2793
        %v2974 = vunpack.c.l.b16 %v2794
        %v2975 = vunpack.c.h.b16 %v2794
        %v2976 = vunpack.c.l.b16 %v2795
        %v2977 = vunpack.c.h.b16 %v2795
        %v2978 = vunpack.c.l.b16 %v2796
        %v2979 = vunpack.c.h.b16 %v2796
        %v2980 = vunpack.c.l.b16 %v2797
        %v2981 = vunpack.c.h.b16 %v2797
        %v2982 = vunpack.c.l.b16 %v2798
        %v2983 = vunpack.c.h.b16 %v2798
        %v2984 = vunpack.c.l.b16 %v2799
        %v2985 = vunpack.c.h.b16 %v2799
        %v2986 = vunpack.c.l.b16 %v2800
        %v2987 = vunpack.c.h.b16 %v2800
        %v2988 = vunpack.c.l.b16 %v2801
        %v2989 = vunpack.c.h.b16 %v2801
        %v2990 = vunpack.c.l.b16 %v2802
        %v2991 = vunpack.c.h.b16 %v2802
        %v2992 = vunpack.c.l.b16 %v2803
        %v2993 = vunpack.c.h.b16 %v2803
        %v2994 = vunpack.c.l.b16 %v2804
        %v2995 = vunpack.c.h.b16 %v2804
        %v2996 = vunpack.c.l.b16 %v2805
        %v2997 = vunpack.c.h.b16 %v2805
        %v2998 = vpack.c.b16 %v2874, %v2870
        %v2999 = vpack.c.b16 %v2875, %v2871
        %v3000 = vpack.c.b16 %v2876, %v2872
        %v3001 = vpack.c.b16 %v2877, %v2873
        %v3002 = vpack.c.b16 %v2882, %v2878
        %v3003 = vpack.c.b16 %v2883, %v2879
        %v3004 = vpack.c.b16 %v2884, %v2880
        %v3005 = vpack.c.b16 %v2885, %v2881
        %v3006 = vpack.c.b16 %v2890, %v2886
        %v3007 = vpack.c.b16 %v2891, %v2887
        %v3008 = vpack.c.b16 %v2892, %v2888
        %v3009 = vpack.c.b16 %v2893, %v2889
        %v3010 = vpack.c.b16 %v2898, %v2894
        %v3011 = vpack.c.b16 %v2899, %v2895
        %v3012 = vpack.c.b16 %v2900, %v2896
        %v3013 = vpack.c.b16 %v2901, %v2897
        %v3014 = vpack.c.b16 %v2906, %v2902
        %v3015 = vpack.c.b16 %v2907, %v2903
        %v3016 = vpack.c.b16 %v2908, %v2904
        %v3017 = vpack.c.b16 %v2909, %v2905
        %v3018 = vpack.c.b16 %v2914, %v2910
        %v3019 = vpack.c.b16 %v2915, %v2911
        %v3020 = vpack.c.b16 %v2916, %v2912
        %v3021 = vpack.c.b16 %v2917, %v2913
        %v3022 = vpack.c.b16 %v2922, %v2918
        %v3023 = vpack.c.b16 %v2923, %v2919
        %v3024 = vpack.c.b16 %v2924, %v2920
        %v3025 = vpack.c.b16 %v2925, %v2921
        %v3026 = vpack.c.b16 %v2930, %v2926
        %v3027 = vpack.c.b16 %v2931, %v2927
        %v3028 = vpack.c.b16 %v2932, %v2928
        %v3029 = vpack.c.b16 %v2933, %v2929
        %v3030 = vpack.c.b16 %v2938, %v2934
        %v3031 = vpack.c.b16 %v2939, %v2935
        %v3032 = vpack.c.b16 %v2940, %v2936
        %v3033 = vpack.c.b16 %v2941, %v2937
        %v3034 = vpack.c.b16 %v2946, %v2942
        %v3035 = vpack.c.b16 %v2947, %v2943
        %v3036 = vpack.c.b16 %v2948, %v2944
        %v3037 = vpack.c.b16 %v2949, %v2945
        %v3038 = vpack.c.b16 %v2954, %v2950
        %v3039 = vpack.c.b16 %v2955, %v2951
        %v3040 = vpack.c.b16 %v2956, %v2952
        %v3041 = vpack.c.b16 %v2957, %v2953
        %v3042 = vpack.c.b16 %v2962, %v2958
        %v3043 = vpack.c.b16 %v2963, %v2959
        %v3044 = vpack.c.b16 %v2964, %v2960
        %v3045 = vpack.c.b16 %v2965, %v2961
        %v3046 = vpack.c.b16 %v2970, %v2966
        %v3047 = vpack.c.b16 %v2971, %v2967
        %v3048 = vpack.c.b16 %v2972, %v2968
        %v3049 = vpack.c.b16 %v2973, %v2969
        %v3050 = vpack.c.b16 %v2978, %v2974
        %v3051 = vpack.c.b16 %v2979, %v2975
        %v3052 = vpack.c.b16 %v2980, %v2976
        %v3053 = vpack.c.b16 %v2981, %v2977
        %v3054 = vpack.c.b16 %v2986, %v2982
        %v3055 = vpack.c.b16 %v2987, %v2983
        %v3056 = vpack.c.b16 %v2988, %v2984
        %v3057 = vpack.c.b16 %v2989, %v2985
        %v3058 = vpack.c.b16 %v2994, %v2990
        %v3059 = vpack.c.b16 %v2995, %v2991
        %v3060 = vpack.c.b16 %v2996, %v2992
        %v3061 = vpack.c.b16 %v2997, %v2993
        %3126 = vmatpush.bf16.msra.mxu0 %v3026
        %3127 = vmatpush.bf16.msra.mxu0 %v3022
        %3128 = vmatpush.bf16.msra.mxu0 %v3018
        %3129 = vmatpush.bf16.msra.mxu0 %v3014
        %3130 = vmatpush.bf16.msra.mxu0 %v3010
        %3131 = vmatpush.bf16.msra.mxu0 %v3006
        %3132 = vmatpush.bf16.msra.mxu0 %v3002
        %3133 = vmatpush.bf16.msra.mxu0 %v2998
        %3134 = vmatmul.bf16.gmra.mxu0 %v1492
        %v3135 = vpop.f32.mrf.mxu0
        %v3136 = vadd.f32 0.0, %v3135
        %v3137 = vpop.f32.mrf.mxu0
        %v3138 = vadd.f32 0.0, %v3137
        %3139 = vmatmul.bf16.gmra.mxu0 %v1494
        %v3140 = vpop.f32.mrf.mxu0
        %v3141 = vadd.f32 0.0, %v3140
        %v3142 = vpop.f32.mrf.mxu0
        %v3143 = vadd.f32 0.0, %v3142
        %3144 = vmatmul.bf16.gmra.mxu0 %v1496
        %v3145 = vpop.f32.mrf.mxu0
        %v3146 = vadd.f32 0.0, %v3145
        %v3147 = vpop.f32.mrf.mxu0
        %v3148 = vadd.f32 0.0, %v3147
        %3149 = vmatmul.bf16.gmra.mxu0 %v2739
        %v3150 = vpop.f32.mrf.mxu0
        %v3151 = vadd.f32 0.0, %v3150
        %v3152 = vpop.f32.mrf.mxu0
        %v3153 = vadd.f32 0.0, %v3152
        %3154 = vdwg.mxu0
        %3155 = vmatpush.bf16.msra.mxu0 %v3058
        %3156 = vmatpush.bf16.msra.mxu0 %v3054
        %3157 = vmatpush.bf16.msra.mxu0 %v3050
        %3158 = vmatpush.bf16.msra.mxu0 %v3046
        %3159 = vmatpush.bf16.msra.mxu0 %v3042
        %3160 = vmatpush.bf16.msra.mxu0 %v3038
        %3161 = vmatpush.bf16.msra.mxu0 %v3034
        %3162 = vmatpush.bf16.msra.mxu0 %v3030
        %3163 = vmatmul.bf16.gmra.mxu0 %v1493
        %v3164 = vpop.f32.mrf.mxu0
        %v3165 = vadd.f32 %v3136, %v3164
        %v3166 = vpop.f32.mrf.mxu0
        %v3167 = vadd.f32 %v3138, %v3166
        %3168 = vmatmul.bf16.gmra.mxu0 %v1495
        %v3169 = vpop.f32.mrf.mxu0
        %v3170 = vadd.f32 %v3141, %v3169
        %v3171 = vpop.f32.mrf.mxu0
        %v3172 = vadd.f32 %v3143, %v3171
        %3173 = vmatmul.bf16.gmra.mxu0 %v1497
        %v3174 = vpop.f32.mrf.mxu0
        %v3175 = vadd.f32 %v3146, %v3174
        %v3176 = vpop.f32.mrf.mxu0
        %v3177 = vadd.f32 %v3148, %v3176
        %3178 = vmatmul.bf16.gmra.mxu0 %v2740
        %v3179 = vpop.f32.mrf.mxu0
        %v3180 = vadd.f32 %v3151, %v3179
        %v3181 = vpop.f32.mrf.mxu0
        %v3182 = vadd.f32 %v3153, %v3181
        %3183 = vdwg.mxu0
        %3184 = vmatpush.bf16.msra.mxu0 %v3027
        %3185 = vmatpush.bf16.msra.mxu0 %v3023
        %3186 = vmatpush.bf16.msra.mxu0 %v3019
        %3187 = vmatpush.bf16.msra.mxu0 %v3015
        %3188 = vmatpush.bf16.msra.mxu0 %v3011
        %3189 = vmatpush.bf16.msra.mxu0 %v3007
        %3190 = vmatpush.bf16.msra.mxu0 %v3003
        %3191 = vmatpush.bf16.msra.mxu0 %v2999
        %3192 = vmatmul.bf16.gmra.mxu0 %v1492
        %v3193 = vpop.f32.mrf.mxu0
        %v3194 = vadd.f32 0.0, %v3193
        %v3195 = vpop.f32.mrf.mxu0
        %v3196 = vadd.f32 0.0, %v3195
        %3197 = vmatmul.bf16.gmra.mxu0 %v1494
        %v3198 = vpop.f32.mrf.mxu0
        %v3199 = vadd.f32 0.0, %v3198
        %v3200 = vpop.f32.mrf.mxu0
        %v3201 = vadd.f32 0.0, %v3200
        %3202 = vmatmul.bf16.gmra.mxu0 %v1496
        %v3203 = vpop.f32.mrf.mxu0
        %v3204 = vadd.f32 0.0, %v3203
        %v3205 = vpop.f32.mrf.mxu0
        %v3206 = vadd.f32 0.0, %v3205
        %3207 = vmatmul.bf16.gmra.mxu0 %v2739
        %v3208 = vpop.f32.mrf.mxu0
        %v3209 = vadd.f32 0.0, %v3208
        %v3210 = vpop.f32.mrf.mxu0
        %v3211 = vadd.f32 0.0, %v3210
        %3212 = vdwg.mxu0
        %3213 = vmatpush.bf16.msra.mxu0 %v3059
        %3214 = vmatpush.bf16.msra.mxu0 %v3055
        %3215 = vmatpush.bf16.msra.mxu0 %v3051
        %3216 = vmatpush.bf16.msra.mxu0 %v3047
        %3217 = vmatpush.bf16.msra.mxu0 %v3043
        %3218 = vmatpush.bf16.msra.mxu0 %v3039
        %3219 = vmatpush.bf16.msra.mxu0 %v3035
        %3220 = vmatpush.bf16.msra.mxu0 %v3031
        %3221 = vmatmul.bf16.gmra.mxu0 %v1493
        %v3222 = vpop.f32.mrf.mxu0
        %v3223 = vadd.f32 %v3194, %v3222
        %v3224 = vpop.f32.mrf.mxu0
        %v3225 = vadd.f32 %v3196, %v3224
        %3226 = vmatmul.bf16.gmra.mxu0 %v1495
        %v3227 = vpop.f32.mrf.mxu0
        %v3228 = vadd.f32 %v3199, %v3227
        %v3229 = vpop.f32.mrf.mxu0
        %v3230 = vadd.f32 %v3201, %v3229
        %3231 = vmatmul.bf16.gmra.mxu0 %v1497
        %v3232 = vpop.f32.mrf.mxu0
        %v3233 = vadd.f32 %v3204, %v3232
        %v3234 = vpop.f32.mrf.mxu0
        %v3235 = vadd.f32 %v3206, %v3234
        %3236 = vmatmul.bf16.gmra.mxu0 %v2740
        %v3237 = vpop.f32.mrf.mxu0
        %v3238 = vadd.f32 %v3209, %v3237
        %v3239 = vpop.f32.mrf.mxu0
        %v3240 = vadd.f32 %v3211, %v3239
        %3241 = vdwg.mxu0
        %3242 = vmatpush.bf16.msra.mxu0 %v3028
        %3243 = vmatpush.bf16.msra.mxu0 %v3024
        %3244 = vmatpush.bf16.msra.mxu0 %v3020
        %3245 = vmatpush.bf16.msra.mxu0 %v3016
        %3246 = vmatpush.bf16.msra.mxu0 %v3012
        %3247 = vmatpush.bf16.msra.mxu0 %v3008
        %3248 = vmatpush.bf16.msra.mxu0 %v3004
        %3249 = vmatpush.bf16.msra.mxu0 %v3000
        %3250 = vmatmul.bf16.gmra.mxu0 %v1492
        %v3251 = vpop.f32.mrf.mxu0
        %v3252 = vadd.f32 0.0, %v3251
        %v3253 = vpop.f32.mrf.mxu0
        %v3254 = vadd.f32 0.0, %v3253
        %3255 = vmatmul.bf16.gmra.mxu0 %v1494
        %v3256 = vpop.f32.mrf.mxu0
        %v3257 = vadd.f32 0.0, %v3256
        %v3258 = vpop.f32.mrf.mxu0
        %v3259 = vadd.f32 0.0, %v3258
        %3260 = vmatmul.bf16.gmra.mxu0 %v1496
        %v3261 = vpop.f32.mrf.mxu0
        %v3262 = vadd.f32 0.0, %v3261
        %v3263 = vpop.f32.mrf.mxu0
        %v3264 = vadd.f32 0.0, %v3263
        %3265 = vmatmul.bf16.gmra.mxu0 %v2739
        %v3266 = vpop.f32.mrf.mxu0
        %v3267 = vadd.f32 0.0, %v3266
        %v3268 = vpop.f32.mrf.mxu0
        %v3269 = vadd.f32 0.0, %v3268
        %3270 = vdwg.mxu0
        %3271 = vmatpush.bf16.msra.mxu0 %v3060
        %3272 = vmatpush.bf16.msra.mxu0 %v3056
        %3273 = vmatpush.bf16.msra.mxu0 %v3052
        %3274 = vmatpush.bf16.msra.mxu0 %v3048
        %3275 = vmatpush.bf16.msra.mxu0 %v3044
        %3276 = vmatpush.bf16.msra.mxu0 %v3040
        %3277 = vmatpush.bf16.msra.mxu0 %v3036
        %3278 = vmatpush.bf16.msra.mxu0 %v3032
        %3279 = vmatmul.bf16.gmra.mxu0 %v1493
        %v3280 = vpop.f32.mrf.mxu0
        %v3281 = vadd.f32 %v3252, %v3280
        %v3282 = vpop.f32.mrf.mxu0
        %v3283 = vadd.f32 %v3254, %v3282
        %3284 = vmatmul.bf16.gmra.mxu0 %v1495
        %v3285 = vpop.f32.mrf.mxu0
        %v3286 = vadd.f32 %v3257, %v3285
        %v3287 = vpop.f32.mrf.mxu0
        %v3288 = vadd.f32 %v3259, %v3287
        %3289 = vmatmul.bf16.gmra.mxu0 %v1497
        %v3290 = vpop.f32.mrf.mxu0
        %v3291 = vadd.f32 %v3262, %v3290
        %v3292 = vpop.f32.mrf.mxu0
        %v3293 = vadd.f32 %v3264, %v3292
        %3294 = vmatmul.bf16.gmra.mxu0 %v2740
        %v3295 = vpop.f32.mrf.mxu0
        %v3296 = vadd.f32 %v3267, %v3295
        %v3297 = vpop.f32.mrf.mxu0
        %v3298 = vadd.f32 %v3269, %v3297
        %3299 = vdwg.mxu0
        %3300 = vmatpush.bf16.msra.mxu0 %v3029
        %3301 = vmatpush.bf16.msra.mxu0 %v3025
        %3302 = vmatpush.bf16.msra.mxu0 %v3021
        %3303 = vmatpush.bf16.msra.mxu0 %v3017
        %3304 = vmatpush.bf16.msra.mxu0 %v3013
        %3305 = vmatpush.bf16.msra.mxu0 %v3009
        %3306 = vmatpush.bf16.msra.mxu0 %v3005
        %3307 = vmatpush.bf16.msra.mxu0 %v3001
        %3308 = vmatmul.bf16.gmra.mxu0 %v1492
        %v3309 = vpop.f32.mrf.mxu0
        %v3310 = vadd.f32 0.0, %v3309
        %v3311 = vpop.f32.mrf.mxu0
        %v3312 = vadd.f32 0.0, %v3311
        %3313 = vmatmul.bf16.gmra.mxu0 %v1494
        %v3314 = vpop.f32.mrf.mxu0
        %v3315 = vadd.f32 0.0, %v3314
        %v3316 = vpop.f32.mrf.mxu0
        %v3317 = vadd.f32 0.0, %v3316
        %3318 = vmatmul.bf16.gmra.mxu0 %v1496
        %v3319 = vpop.f32.mrf.mxu0
        %v3320 = vadd.f32 0.0, %v3319
        %v3321 = vpop.f32.mrf.mxu0
        %v3322 = vadd.f32 0.0, %v3321
        %3323 = vmatmul.bf16.gmra.mxu0 %v2739
        %v3324 = vpop.f32.mrf.mxu0
        %v3325 = vadd.f32 0.0, %v3324
        %v3326 = vpop.f32.mrf.mxu0
        %v3327 = vadd.f32 0.0, %v3326
        %3328 = vdwg.mxu0
        %3329 = vmatpush.bf16.msra.mxu0 %v3061
        %3330 = vmatpush.bf16.msra.mxu0 %v3057
        %3331 = vmatpush.bf16.msra.mxu0 %v3053
        %3332 = vmatpush.bf16.msra.mxu0 %v3049
        %3333 = vmatpush.bf16.msra.mxu0 %v3045
        %3334 = vmatpush.bf16.msra.mxu0 %v3041
        %3335 = vmatpush.bf16.msra.mxu0 %v3037
        %3336 = vmatpush.bf16.msra.mxu0 %v3033
        %3337 = vmatmul.bf16.gmra.mxu0 %v1493
        %v3338 = vpop.f32.mrf.mxu0
        %v3339 = vadd.f32 %v3310, %v3338
        %v3340 = vpop.f32.mrf.mxu0
        %v3341 = vadd.f32 %v3312, %v3340
        %3342 = vmatmul.bf16.gmra.mxu0 %v1495
        %v3343 = vpop.f32.mrf.mxu0
        %v3344 = vadd.f32 %v3315, %v3343
        %v3345 = vpop.f32.mrf.mxu0
        %v3346 = vadd.f32 %v3317, %v3345
        %3347 = vmatmul.bf16.gmra.mxu0 %v1497
        %v3348 = vpop.f32.mrf.mxu0
        %v3349 = vadd.f32 %v3320, %v3348
        %v3350 = vpop.f32.mrf.mxu0
        %v3351 = vadd.f32 %v3322, %v3350
        %3352 = vmatmul.bf16.gmra.mxu0 %v2740
        %v3353 = vpop.f32.mrf.mxu0
        %v3354 = vadd.f32 %v3325, %v3353
        %v3355 = vpop.f32.mrf.mxu0
        %v3356 = vadd.f32 %v3327, %v3355
        %3357 = vdwg.mxu0
        %v3358 = vadd.f32 %v2546, %v3165
        %v3359 = vadd.f32 %v2604, %v3223
        %v3360 = vadd.f32 %v2662, %v3281
        %v3361 = vadd.f32 %v2720, %v3339
        %v3362 = vadd.f32 %v2548, %v3167
        %v3363 = vadd.f32 %v2606, %v3225
        %v3364 = vadd.f32 %v2664, %v3283
        %v3365 = vadd.f32 %v2722, %v3341
        %v3366 = vadd.f32 %v2551, %v3170
        %v3367 = vadd.f32 %v2609, %v3228
        %v3368 = vadd.f32 %v2667, %v3286
        %v3369 = vadd.f32 %v2725, %v3344
        %v3370 = vadd.f32 %v2553, %v3172
        %v3371 = vadd.f32 %v2611, %v3230
        %v3372 = vadd.f32 %v2669, %v3288
        %v3373 = vadd.f32 %v2727, %v3346
        %v3374 = vadd.f32 %v2556, %v3175
        %v3375 = vadd.f32 %v2614, %v3233
        %v3376 = vadd.f32 %v2672, %v3291
        %v3377 = vadd.f32 %v2730, %v3349
        %v3378 = vadd.f32 %v2558, %v3177
        %v3379 = vadd.f32 %v2616, %v3235
        %v3380 = vadd.f32 %v2674, %v3293
        %v3381 = vadd.f32 %v2732, %v3351
        %v3382 = vadd.f32 %v2561, %v3180
        %v3383 = vadd.f32 %v2619, %v3238
        %v3384 = vadd.f32 %v2677, %v3296
        %v3385 = vadd.f32 %v2735, %v3354
        %v3386 = vadd.f32 %v2563, %v3182
        %v3387 = vadd.f32 %v2621, %v3240
        %v3388 = vadd.f32 %v2679, %v3298
        %v3389 = vadd.f32 %v2737, %v3356
        %v3390 = vpack.c.bf16 %v1486, %v1484
        %v3391 = vpack.c.bf16 %v1487, %v1485
        %s3392 = scalar_lea.vmem [#allocation8], 1536
        %v3393 = vld [vmem:[%s3392] sm:$0xff]
        %v3394 = vld [vmem:[%s3392 + $0x8] sm:$0xff]
        %v3395 = vld [vmem:[%s3392 + $0x10] sm:$0xff]
        %v3396 = vld [vmem:[%s3392 + $0x18] sm:$0xff]
        %v3397 = vld [vmem:[%s3392 + $0x20] sm:$0xff]
        %v3398 = vld [vmem:[%s3392 + $0x28] sm:$0xff]
        %v3399 = vld [vmem:[%s3392 + $0x30] sm:$0xff]
        %v3400 = vld [vmem:[%s3392 + $0x38] sm:$0xff]
        %v3401 = vld [vmem:[%s3392 + $0x40] sm:$0xff]
        %v3402 = vld [vmem:[%s3392 + $0x48] sm:$0xff]
        %v3403 = vld [vmem:[%s3392 + $0x50] sm:$0xff]
        %v3404 = vld [vmem:[%s3392 + $0x58] sm:$0xff]
        %v3405 = vld [vmem:[%s3392 + $0x60] sm:$0xff]
        %v3406 = vld [vmem:[%s3392 + $0x68] sm:$0xff]
        %v3407 = vld [vmem:[%s3392 + $0x70] sm:$0xff]
        %v3408 = vld [vmem:[%s3392 + $0x78] sm:$0xff]
        %v3409 = vld [vmem:[%s3392 + $0x80] sm:$0xff]
        %v3410 = vld [vmem:[%s3392 + $0x88] sm:$0xff]
        %v3411 = vld [vmem:[%s3392 + $0x90] sm:$0xff]
        %v3412 = vld [vmem:[%s3392 + $0x98] sm:$0xff]
        %v3413 = vld [vmem:[%s3392 + $0xa0] sm:$0xff]
        %v3414 = vld [vmem:[%s3392 + $0xa8] sm:$0xff]
        %v3415 = vld [vmem:[%s3392 + $0xb0] sm:$0xff]
        %v3416 = vld [vmem:[%s3392 + $0xb8] sm:$0xff]
        %v3417 = vld [vmem:[%s3392 + $0xc0] sm:$0xff]
        %v3418 = vld [vmem:[%s3392 + $0xc8] sm:$0xff]
        %v3419 = vld [vmem:[%s3392 + $0xd0] sm:$0xff]
        %v3420 = vld [vmem:[%s3392 + $0xd8] sm:$0xff]
        %v3421 = vld [vmem:[%s3392 + $0xe0] sm:$0xff]
        %v3422 = vld [vmem:[%s3392 + $0xe8] sm:$0xff]
        %v3423 = vld [vmem:[%s3392 + $0xf0] sm:$0xff]
        %v3424 = vld [vmem:[%s3392 + $0xf8] sm:$0xff]
        %v3425 = vld [vmem:[%s3392 + $0x100] sm:$0xff]
        %v3426 = vld [vmem:[%s3392 + $0x108] sm:$0xff]
        %v3427 = vld [vmem:[%s3392 + $0x110] sm:$0xff]
        %v3428 = vld [vmem:[%s3392 + $0x118] sm:$0xff]
        %v3429 = vld [vmem:[%s3392 + $0x120] sm:$0xff]
        %v3430 = vld [vmem:[%s3392 + $0x128] sm:$0xff]
        %v3431 = vld [vmem:[%s3392 + $0x130] sm:$0xff]
        %v3432 = vld [vmem:[%s3392 + $0x138] sm:$0xff]
        %v3433 = vld [vmem:[%s3392 + $0x140] sm:$0xff]
        %v3434 = vld [vmem:[%s3392 + $0x148] sm:$0xff]
        %v3435 = vld [vmem:[%s3392 + $0x150] sm:$0xff]
        %v3436 = vld [vmem:[%s3392 + $0x158] sm:$0xff]
        %v3437 = vld [vmem:[%s3392 + $0x160] sm:$0xff]
        %v3438 = vld [vmem:[%s3392 + $0x168] sm:$0xff]
        %v3439 = vld [vmem:[%s3392 + $0x170] sm:$0xff]
        %v3440 = vld [vmem:[%s3392 + $0x178] sm:$0xff]
        %v3441 = vld [vmem:[%s3392 + $0x180] sm:$0xff]
        %v3442 = vld [vmem:[%s3392 + $0x188] sm:$0xff]
        %v3443 = vld [vmem:[%s3392 + $0x190] sm:$0xff]
        %v3444 = vld [vmem:[%s3392 + $0x198] sm:$0xff]
        %v3445 = vld [vmem:[%s3392 + $0x1a0] sm:$0xff]
        %v3446 = vld [vmem:[%s3392 + $0x1a8] sm:$0xff]
        %v3447 = vld [vmem:[%s3392 + $0x1b0] sm:$0xff]
        %v3448 = vld [vmem:[%s3392 + $0x1b8] sm:$0xff]
        %v3449 = vld [vmem:[%s3392 + $0x1c0] sm:$0xff]
        %v3450 = vld [vmem:[%s3392 + $0x1c8] sm:$0xff]
        %v3451 = vld [vmem:[%s3392 + $0x1d0] sm:$0xff]
        %v3452 = vld [vmem:[%s3392 + $0x1d8] sm:$0xff]
        %v3453 = vld [vmem:[%s3392 + $0x1e0] sm:$0xff]
        %v3454 = vld [vmem:[%s3392 + $0x1e8] sm:$0xff]
        %v3455 = vld [vmem:[%s3392 + $0x1f0] sm:$0xff]
        %v3456 = vld [vmem:[%s3392 + $0x1f8] sm:$0xff]
        %v3521 = vunpack.c.l.b16 %v3393
        %v3522 = vunpack.c.h.b16 %v3393
        %v3523 = vunpack.c.l.b16 %v3394
        %v3524 = vunpack.c.h.b16 %v3394
        %v3525 = vunpack.c.l.b16 %v3395
        %v3526 = vunpack.c.h.b16 %v3395
        %v3527 = vunpack.c.l.b16 %v3396
        %v3528 = vunpack.c.h.b16 %v3396
        %v3529 = vunpack.c.l.b16 %v3397
        %v3530 = vunpack.c.h.b16 %v3397
        %v3531 = vunpack.c.l.b16 %v3398
        %v3532 = vunpack.c.h.b16 %v3398
        %v3533 = vunpack.c.l.b16 %v3399
        %v3534 = vunpack.c.h.b16 %v3399
        %v3535 = vunpack.c.l.b16 %v3400
        %v3536 = vunpack.c.h.b16 %v3400
        %v3537 = vunpack.c.l.b16 %v3401
        %v3538 = vunpack.c.h.b16 %v3401
        %v3539 = vunpack.c.l.b16 %v3402
        %v3540 = vunpack.c.h.b16 %v3402
        %v3541 = vunpack.c.l.b16 %v3403
        %v3542 = vunpack.c.h.b16 %v3403
        %v3543 = vunpack.c.l.b16 %v3404
        %v3544 = vunpack.c.h.b16 %v3404
        %v3545 = vunpack.c.l.b16 %v3405
        %v3546 = vunpack.c.h.b16 %v3405
        %v3547 = vunpack.c.l.b16 %v3406
        %v3548 = vunpack.c.h.b16 %v3406
        %v3549 = vunpack.c.l.b16 %v3407
        %v3550 = vunpack.c.h.b16 %v3407
        %v3551 = vunpack.c.l.b16 %v3408
        %v3552 = vunpack.c.h.b16 %v3408
        %v3553 = vunpack.c.l.b16 %v3409
        %v3554 = vunpack.c.h.b16 %v3409
        %v3555 = vunpack.c.l.b16 %v3410
        %v3556 = vunpack.c.h.b16 %v3410
        %v3557 = vunpack.c.l.b16 %v3411
        %v3558 = vunpack.c.h.b16 %v3411
        %v3559 = vunpack.c.l.b16 %v3412
        %v3560 = vunpack.c.h.b16 %v3412
        %v3561 = vunpack.c.l.b16 %v3413
        %v3562 = vunpack.c.h.b16 %v3413
        %v3563 = vunpack.c.l.b16 %v3414
        %v3564 = vunpack.c.h.b16 %v3414
        %v3565 = vunpack.c.l.b16 %v3415
        %v3566 = vunpack.c.h.b16 %v3415
        %v3567 = vunpack.c.l.b16 %v3416
        %v3568 = vunpack.c.h.b16 %v3416
        %v3569 = vunpack.c.l.b16 %v3417
        %v3570 = vunpack.c.h.b16 %v3417
        %v3571 = vunpack.c.l.b16 %v3418
        %v3572 = vunpack.c.h.b16 %v3418
        %v3573 = vunpack.c.l.b16 %v3419
        %v3574 = vunpack.c.h.b16 %v3419
        %v3575 = vunpack.c.l.b16 %v3420
        %v3576 = vunpack.c.h.b16 %v3420
        %v3577 = vunpack.c.l.b16 %v3421
        %v3578 = vunpack.c.h.b16 %v3421
        %v3579 = vunpack.c.l.b16 %v3422
        %v3580 = vunpack.c.h.b16 %v3422
        %v3581 = vunpack.c.l.b16 %v3423
        %v3582 = vunpack.c.h.b16 %v3423
        %v3583 = vunpack.c.l.b16 %v3424
        %v3584 = vunpack.c.h.b16 %v3424
        %v3585 = vunpack.c.l.b16 %v3425
        %v3586 = vunpack.c.h.b16 %v3425
        %v3587 = vunpack.c.l.b16 %v3426
        %v3588 = vunpack.c.h.b16 %v3426
        %v3589 = vunpack.c.l.b16 %v3427
        %v3590 = vunpack.c.h.b16 %v3427
        %v3591 = vunpack.c.l.b16 %v3428
        %v3592 = vunpack.c.h.b16 %v3428
        %v3593 = vunpack.c.l.b16 %v3429
        %v3594 = vunpack.c.h.b16 %v3429
        %v3595 = vunpack.c.l.b16 %v3430
        %v3596 = vunpack.c.h.b16 %v3430
        %v3597 = vunpack.c.l.b16 %v3431
        %v3598 = vunpack.c.h.b16 %v3431
        %v3599 = vunpack.c.l.b16 %v3432
        %v3600 = vunpack.c.h.b16 %v3432
        %v3601 = vunpack.c.l.b16 %v3433
        %v3602 = vunpack.c.h.b16 %v3433
        %v3603 = vunpack.c.l.b16 %v3434
        %v3604 = vunpack.c.h.b16 %v3434
        %v3605 = vunpack.c.l.b16 %v3435
        %v3606 = vunpack.c.h.b16 %v3435
        %v3607 = vunpack.c.l.b16 %v3436
        %v3608 = vunpack.c.h.b16 %v3436
        %v3609 = vunpack.c.l.b16 %v3437
        %v3610 = vunpack.c.h.b16 %v3437
        %v3611 = vunpack.c.l.b16 %v3438
        %v3612 = vunpack.c.h.b16 %v3438
        %v3613 = vunpack.c.l.b16 %v3439
        %v3614 = vunpack.c.h.b16 %v3439
        %v3615 = vunpack.c.l.b16 %v3440
        %v3616 = vunpack.c.h.b16 %v3440
        %v3617 = vunpack.c.l.b16 %v3441
        %v3618 = vunpack.c.h.b16 %v3441
        %v3619 = vunpack.c.l.b16 %v3442
        %v3620 = vunpack.c.h.b16 %v3442
        %v3621 = vunpack.c.l.b16 %v3443
        %v3622 = vunpack.c.h.b16 %v3443
        %v3623 = vunpack.c.l.b16 %v3444
        %v3624 = vunpack.c.h.b16 %v3444
        %v3625 = vunpack.c.l.b16 %v3445
        %v3626 = vunpack.c.h.b16 %v3445
        %v3627 = vunpack.c.l.b16 %v3446
        %v3628 = vunpack.c.h.b16 %v3446
        %v3629 = vunpack.c.l.b16 %v3447
        %v3630 = vunpack.c.h.b16 %v3447
        %v3631 = vunpack.c.l.b16 %v3448
        %v3632 = vunpack.c.h.b16 %v3448
        %v3633 = vunpack.c.l.b16 %v3449
        %v3634 = vunpack.c.h.b16 %v3449
        %v3635 = vunpack.c.l.b16 %v3450
        %v3636 = vunpack.c.h.b16 %v3450
        %v3637 = vunpack.c.l.b16 %v3451
        %v3638 = vunpack.c.h.b16 %v3451
        %v3639 = vunpack.c.l.b16 %v3452
        %v3640 = vunpack.c.h.b16 %v3452
        %v3641 = vunpack.c.l.b16 %v3453
        %v3642 = vunpack.c.h.b16 %v3453
        %v3643 = vunpack.c.l.b16 %v3454
        %v3644 = vunpack.c.h.b16 %v3454
        %v3645 = vunpack.c.l.b16 %v3455
        %v3646 = vunpack.c.h.b16 %v3455
        %v3647 = vunpack.c.l.b16 %v3456
        %v3648 = vunpack.c.h.b16 %v3456
        %v3649 = vpack.c.b16 %v3525, %v3521
        %v3650 = vpack.c.b16 %v3526, %v3522
        %v3651 = vpack.c.b16 %v3527, %v3523
        %v3652 = vpack.c.b16 %v3528, %v3524
        %v3653 = vpack.c.b16 %v3533, %v3529
        %v3654 = vpack.c.b16 %v3534, %v3530
        %v3655 = vpack.c.b16 %v3535, %v3531
        %v3656 = vpack.c.b16 %v3536, %v3532
        %v3657 = vpack.c.b16 %v3541, %v3537
        %v3658 = vpack.c.b16 %v3542, %v3538
        %v3659 = vpack.c.b16 %v3543, %v3539
        %v3660 = vpack.c.b16 %v3544, %v3540
        %v3661 = vpack.c.b16 %v3549, %v3545
        %v3662 = vpack.c.b16 %v3550, %v3546
        %v3663 = vpack.c.b16 %v3551, %v3547
        %v3664 = vpack.c.b16 %v3552, %v3548
        %v3665 = vpack.c.b16 %v3557, %v3553
        %v3666 = vpack.c.b16 %v3558, %v3554
        %v3667 = vpack.c.b16 %v3559, %v3555
        %v3668 = vpack.c.b16 %v3560, %v3556
        %v3669 = vpack.c.b16 %v3565, %v3561
        %v3670 = vpack.c.b16 %v3566, %v3562
        %v3671 = vpack.c.b16 %v3567, %v3563
        %v3672 = vpack.c.b16 %v3568, %v3564
        %v3673 = vpack.c.b16 %v3573, %v3569
        %v3674 = vpack.c.b16 %v3574, %v3570
        %v3675 = vpack.c.b16 %v3575, %v3571
        %v3676 = vpack.c.b16 %v3576, %v3572
        %v3677 = vpack.c.b16 %v3581, %v3577
        %v3678 = vpack.c.b16 %v3582, %v3578
        %v3679 = vpack.c.b16 %v3583, %v3579
        %v3680 = vpack.c.b16 %v3584, %v3580
        %v3681 = vpack.c.b16 %v3589, %v3585
        %v3682 = vpack.c.b16 %v3590, %v3586
        %v3683 = vpack.c.b16 %v3591, %v3587
        %v3684 = vpack.c.b16 %v3592, %v3588
        %v3685 = vpack.c.b16 %v3597, %v3593
        %v3686 = vpack.c.b16 %v3598, %v3594
        %v3687 = vpack.c.b16 %v3599, %v3595
        %v3688 = vpack.c.b16 %v3600, %v3596
        %v3689 = vpack.c.b16 %v3605, %v3601
        %v3690 = vpack.c.b16 %v3606, %v3602
        %v3691 = vpack.c.b16 %v3607, %v3603
        %v3692 = vpack.c.b16 %v3608, %v3604
        %v3693 = vpack.c.b16 %v3613, %v3609
        %v3694 = vpack.c.b16 %v3614, %v3610
        %v3695 = vpack.c.b16 %v3615, %v3611
        %v3696 = vpack.c.b16 %v3616, %v3612
        %v3697 = vpack.c.b16 %v3621, %v3617
        %v3698 = vpack.c.b16 %v3622, %v3618
        %v3699 = vpack.c.b16 %v3623, %v3619
        %v3700 = vpack.c.b16 %v3624, %v3620
        %v3701 = vpack.c.b16 %v3629, %v3625
        %v3702 = vpack.c.b16 %v3630, %v3626
        %v3703 = vpack.c.b16 %v3631, %v3627
        %v3704 = vpack.c.b16 %v3632, %v3628
        %v3705 = vpack.c.b16 %v3637, %v3633
        %v3706 = vpack.c.b16 %v3638, %v3634
        %v3707 = vpack.c.b16 %v3639, %v3635
        %v3708 = vpack.c.b16 %v3640, %v3636
        %v3709 = vpack.c.b16 %v3645, %v3641
        %v3710 = vpack.c.b16 %v3646, %v3642
        %v3711 = vpack.c.b16 %v3647, %v3643
        %v3712 = vpack.c.b16 %v3648, %v3644
        %3777 = vmatpush.bf16.msra.mxu0 %v3677
        %3778 = vmatpush.bf16.msra.mxu0 %v3673
        %3779 = vmatpush.bf16.msra.mxu0 %v3669
        %3780 = vmatpush.bf16.msra.mxu0 %v3665
        %3781 = vmatpush.bf16.msra.mxu0 %v3661
        %3782 = vmatpush.bf16.msra.mxu0 %v3657
        %3783 = vmatpush.bf16.msra.mxu0 %v3653
        %3784 = vmatpush.bf16.msra.mxu0 %v3649
        %3785 = vmatmul.bf16.gmra.mxu0 %v1564
        %v3786 = vpop.f32.mrf.mxu0
        %v3787 = vadd.f32 0.0, %v3786
        %v3788 = vpop.f32.mrf.mxu0
        %v3789 = vadd.f32 0.0, %v3788
        %3790 = vmatmul.bf16.gmra.mxu0 %v1566
        %v3791 = vpop.f32.mrf.mxu0
        %v3792 = vadd.f32 0.0, %v3791
        %v3793 = vpop.f32.mrf.mxu0
        %v3794 = vadd.f32 0.0, %v3793
        %3795 = vmatmul.bf16.gmra.mxu0 %v1568
        %v3796 = vpop.f32.mrf.mxu0
        %v3797 = vadd.f32 0.0, %v3796
        %v3798 = vpop.f32.mrf.mxu0
        %v3799 = vadd.f32 0.0, %v3798
        %3800 = vmatmul.bf16.gmra.mxu0 %v3390
        %v3801 = vpop.f32.mrf.mxu0
        %v3802 = vadd.f32 0.0, %v3801
        %v3803 = vpop.f32.mrf.mxu0
        %v3804 = vadd.f32 0.0, %v3803
        %3805 = vdwg.mxu0
        %3806 = vmatpush.bf16.msra.mxu0 %v3709
        %3807 = vmatpush.bf16.msra.mxu0 %v3705
        %3808 = vmatpush.bf16.msra.mxu0 %v3701
        %3809 = vmatpush.bf16.msra.mxu0 %v3697
        %3810 = vmatpush.bf16.msra.mxu0 %v3693
        %3811 = vmatpush.bf16.msra.mxu0 %v3689
        %3812 = vmatpush.bf16.msra.mxu0 %v3685
        %3813 = vmatpush.bf16.msra.mxu0 %v3681
        %3814 = vmatmul.bf16.gmra.mxu0 %v1565
        %v3815 = vpop.f32.mrf.mxu0
        %v3816 = vadd.f32 %v3787, %v3815
        %v3817 = vpop.f32.mrf.mxu0
        %v3818 = vadd.f32 %v3789, %v3817
        %3819 = vmatmul.bf16.gmra.mxu0 %v1567
        %v3820 = vpop.f32.mrf.mxu0
        %v3821 = vadd.f32 %v3792, %v3820
        %v3822 = vpop.f32.mrf.mxu0
        %v3823 = vadd.f32 %v3794, %v3822
        %3824 = vmatmul.bf16.gmra.mxu0 %v1569
        %v3825 = vpop.f32.mrf.mxu0
        %v3826 = vadd.f32 %v3797, %v3825
        %v3827 = vpop.f32.mrf.mxu0
        %v3828 = vadd.f32 %v3799, %v3827
        %3829 = vmatmul.bf16.gmra.mxu0 %v3391
        %v3830 = vpop.f32.mrf.mxu0
        %v3831 = vadd.f32 %v3802, %v3830
        %v3832 = vpop.f32.mrf.mxu0
        %v3833 = vadd.f32 %v3804, %v3832
        %3834 = vdwg.mxu0
        %3835 = vmatpush.bf16.msra.mxu0 %v3678
        %3836 = vmatpush.bf16.msra.mxu0 %v3674
        %3837 = vmatpush.bf16.msra.mxu0 %v3670
        %3838 = vmatpush.bf16.msra.mxu0 %v3666
        %3839 = vmatpush.bf16.msra.mxu0 %v3662
        %3840 = vmatpush.bf16.msra.mxu0 %v3658
        %3841 = vmatpush.bf16.msra.mxu0 %v3654
        %3842 = vmatpush.bf16.msra.mxu0 %v3650
        %3843 = vmatmul.bf16.gmra.mxu0 %v1564
        %v3844 = vpop.f32.mrf.mxu0
        %v3845 = vadd.f32 0.0, %v3844
        %v3846 = vpop.f32.mrf.mxu0
        %v3847 = vadd.f32 0.0, %v3846
        %3848 = vmatmul.bf16.gmra.mxu0 %v1566
        %v3849 = vpop.f32.mrf.mxu0
        %v3850 = vadd.f32 0.0, %v3849
        %v3851 = vpop.f32.mrf.mxu0
        %v3852 = vadd.f32 0.0, %v3851
        %3853 = vmatmul.bf16.gmra.mxu0 %v1568
        %v3854 = vpop.f32.mrf.mxu0
        %v3855 = vadd.f32 0.0, %v3854
        %v3856 = vpop.f32.mrf.mxu0
        %v3857 = vadd.f32 0.0, %v3856
        %3858 = vmatmul.bf16.gmra.mxu0 %v3390
        %v3859 = vpop.f32.mrf.mxu0
        %v3860 = vadd.f32 0.0, %v3859
        %v3861 = vpop.f32.mrf.mxu0
        %v3862 = vadd.f32 0.0, %v3861
        %3863 = vdwg.mxu0
        %3864 = vmatpush.bf16.msra.mxu0 %v3710
        %3865 = vmatpush.bf16.msra.mxu0 %v3706
        %3866 = vmatpush.bf16.msra.mxu0 %v3702
        %3867 = vmatpush.bf16.msra.mxu0 %v3698
        %3868 = vmatpush.bf16.msra.mxu0 %v3694
        %3869 = vmatpush.bf16.msra.mxu0 %v3690
        %3870 = vmatpush.bf16.msra.mxu0 %v3686
        %3871 = vmatpush.bf16.msra.mxu0 %v3682
        %3872 = vmatmul.bf16.gmra.mxu0 %v1565
        %v3873 = vpop.f32.mrf.mxu0
        %v3874 = vadd.f32 %v3845, %v3873
        %v3875 = vpop.f32.mrf.mxu0
        %v3876 = vadd.f32 %v3847, %v3875
        %3877 = vmatmul.bf16.gmra.mxu0 %v1567
        %v3878 = vpop.f32.mrf.mxu0
        %v3879 = vadd.f32 %v3850, %v3878
        %v3880 = vpop.f32.mrf.mxu0
        %v3881 = vadd.f32 %v3852, %v3880
        %3882 = vmatmul.bf16.gmra.mxu0 %v1569
        %v3883 = vpop.f32.mrf.mxu0
        %v3884 = vadd.f32 %v3855, %v3883
        %v3885 = vpop.f32.mrf.mxu0
        %v3886 = vadd.f32 %v3857, %v3885
        %3887 = vmatmul.bf16.gmra.mxu0 %v3391
        %v3888 = vpop.f32.mrf.mxu0
        %v3889 = vadd.f32 %v3860, %v3888
        %v3890 = vpop.f32.mrf.mxu0
        %v3891 = vadd.f32 %v3862, %v3890
        %3892 = vdwg.mxu0
        %3893 = vmatpush.bf16.msra.mxu0 %v3679
        %3894 = vmatpush.bf16.msra.mxu0 %v3675
        %3895 = vmatpush.bf16.msra.mxu0 %v3671
        %3896 = vmatpush.bf16.msra.mxu0 %v3667
        %3897 = vmatpush.bf16.msra.mxu0 %v3663
        %3898 = vmatpush.bf16.msra.mxu0 %v3659
        %3899 = vmatpush.bf16.msra.mxu0 %v3655
        %3900 = vmatpush.bf16.msra.mxu0 %v3651
        %3901 = vmatmul.bf16.gmra.mxu0 %v1564
        %v3902 = vpop.f32.mrf.mxu0
        %v3903 = vadd.f32 0.0, %v3902
        %v3904 = vpop.f32.mrf.mxu0
        %v3905 = vadd.f32 0.0, %v3904
        %3906 = vmatmul.bf16.gmra.mxu0 %v1566
        %v3907 = vpop.f32.mrf.mxu0
        %v3908 = vadd.f32 0.0, %v3907
        %v3909 = vpop.f32.mrf.mxu0
        %v3910 = vadd.f32 0.0, %v3909
        %3911 = vmatmul.bf16.gmra.mxu0 %v1568
        %v3912 = vpop.f32.mrf.mxu0
        %v3913 = vadd.f32 0.0, %v3912
        %v3914 = vpop.f32.mrf.mxu0
        %v3915 = vadd.f32 0.0, %v3914
        %3916 = vmatmul.bf16.gmra.mxu0 %v3390
        %v3917 = vpop.f32.mrf.mxu0
        %v3918 = vadd.f32 0.0, %v3917
        %v3919 = vpop.f32.mrf.mxu0
        %v3920 = vadd.f32 0.0, %v3919
        %3921 = vdwg.mxu0
        %3922 = vmatpush.bf16.msra.mxu0 %v3711
        %3923 = vmatpush.bf16.msra.mxu0 %v3707
        %3924 = vmatpush.bf16.msra.mxu0 %v3703
        %3925 = vmatpush.bf16.msra.mxu0 %v3699
        %3926 = vmatpush.bf16.msra.mxu0 %v3695
        %3927 = vmatpush.bf16.msra.mxu0 %v3691
        %3928 = vmatpush.bf16.msra.mxu0 %v3687
        %3929 = vmatpush.bf16.msra.mxu0 %v3683
        %3930 = vmatmul.bf16.gmra.mxu0 %v1565
        %v3931 = vpop.f32.mrf.mxu0
        %v3932 = vadd.f32 %v3903, %v3931
        %v3933 = vpop.f32.mrf.mxu0
        %v3934 = vadd.f32 %v3905, %v3933
        %3935 = vmatmul.bf16.gmra.mxu0 %v1567
        %v3936 = vpop.f32.mrf.mxu0
        %v3937 = vadd.f32 %v3908, %v3936
        %v3938 = vpop.f32.mrf.mxu0
        %v3939 = vadd.f32 %v3910, %v3938
        %3940 = vmatmul.bf16.gmra.mxu0 %v1569
        %v3941 = vpop.f32.mrf.mxu0
        %v3942 = vadd.f32 %v3913, %v3941
        %v3943 = vpop.f32.mrf.mxu0
        %v3944 = vadd.f32 %v3915, %v3943
        %3945 = vmatmul.bf16.gmra.mxu0 %v3391
        %v3946 = vpop.f32.mrf.mxu0
        %v3947 = vadd.f32 %v3918, %v3946
        %v3948 = vpop.f32.mrf.mxu0
        %v3949 = vadd.f32 %v3920, %v3948
        %3950 = vdwg.mxu0
        %3951 = vmatpush.bf16.msra.mxu0 %v3680
        %3952 = vmatpush.bf16.msra.mxu0 %v3676
        %3953 = vmatpush.bf16.msra.mxu0 %v3672
        %3954 = vmatpush.bf16.msra.mxu0 %v3668
        %3955 = vmatpush.bf16.msra.mxu0 %v3664
        %3956 = vmatpush.bf16.msra.mxu0 %v3660
        %3957 = vmatpush.bf16.msra.mxu0 %v3656
        %3958 = vmatpush.bf16.msra.mxu0 %v3652
        %3959 = vmatmul.bf16.gmra.mxu0 %v1564
        %v3960 = vpop.f32.mrf.mxu0
        %v3961 = vadd.f32 0.0, %v3960
        %v3962 = vpop.f32.mrf.mxu0
        %v3963 = vadd.f32 0.0, %v3962
        %3964 = vmatmul.bf16.gmra.mxu0 %v1566
        %v3965 = vpop.f32.mrf.mxu0
        %v3966 = vadd.f32 0.0, %v3965
        %v3967 = vpop.f32.mrf.mxu0
        %v3968 = vadd.f32 0.0, %v3967
        %3969 = vmatmul.bf16.gmra.mxu0 %v1568
        %v3970 = vpop.f32.mrf.mxu0
        %v3971 = vadd.f32 0.0, %v3970
        %v3972 = vpop.f32.mrf.mxu0
        %v3973 = vadd.f32 0.0, %v3972
        %3974 = vmatmul.bf16.gmra.mxu0 %v3390
        %v3975 = vpop.f32.mrf.mxu0
        %v3976 = vadd.f32 0.0, %v3975
        %v3977 = vpop.f32.mrf.mxu0
        %v3978 = vadd.f32 0.0, %v3977
        %3979 = vdwg.mxu0
        %3980 = vmatpush.bf16.msra.mxu0 %v3712
        %3981 = vmatpush.bf16.msra.mxu0 %v3708
        %3982 = vmatpush.bf16.msra.mxu0 %v3704
        %3983 = vmatpush.bf16.msra.mxu0 %v3700
        %3984 = vmatpush.bf16.msra.mxu0 %v3696
        %3985 = vmatpush.bf16.msra.mxu0 %v3692
        %3986 = vmatpush.bf16.msra.mxu0 %v3688
        %3987 = vmatpush.bf16.msra.mxu0 %v3684
        %3988 = vmatmul.bf16.gmra.mxu0 %v1565
        %v3989 = vpop.f32.mrf.mxu0
        %v3990 = vadd.f32 %v3961, %v3989
        %v3991 = vpop.f32.mrf.mxu0
        %v3992 = vadd.f32 %v3963, %v3991
        %3993 = vmatmul.bf16.gmra.mxu0 %v1567
        %v3994 = vpop.f32.mrf.mxu0
        %v3995 = vadd.f32 %v3966, %v3994
        %v3996 = vpop.f32.mrf.mxu0
        %v3997 = vadd.f32 %v3968, %v3996
        %3998 = vmatmul.bf16.gmra.mxu0 %v1569
        %v3999 = vpop.f32.mrf.mxu0
        %v4000 = vadd.f32 %v3971, %v3999
        %v4001 = vpop.f32.mrf.mxu0
        %v4002 = vadd.f32 %v3973, %v4001
        %4003 = vmatmul.bf16.gmra.mxu0 %v3391
        %v4004 = vpop.f32.mrf.mxu0
        %v4005 = vadd.f32 %v3976, %v4004
        %v4006 = vpop.f32.mrf.mxu0
        %v4007 = vadd.f32 %v3978, %v4006
        %4008 = vdwg.mxu0
        %v4009 = vadd.f32 %v3358, %v3816
        %v4010 = vadd.f32 %v3359, %v3874
        %v4011 = vadd.f32 %v3360, %v3932
        %v4012 = vadd.f32 %v3361, %v3990
        %v4013 = vadd.f32 %v3362, %v3818
        %v4014 = vadd.f32 %v3363, %v3876
        %v4015 = vadd.f32 %v3364, %v3934
        %v4016 = vadd.f32 %v3365, %v3992
        %v4017 = vadd.f32 %v3366, %v3821
        %v4018 = vadd.f32 %v3367, %v3879
        %v4019 = vadd.f32 %v3368, %v3937
        %v4020 = vadd.f32 %v3369, %v3995
        %v4021 = vadd.f32 %v3370, %v3823
        %v4022 = vadd.f32 %v3371, %v3881
        %v4023 = vadd.f32 %v3372, %v3939
        %v4024 = vadd.f32 %v3373, %v3997
        %v4025 = vadd.f32 %v3374, %v3826
        %v4026 = vadd.f32 %v3375, %v3884
        %v4027 = vadd.f32 %v3376, %v3942
        %v4028 = vadd.f32 %v3377, %v4000
        %v4029 = vadd.f32 %v3378, %v3828
        %v4030 = vadd.f32 %v3379, %v3886
        %v4031 = vadd.f32 %v3380, %v3944
        %v4032 = vadd.f32 %v3381, %v4002
        %v4033 = vadd.f32 %v3382, %v3831
        %v4034 = vadd.f32 %v3383, %v3889
        %v4035 = vadd.f32 %v3384, %v3947
        %v4036 = vadd.f32 %v3385, %v4005
        %v4037 = vadd.f32 %v3386, %v3833
        %v4038 = vadd.f32 %v3387, %v3891
        %v4039 = vadd.f32 %v3388, %v3949
        %v4040 = vadd.f32 %v3389, %v4007
        %v4041 = vpack.c.bf16 %v1488, %v1486
        %v4042 = vpack.c.bf16 %v1489, %v1487
        %s4043 = scalar_lea.vmem [#allocation8], 2048
        %v4044 = vld [vmem:[%s4043] sm:$0xff]
        %v4045 = vld [vmem:[%s4043 + $0x8] sm:$0xff]
        %v4046 = vld [vmem:[%s4043 + $0x10] sm:$0xff]
        %v4047 = vld [vmem:[%s4043 + $0x18] sm:$0xff]
        %v4048 = vld [vmem:[%s4043 + $0x20] sm:$0xff]
        %v4049 = vld [vmem:[%s4043 + $0x28] sm:$0xff]
        %v4050 = vld [vmem:[%s4043 + $0x30] sm:$0xff]
        %v4051 = vld [vmem:[%s4043 + $0x38] sm:$0xff]
        %v4052 = vld [vmem:[%s4043 + $0x40] sm:$0xff]
        %v4053 = vld [vmem:[%s4043 + $0x48] sm:$0xff]
        %v4054 = vld [vmem:[%s4043 + $0x50] sm:$0xff]
        %v4055 = vld [vmem:[%s4043 + $0x58] sm:$0xff]
        %v4056 = vld [vmem:[%s4043 + $0x60] sm:$0xff]
        %v4057 = vld [vmem:[%s4043 + $0x68] sm:$0xff]
        %v4058 = vld [vmem:[%s4043 + $0x70] sm:$0xff]
        %v4059 = vld [vmem:[%s4043 + $0x78] sm:$0xff]
        %v4060 = vld [vmem:[%s4043 + $0x80] sm:$0xff]
        %v4061 = vld [vmem:[%s4043 + $0x88] sm:$0xff]
        %v4062 = vld [vmem:[%s4043 + $0x90] sm:$0xff]
        %v4063 = vld [vmem:[%s4043 + $0x98] sm:$0xff]
        %v4064 = vld [vmem:[%s4043 + $0xa0] sm:$0xff]
        %v4065 = vld [vmem:[%s4043 + $0xa8] sm:$0xff]
        %v4066 = vld [vmem:[%s4043 + $0xb0] sm:$0xff]
        %v4067 = vld [vmem:[%s4043 + $0xb8] sm:$0xff]
        %v4068 = vld [vmem:[%s4043 + $0xc0] sm:$0xff]
        %v4069 = vld [vmem:[%s4043 + $0xc8] sm:$0xff]
        %v4070 = vld [vmem:[%s4043 + $0xd0] sm:$0xff]
        %v4071 = vld [vmem:[%s4043 + $0xd8] sm:$0xff]
        %v4072 = vld [vmem:[%s4043 + $0xe0] sm:$0xff]
        %v4073 = vld [vmem:[%s4043 + $0xe8] sm:$0xff]
        %v4074 = vld [vmem:[%s4043 + $0xf0] sm:$0xff]
        %v4075 = vld [vmem:[%s4043 + $0xf8] sm:$0xff]
        %v4076 = vld [vmem:[%s4043 + $0x100] sm:$0xff]
        %v4077 = vld [vmem:[%s4043 + $0x108] sm:$0xff]
        %v4078 = vld [vmem:[%s4043 + $0x110] sm:$0xff]
        %v4079 = vld [vmem:[%s4043 + $0x118] sm:$0xff]
        %v4080 = vld [vmem:[%s4043 + $0x120] sm:$0xff]
        %v4081 = vld [vmem:[%s4043 + $0x128] sm:$0xff]
        %v4082 = vld [vmem:[%s4043 + $0x130] sm:$0xff]
        %v4083 = vld [vmem:[%s4043 + $0x138] sm:$0xff]
        %v4084 = vld [vmem:[%s4043 + $0x140] sm:$0xff]
        %v4085 = vld [vmem:[%s4043 + $0x148] sm:$0xff]
        %v4086 = vld [vmem:[%s4043 + $0x150] sm:$0xff]
        %v4087 = vld [vmem:[%s4043 + $0x158] sm:$0xff]
        %v4088 = vld [vmem:[%s4043 + $0x160] sm:$0xff]
        %v4089 = vld [vmem:[%s4043 + $0x168] sm:$0xff]
        %v4090 = vld [vmem:[%s4043 + $0x170] sm:$0xff]
        %v4091 = vld [vmem:[%s4043 + $0x178] sm:$0xff]
        %v4092 = vld [vmem:[%s4043 + $0x180] sm:$0xff]
        %v4093 = vld [vmem:[%s4043 + $0x188] sm:$0xff]
        %v4094 = vld [vmem:[%s4043 + $0x190] sm:$0xff]
        %v4095 = vld [vmem:[%s4043 + $0x198] sm:$0xff]
        %v4096 = vld [vmem:[%s4043 + $0x1a0] sm:$0xff]
        %v4097 = vld [vmem:[%s4043 + $0x1a8] sm:$0xff]
        %v4098 = vld [vmem:[%s4043 + $0x1b0] sm:$0xff]
        %v4099 = vld [vmem:[%s4043 + $0x1b8] sm:$0xff]
        %v4100 = vld [vmem:[%s4043 + $0x1c0] sm:$0xff]
        %v4101 = vld [vmem:[%s4043 + $0x1c8] sm:$0xff]
        %v4102 = vld [vmem:[%s4043 + $0x1d0] sm:$0xff]
        %v4103 = vld [vmem:[%s4043 + $0x1d8] sm:$0xff]
        %v4104 = vld [vmem:[%s4043 + $0x1e0] sm:$0xff]
        %v4105 = vld [vmem:[%s4043 + $0x1e8] sm:$0xff]
        %v4106 = vld [vmem:[%s4043 + $0x1f0] sm:$0xff]
        %v4107 = vld [vmem:[%s4043 + $0x1f8] sm:$0xff]
        %v4172 = vunpack.c.l.b16 %v4044
        %v4173 = vunpack.c.h.b16 %v4044
        %v4174 = vunpack.c.l.b16 %v4045
        %v4175 = vunpack.c.h.b16 %v4045
        %v4176 = vunpack.c.l.b16 %v4046
        %v4177 = vunpack.c.h.b16 %v4046
        %v4178 = vunpack.c.l.b16 %v4047
        %v4179 = vunpack.c.h.b16 %v4047
        %v4180 = vunpack.c.l.b16 %v4048
        %v4181 = vunpack.c.h.b16 %v4048
        %v4182 = vunpack.c.l.b16 %v4049
        %v4183 = vunpack.c.h.b16 %v4049
        %v4184 = vunpack.c.l.b16 %v4050
        %v4185 = vunpack.c.h.b16 %v4050
        %v4186 = vunpack.c.l.b16 %v4051
        %v4187 = vunpack.c.h.b16 %v4051
        %v4188 = vunpack.c.l.b16 %v4052
        %v4189 = vunpack.c.h.b16 %v4052
        %v4190 = vunpack.c.l.b16 %v4053
        %v4191 = vunpack.c.h.b16 %v4053
        %v4192 = vunpack.c.l.b16 %v4054
        %v4193 = vunpack.c.h.b16 %v4054
        %v4194 = vunpack.c.l.b16 %v4055
        %v4195 = vunpack.c.h.b16 %v4055
        %v4196 = vunpack.c.l.b16 %v4056
        %v4197 = vunpack.c.h.b16 %v4056
        %v4198 = vunpack.c.l.b16 %v4057
        %v4199 = vunpack.c.h.b16 %v4057
        %v4200 = vunpack.c.l.b16 %v4058
        %v4201 = vunpack.c.h.b16 %v4058
        %v4202 = vunpack.c.l.b16 %v4059
        %v4203 = vunpack.c.h.b16 %v4059
        %v4204 = vunpack.c.l.b16 %v4060
        %v4205 = vunpack.c.h.b16 %v4060
        %v4206 = vunpack.c.l.b16 %v4061
        %v4207 = vunpack.c.h.b16 %v4061
        %v4208 = vunpack.c.l.b16 %v4062
        %v4209 = vunpack.c.h.b16 %v4062
        %v4210 = vunpack.c.l.b16 %v4063
        %v4211 = vunpack.c.h.b16 %v4063
        %v4212 = vunpack.c.l.b16 %v4064
        %v4213 = vunpack.c.h.b16 %v4064
        %v4214 = vunpack.c.l.b16 %v4065
        %v4215 = vunpack.c.h.b16 %v4065
        %v4216 = vunpack.c.l.b16 %v4066
        %v4217 = vunpack.c.h.b16 %v4066
        %v4218 = vunpack.c.l.b16 %v4067
        %v4219 = vunpack.c.h.b16 %v4067
        %v4220 = vunpack.c.l.b16 %v4068
        %v4221 = vunpack.c.h.b16 %v4068
        %v4222 = vunpack.c.l.b16 %v4069
        %v4223 = vunpack.c.h.b16 %v4069
        %v4224 = vunpack.c.l.b16 %v4070
        %v4225 = vunpack.c.h.b16 %v4070
        %v4226 = vunpack.c.l.b16 %v4071
        %v4227 = vunpack.c.h.b16 %v4071
        %v4228 = vunpack.c.l.b16 %v4072
        %v4229 = vunpack.c.h.b16 %v4072
        %v4230 = vunpack.c.l.b16 %v4073
        %v4231 = vunpack.c.h.b16 %v4073
        %v4232 = vunpack.c.l.b16 %v4074
        %v4233 = vunpack.c.h.b16 %v4074
        %v4234 = vunpack.c.l.b16 %v4075
        %v4235 = vunpack.c.h.b16 %v4075
        %v4236 = vunpack.c.l.b16 %v4076
        %v4237 = vunpack.c.h.b16 %v4076
        %v4238 = vunpack.c.l.b16 %v4077
        %v4239 = vunpack.c.h.b16 %v4077
        %v4240 = vunpack.c.l.b16 %v4078
        %v4241 = vunpack.c.h.b16 %v4078
        %v4242 = vunpack.c.l.b16 %v4079
        %v4243 = vunpack.c.h.b16 %v4079
        %v4244 = vunpack.c.l.b16 %v4080
        %v4245 = vunpack.c.h.b16 %v4080
        %v4246 = vunpack.c.l.b16 %v4081
        %v4247 = vunpack.c.h.b16 %v4081
        %v4248 = vunpack.c.l.b16 %v4082
        %v4249 = vunpack.c.h.b16 %v4082
        %v4250 = vunpack.c.l.b16 %v4083
        %v4251 = vunpack.c.h.b16 %v4083
        %v4252 = vunpack.c.l.b16 %v4084
        %v4253 = vunpack.c.h.b16 %v4084
        %v4254 = vunpack.c.l.b16 %v4085
        %v4255 = vunpack.c.h.b16 %v4085
        %v4256 = vunpack.c.l.b16 %v4086
        %v4257 = vunpack.c.h.b16 %v4086
        %v4258 = vunpack.c.l.b16 %v4087
        %v4259 = vunpack.c.h.b16 %v4087
        %v4260 = vunpack.c.l.b16 %v4088
        %v4261 = vunpack.c.h.b16 %v4088
        %v4262 = vunpack.c.l.b16 %v4089
        %v4263 = vunpack.c.h.b16 %v4089
        %v4264 = vunpack.c.l.b16 %v4090
        %v4265 = vunpack.c.h.b16 %v4090
        %v4266 = vunpack.c.l.b16 %v4091
        %v4267 = vunpack.c.h.b16 %v4091
        %v4268 = vunpack.c.l.b16 %v4092
        %v4269 = vunpack.c.h.b16 %v4092
        %v4270 = vunpack.c.l.b16 %v4093
        %v4271 = vunpack.c.h.b16 %v4093
        %v4272 = vunpack.c.l.b16 %v4094
        %v4273 = vunpack.c.h.b16 %v4094
        %v4274 = vunpack.c.l.b16 %v4095
        %v4275 = vunpack.c.h.b16 %v4095
        %v4276 = vunpack.c.l.b16 %v4096
        %v4277 = vunpack.c.h.b16 %v4096
        %v4278 = vunpack.c.l.b16 %v4097
        %v4279 = vunpack.c.h.b16 %v4097
        %v4280 = vunpack.c.l.b16 %v4098
        %v4281 = vunpack.c.h.b16 %v4098
        %v4282 = vunpack.c.l.b16 %v4099
        %v4283 = vunpack.c.h.b16 %v4099
        %v4284 = vunpack.c.l.b16 %v4100
        %v4285 = vunpack.c.h.b16 %v4100
        %v4286 = vunpack.c.l.b16 %v4101
        %v4287 = vunpack.c.h.b16 %v4101
        %v4288 = vunpack.c.l.b16 %v4102
        %v4289 = vunpack.c.h.b16 %v4102
        %v4290 = vunpack.c.l.b16 %v4103
        %v4291 = vunpack.c.h.b16 %v4103
        %v4292 = vunpack.c.l.b16 %v4104
        %v4293 = vunpack.c.h.b16 %v4104
        %v4294 = vunpack.c.l.b16 %v4105
        %v4295 = vunpack.c.h.b16 %v4105
        %v4296 = vunpack.c.l.b16 %v4106
        %v4297 = vunpack.c.h.b16 %v4106
        %v4298 = vunpack.c.l.b16 %v4107
        %v4299 = vunpack.c.h.b16 %v4107
        %v4300 = vpack.c.b16 %v4176, %v4172
        %v4301 = vpack.c.b16 %v4177, %v4173
        %v4302 = vpack.c.b16 %v4178, %v4174
        %v4303 = vpack.c.b16 %v4179, %v4175
        %v4304 = vpack.c.b16 %v4184, %v4180
        %v4305 = vpack.c.b16 %v4185, %v4181
        %v4306 = vpack.c.b16 %v4186, %v4182
        %v4307 = vpack.c.b16 %v4187, %v4183
        %v4308 = vpack.c.b16 %v4192, %v4188
        %v4309 = vpack.c.b16 %v4193, %v4189
        %v4310 = vpack.c.b16 %v4194, %v4190
        %v4311 = vpack.c.b16 %v4195, %v4191
        %v4312 = vpack.c.b16 %v4200, %v4196
        %v4313 = vpack.c.b16 %v4201, %v4197
        %v4314 = vpack.c.b16 %v4202, %v4198
        %v4315 = vpack.c.b16 %v4203, %v4199
        %v4316 = vpack.c.b16 %v4208, %v4204
        %v4317 = vpack.c.b16 %v4209, %v4205
        %v4318 = vpack.c.b16 %v4210, %v4206
        %v4319 = vpack.c.b16 %v4211, %v4207
        %v4320 = vpack.c.b16 %v4216, %v4212
        %v4321 = vpack.c.b16 %v4217, %v4213
        %v4322 = vpack.c.b16 %v4218, %v4214
        %v4323 = vpack.c.b16 %v4219, %v4215
        %v4324 = vpack.c.b16 %v4224, %v4220
        %v4325 = vpack.c.b16 %v4225, %v4221
        %v4326 = vpack.c.b16 %v4226, %v4222
        %v4327 = vpack.c.b16 %v4227, %v4223
        %v4328 = vpack.c.b16 %v4232, %v4228
        %v4329 = vpack.c.b16 %v4233, %v4229
        %v4330 = vpack.c.b16 %v4234, %v4230
        %v4331 = vpack.c.b16 %v4235, %v4231
        %v4332 = vpack.c.b16 %v4240, %v4236
        %v4333 = vpack.c.b16 %v4241, %v4237
        %v4334 = vpack.c.b16 %v4242, %v4238
        %v4335 = vpack.c.b16 %v4243, %v4239
        %v4336 = vpack.c.b16 %v4248, %v4244
        %v4337 = vpack.c.b16 %v4249, %v4245
        %v4338 = vpack.c.b16 %v4250, %v4246
        %v4339 = vpack.c.b16 %v4251, %v4247
        %v4340 = vpack.c.b16 %v4256, %v4252
        %v4341 = vpack.c.b16 %v4257, %v4253
        %v4342 = vpack.c.b16 %v4258, %v4254
        %v4343 = vpack.c.b16 %v4259, %v4255
        %v4344 = vpack.c.b16 %v4264, %v4260
        %v4345 = vpack.c.b16 %v4265, %v4261
        %v4346 = vpack.c.b16 %v4266, %v4262
        %v4347 = vpack.c.b16 %v4267, %v4263
        %v4348 = vpack.c.b16 %v4272, %v4268
        %v4349 = vpack.c.b16 %v4273, %v4269
        %v4350 = vpack.c.b16 %v4274, %v4270
        %v4351 = vpack.c.b16 %v4275, %v4271
        %v4352 = vpack.c.b16 %v4280, %v4276
        %v4353 = vpack.c.b16 %v4281, %v4277
        %v4354 = vpack.c.b16 %v4282, %v4278
        %v4355 = vpack.c.b16 %v4283, %v4279
        %v4356 = vpack.c.b16 %v4288, %v4284
        %v4357 = vpack.c.b16 %v4289, %v4285
        %v4358 = vpack.c.b16 %v4290, %v4286
        %v4359 = vpack.c.b16 %v4291, %v4287
        %v4360 = vpack.c.b16 %v4296, %v4292
        %v4361 = vpack.c.b16 %v4297, %v4293
        %v4362 = vpack.c.b16 %v4298, %v4294
        %v4363 = vpack.c.b16 %v4299, %v4295
        %4428 = vmatpush.bf16.msra.mxu0 %v4328
        %4429 = vmatpush.bf16.msra.mxu0 %v4324
        %4430 = vmatpush.bf16.msra.mxu0 %v4320
        %4431 = vmatpush.bf16.msra.mxu0 %v4316
        %4432 = vmatpush.bf16.msra.mxu0 %v4312
        %4433 = vmatpush.bf16.msra.mxu0 %v4308
        %4434 = vmatpush.bf16.msra.mxu0 %v4304
        %4435 = vmatpush.bf16.msra.mxu0 %v4300
        %4436 = vmatmul.bf16.gmra.mxu0 %v1494
        %v4437 = vpop.f32.mrf.mxu0
        %v4438 = vadd.f32 0.0, %v4437
        %v4439 = vpop.f32.mrf.mxu0
        %v4440 = vadd.f32 0.0, %v4439
        %4441 = vmatmul.bf16.gmra.mxu0 %v1496
        %v4442 = vpop.f32.mrf.mxu0
        %v4443 = vadd.f32 0.0, %v4442
        %v4444 = vpop.f32.mrf.mxu0
        %v4445 = vadd.f32 0.0, %v4444
        %4446 = vmatmul.bf16.gmra.mxu0 %v2739
        %v4447 = vpop.f32.mrf.mxu0
        %v4448 = vadd.f32 0.0, %v4447
        %v4449 = vpop.f32.mrf.mxu0
        %v4450 = vadd.f32 0.0, %v4449
        %4451 = vmatmul.bf16.gmra.mxu0 %v4041
        %v4452 = vpop.f32.mrf.mxu0
        %v4453 = vadd.f32 0.0, %v4452
        %v4454 = vpop.f32.mrf.mxu0
        %v4455 = vadd.f32 0.0, %v4454
        %4456 = vdwg.mxu0
        %4457 = vmatpush.bf16.msra.mxu0 %v4360
        %4458 = vmatpush.bf16.msra.mxu0 %v4356
        %4459 = vmatpush.bf16.msra.mxu0 %v4352
        %4460 = vmatpush.bf16.msra.mxu0 %v4348
        %4461 = vmatpush.bf16.msra.mxu0 %v4344
        %4462 = vmatpush.bf16.msra.mxu0 %v4340
        %4463 = vmatpush.bf16.msra.mxu0 %v4336
        %4464 = vmatpush.bf16.msra.mxu0 %v4332
        %4465 = vmatmul.bf16.gmra.mxu0 %v1495
        %v4466 = vpop.f32.mrf.mxu0
        %v4467 = vadd.f32 %v4438, %v4466
        %v4468 = vpop.f32.mrf.mxu0
        %v4469 = vadd.f32 %v4440, %v4468
        %4470 = vmatmul.bf16.gmra.mxu0 %v1497
        %v4471 = vpop.f32.mrf.mxu0
        %v4472 = vadd.f32 %v4443, %v4471
        %v4473 = vpop.f32.mrf.mxu0
        %v4474 = vadd.f32 %v4445, %v4473
        %4475 = vmatmul.bf16.gmra.mxu0 %v2740
        %v4476 = vpop.f32.mrf.mxu0
        %v4477 = vadd.f32 %v4448, %v4476
        %v4478 = vpop.f32.mrf.mxu0
        %v4479 = vadd.f32 %v4450, %v4478
        %4480 = vmatmul.bf16.gmra.mxu0 %v4042
        %v4481 = vpop.f32.mrf.mxu0
        %v4482 = vadd.f32 %v4453, %v4481
        %v4483 = vpop.f32.mrf.mxu0
        %v4484 = vadd.f32 %v4455, %v4483
        %4485 = vdwg.mxu0
        %4486 = vmatpush.bf16.msra.mxu0 %v4329
        %4487 = vmatpush.bf16.msra.mxu0 %v4325
        %4488 = vmatpush.bf16.msra.mxu0 %v4321
        %4489 = vmatpush.bf16.msra.mxu0 %v4317
        %4490 = vmatpush.bf16.msra.mxu0 %v4313
        %4491 = vmatpush.bf16.msra.mxu0 %v4309
        %4492 = vmatpush.bf16.msra.mxu0 %v4305
        %4493 = vmatpush.bf16.msra.mxu0 %v4301
        %4494 = vmatmul.bf16.gmra.mxu0 %v1494
        %v4495 = vpop.f32.mrf.mxu0
        %v4496 = vadd.f32 0.0, %v4495
        %v4497 = vpop.f32.mrf.mxu0
        %v4498 = vadd.f32 0.0, %v4497
        %4499 = vmatmul.bf16.gmra.mxu0 %v1496
        %v4500 = vpop.f32.mrf.mxu0
        %v4501 = vadd.f32 0.0, %v4500
        %v4502 = vpop.f32.mrf.mxu0
        %v4503 = vadd.f32 0.0, %v4502
        %4504 = vmatmul.bf16.gmra.mxu0 %v2739
        %v4505 = vpop.f32.mrf.mxu0
        %v4506 = vadd.f32 0.0, %v4505
        %v4507 = vpop.f32.mrf.mxu0
        %v4508 = vadd.f32 0.0, %v4507
        %4509 = vmatmul.bf16.gmra.mxu0 %v4041
        %v4510 = vpop.f32.mrf.mxu0
        %v4511 = vadd.f32 0.0, %v4510
        %v4512 = vpop.f32.mrf.mxu0
        %v4513 = vadd.f32 0.0, %v4512
        %4514 = vdwg.mxu0
        %4515 = vmatpush.bf16.msra.mxu0 %v4361
        %4516 = vmatpush.bf16.msra.mxu0 %v4357
        %4517 = vmatpush.bf16.msra.mxu0 %v4353
        %4518 = vmatpush.bf16.msra.mxu0 %v4349
        %4519 = vmatpush.bf16.msra.mxu0 %v4345
        %4520 = vmatpush.bf16.msra.mxu0 %v4341
        %4521 = vmatpush.bf16.msra.mxu0 %v4337
        %4522 = vmatpush.bf16.msra.mxu0 %v4333
        %4523 = vmatmul.bf16.gmra.mxu0 %v1495
        %v4524 = vpop.f32.mrf.mxu0
        %v4525 = vadd.f32 %v4496, %v4524
        %v4526 = vpop.f32.mrf.mxu0
        %v4527 = vadd.f32 %v4498, %v4526
        %4528 = vmatmul.bf16.gmra.mxu0 %v1497
        %v4529 = vpop.f32.mrf.mxu0
        %v4530 = vadd.f32 %v4501, %v4529
        %v4531 = vpop.f32.mrf.mxu0
        %v4532 = vadd.f32 %v4503, %v4531
        %4533 = vmatmul.bf16.gmra.mxu0 %v2740
        %v4534 = vpop.f32.mrf.mxu0
        %v4535 = vadd.f32 %v4506, %v4534
        %v4536 = vpop.f32.mrf.mxu0
        %v4537 = vadd.f32 %v4508, %v4536
        %4538 = vmatmul.bf16.gmra.mxu0 %v4042
        %v4539 = vpop.f32.mrf.mxu0
        %v4540 = vadd.f32 %v4511, %v4539
        %v4541 = vpop.f32.mrf.mxu0
        %v4542 = vadd.f32 %v4513, %v4541
        %4543 = vdwg.mxu0
        %4544 = vmatpush.bf16.msra.mxu0 %v4330
        %4545 = vmatpush.bf16.msra.mxu0 %v4326
        %4546 = vmatpush.bf16.msra.mxu0 %v4322
        %4547 = vmatpush.bf16.msra.mxu0 %v4318
        %4548 = vmatpush.bf16.msra.mxu0 %v4314
        %4549 = vmatpush.bf16.msra.mxu0 %v4310
        %4550 = vmatpush.bf16.msra.mxu0 %v4306
        %4551 = vmatpush.bf16.msra.mxu0 %v4302
        %4552 = vmatmul.bf16.gmra.mxu0 %v1494
        %v4553 = vpop.f32.mrf.mxu0
        %v4554 = vadd.f32 0.0, %v4553
        %v4555 = vpop.f32.mrf.mxu0
        %v4556 = vadd.f32 0.0, %v4555
        %4557 = vmatmul.bf16.gmra.mxu0 %v1496
        %v4558 = vpop.f32.mrf.mxu0
        %v4559 = vadd.f32 0.0, %v4558
        %v4560 = vpop.f32.mrf.mxu0
        %v4561 = vadd.f32 0.0, %v4560
        %4562 = vmatmul.bf16.gmra.mxu0 %v2739
        %v4563 = vpop.f32.mrf.mxu0
        %v4564 = vadd.f32 0.0, %v4563
        %v4565 = vpop.f32.mrf.mxu0
        %v4566 = vadd.f32 0.0, %v4565
        %4567 = vmatmul.bf16.gmra.mxu0 %v4041
        %v4568 = vpop.f32.mrf.mxu0
        %v4569 = vadd.f32 0.0, %v4568
        %v4570 = vpop.f32.mrf.mxu0
        %v4571 = vadd.f32 0.0, %v4570
        %4572 = vdwg.mxu0
        %4573 = vmatpush.bf16.msra.mxu0 %v4362
        %4574 = vmatpush.bf16.msra.mxu0 %v4358
        %4575 = vmatpush.bf16.msra.mxu0 %v4354
        %4576 = vmatpush.bf16.msra.mxu0 %v4350
        %4577 = vmatpush.bf16.msra.mxu0 %v4346
        %4578 = vmatpush.bf16.msra.mxu0 %v4342
        %4579 = vmatpush.bf16.msra.mxu0 %v4338
        %4580 = vmatpush.bf16.msra.mxu0 %v4334
        %4581 = vmatmul.bf16.gmra.mxu0 %v1495
        %v4582 = vpop.f32.mrf.mxu0
        %v4583 = vadd.f32 %v4554, %v4582
        %v4584 = vpop.f32.mrf.mxu0
        %v4585 = vadd.f32 %v4556, %v4584
        %4586 = vmatmul.bf16.gmra.mxu0 %v1497
        %v4587 = vpop.f32.mrf.mxu0
        %v4588 = vadd.f32 %v4559, %v4587
        %v4589 = vpop.f32.mrf.mxu0
        %v4590 = vadd.f32 %v4561, %v4589
        %4591 = vmatmul.bf16.gmra.mxu0 %v2740
        %v4592 = vpop.f32.mrf.mxu0
        %v4593 = vadd.f32 %v4564, %v4592
        %v4594 = vpop.f32.mrf.mxu0
        %v4595 = vadd.f32 %v4566, %v4594
        %4596 = vmatmul.bf16.gmra.mxu0 %v4042
        %v4597 = vpop.f32.mrf.mxu0
        %v4598 = vadd.f32 %v4569, %v4597
        %v4599 = vpop.f32.mrf.mxu0
        %v4600 = vadd.f32 %v4571, %v4599
        %4601 = vdwg.mxu0
        %4602 = vmatpush.bf16.msra.mxu0 %v4331
        %4603 = vmatpush.bf16.msra.mxu0 %v4327
        %4604 = vmatpush.bf16.msra.mxu0 %v4323
        %4605 = vmatpush.bf16.msra.mxu0 %v4319
        %4606 = vmatpush.bf16.msra.mxu0 %v4315
        %4607 = vmatpush.bf16.msra.mxu0 %v4311
        %4608 = vmatpush.bf16.msra.mxu0 %v4307
        %4609 = vmatpush.bf16.msra.mxu0 %v4303
        %4610 = vmatmul.bf16.gmra.mxu0 %v1494
        %v4611 = vpop.f32.mrf.mxu0
        %v4612 = vadd.f32 0.0, %v4611
        %v4613 = vpop.f32.mrf.mxu0
        %v4614 = vadd.f32 0.0, %v4613
        %4615 = vmatmul.bf16.gmra.mxu0 %v1496
        %v4616 = vpop.f32.mrf.mxu0
        %v4617 = vadd.f32 0.0, %v4616
        %v4618 = vpop.f32.mrf.mxu0
        %v4619 = vadd.f32 0.0, %v4618
        %4620 = vmatmul.bf16.gmra.mxu0 %v2739
        %v4621 = vpop.f32.mrf.mxu0
        %v4622 = vadd.f32 0.0, %v4621
        %v4623 = vpop.f32.mrf.mxu0
        %v4624 = vadd.f32 0.0, %v4623
        %4625 = vmatmul.bf16.gmra.mxu0 %v4041
        %v4626 = vpop.f32.mrf.mxu0
        %v4627 = vadd.f32 0.0, %v4626
        %v4628 = vpop.f32.mrf.mxu0
        %v4629 = vadd.f32 0.0, %v4628
        %4630 = vdwg.mxu0
        %4631 = vmatpush.bf16.msra.mxu0 %v4363
        %4632 = vmatpush.bf16.msra.mxu0 %v4359
        %4633 = vmatpush.bf16.msra.mxu0 %v4355
        %4634 = vmatpush.bf16.msra.mxu0 %v4351
        %4635 = vmatpush.bf16.msra.mxu0 %v4347
        %4636 = vmatpush.bf16.msra.mxu0 %v4343
        %4637 = vmatpush.bf16.msra.mxu0 %v4339
        %4638 = vmatpush.bf16.msra.mxu0 %v4335
        %4639 = vmatmul.bf16.gmra.mxu0 %v1495
        %v4640 = vpop.f32.mrf.mxu0
        %v4641 = vadd.f32 %v4612, %v4640
        %v4642 = vpop.f32.mrf.mxu0
        %v4643 = vadd.f32 %v4614, %v4642
        %4644 = vmatmul.bf16.gmra.mxu0 %v1497
        %v4645 = vpop.f32.mrf.mxu0
        %v4646 = vadd.f32 %v4617, %v4645
        %v4647 = vpop.f32.mrf.mxu0
        %v4648 = vadd.f32 %v4619, %v4647
        %4649 = vmatmul.bf16.gmra.mxu0 %v2740
        %v4650 = vpop.f32.mrf.mxu0
        %v4651 = vadd.f32 %v4622, %v4650
        %v4652 = vpop.f32.mrf.mxu0
        %v4653 = vadd.f32 %v4624, %v4652
        %4654 = vmatmul.bf16.gmra.mxu0 %v4042
        %v4655 = vpop.f32.mrf.mxu0
        %v4656 = vadd.f32 %v4627, %v4655
        %v4657 = vpop.f32.mrf.mxu0
        %v4658 = vadd.f32 %v4629, %v4657
        %4659 = vdwg.mxu0
        %v4660 = vadd.f32 %v4009, %v4467
        %v4661 = vadd.f32 %v4010, %v4525
        %v4662 = vadd.f32 %v4011, %v4583
        %v4663 = vadd.f32 %v4012, %v4641
        %v4664 = vadd.f32 %v4013, %v4469
        %v4665 = vadd.f32 %v4014, %v4527
        %v4666 = vadd.f32 %v4015, %v4585
        %v4667 = vadd.f32 %v4016, %v4643
        %v4668 = vadd.f32 %v4017, %v4472
        %v4669 = vadd.f32 %v4018, %v4530
        %v4670 = vadd.f32 %v4019, %v4588
        %v4671 = vadd.f32 %v4020, %v4646
        %v4672 = vadd.f32 %v4021, %v4474
        %v4673 = vadd.f32 %v4022, %v4532
        %v4674 = vadd.f32 %v4023, %v4590
        %v4675 = vadd.f32 %v4024, %v4648
        %v4676 = vadd.f32 %v4025, %v4477
        %v4677 = vadd.f32 %v4026, %v4535
        %v4678 = vadd.f32 %v4027, %v4593
        %v4679 = vadd.f32 %v4028, %v4651
        %v4680 = vadd.f32 %v4029, %v4479
        %v4681 = vadd.f32 %v4030, %v4537
        %v4682 = vadd.f32 %v4031, %v4595
        %v4683 = vadd.f32 %v4032, %v4653
        %v4684 = vadd.f32 %v4033, %v4482
        %v4685 = vadd.f32 %v4034, %v4540
        %v4686 = vadd.f32 %v4035, %v4598
        %v4687 = vadd.f32 %v4036, %v4656
        %v4688 = vadd.f32 %v4037, %v4484
        %v4689 = vadd.f32 %v4038, %v4542
        %v4690 = vadd.f32 %v4039, %v4600
        %v4691 = vadd.f32 %v4040, %v4658
        %v4692 = vmax.f32 %v4660, %v4662
        %v4693 = vmax.f32 %v4661, %v4663
        %v4694 = vmax.f32 %v4664, %v4666
        %v4695 = vmax.f32 %v4665, %v4667
        %v4696 = vmax.f32 %v4668, %v4670
        %v4697 = vmax.f32 %v4669, %v4671
        %v4698 = vmax.f32 %v4672, %v4674
        %v4699 = vmax.f32 %v4673, %v4675
        %v4700 = vmax.f32 %v4676, %v4678
        %v4701 = vmax.f32 %v4677, %v4679
        %v4702 = vmax.f32 %v4680, %v4682
        %v4703 = vmax.f32 %v4681, %v4683
        %v4704 = vmax.f32 %v4684, %v4686
        %v4705 = vmax.f32 %v4685, %v4687
        %v4706 = vmax.f32 %v4688, %v4690
        %v4707 = vmax.f32 %v4689, %v4691
        %v4708 = vmax.f32 %v4692, %v4694
        %v4709 = vmax.f32 %v4693, %v4695
        %v4710 = vmax.f32 %v4696, %v4698
        %v4711 = vmax.f32 %v4697, %v4699
        %v4712 = vmax.f32 %v4700, %v4702
        %v4713 = vmax.f32 %v4701, %v4703
        %v4714 = vmax.f32 %v4704, %v4706
        %v4715 = vmax.f32 %v4705, %v4707
        %v4716 = vld [vmem:[#allocation10] sm:$0x3]
        %v4718 = vperm.slane %v4716, 0
        %v4719 = vperm.slane %v4716, 1
        %v4722 = vadd.f32 %v4708, %v4718
        %v4723 = vadd.f32 %v4709, %v4719
        %v4724 = vadd.f32 %v4710, %v4718
        %v4725 = vadd.f32 %v4711, %v4719
        %v4726 = vadd.f32 %v4712, %v4718
        %v4727 = vadd.f32 %v4713, %v4719
        %v4728 = vadd.f32 %v4714, %v4718
        %v4729 = vadd.f32 %v4715, %v4719
        %v4730 = vmax.f32 %v4722, 0.0
        %v4731 = vmax.f32 %v4723, 0.0
        %v4732 = vmax.f32 %v4724, 0.0
        %v4733 = vmax.f32 %v4725, 0.0
        %v4734 = vmax.f32 %v4726, 0.0
        %v4735 = vmax.f32 %v4727, 0.0
        %v4736 = vmax.f32 %v4728, 0.0
        %v4737 = vmax.f32 %v4729, 0.0
        %v4738 = vpack.c.bf16 %v4730, %v4730
        %v4739 = vpack.c.bf16 %v4731, %v4731
        %v4740 = vld [vmem:[#allocation11] sm:$0xff]
        %v4741 = vld [vmem:[#allocation11 + $0x8] sm:$0xff]
        %v4742 = vld [vmem:[#allocation11 + $0x10] sm:$0xff]
        %v4743 = vld [vmem:[#allocation11 + $0x18] sm:$0xff]
        %v4744 = vld [vmem:[#allocation11 + $0x20] sm:$0xff]
        %v4745 = vld [vmem:[#allocation11 + $0x28] sm:$0xff]
        %v4746 = vld [vmem:[#allocation11 + $0x30] sm:$0xff]
        %v4747 = vld [vmem:[#allocation11 + $0x38] sm:$0xff]
        %v4748 = vld [vmem:[#allocation11 + $0x40] sm:$0xff]
        %v4749 = vld [vmem:[#allocation11 + $0x48] sm:$0xff]
        %v4750 = vld [vmem:[#allocation11 + $0x50] sm:$0xff]
        %v4751 = vld [vmem:[#allocation11 + $0x58] sm:$0xff]
        %v4752 = vld [vmem:[#allocation11 + $0x60] sm:$0xff]
        %v4753 = vld [vmem:[#allocation11 + $0x68] sm:$0xff]
        %v4754 = vld [vmem:[#allocation11 + $0x70] sm:$0xff]
        %v4755 = vld [vmem:[#allocation11 + $0x78] sm:$0xff]
        %v4756 = vld [vmem:[#allocation11 + $0x80] sm:$0xff]
        %v4757 = vld [vmem:[#allocation11 + $0x88] sm:$0xff]
        %v4758 = vld [vmem:[#allocation11 + $0x90] sm:$0xff]
        %v4759 = vld [vmem:[#allocation11 + $0x98] sm:$0xff]
        %v4760 = vld [vmem:[#allocation11 + $0xa0] sm:$0xff]
        %v4761 = vld [vmem:[#allocation11 + $0xa8] sm:$0xff]
        %v4762 = vld [vmem:[#allocation11 + $0xb0] sm:$0xff]
        %v4763 = vld [vmem:[#allocation11 + $0xb8] sm:$0xff]
        %v4764 = vld [vmem:[#allocation11 + $0xc0] sm:$0xff]
        %v4765 = vld [vmem:[#allocation11 + $0xc8] sm:$0xff]
        %v4766 = vld [vmem:[#allocation11 + $0xd0] sm:$0xff]
        %v4767 = vld [vmem:[#allocation11 + $0xd8] sm:$0xff]
        %v4768 = vld [vmem:[#allocation11 + $0xe0] sm:$0xff]
        %v4769 = vld [vmem:[#allocation11 + $0xe8] sm:$0xff]
        %v4770 = vld [vmem:[#allocation11 + $0xf0] sm:$0xff]
        %v4771 = vld [vmem:[#allocation11 + $0xf8] sm:$0xff]
        %v4772 = vld [vmem:[#allocation11 + $0x100] sm:$0xff]
        %v4773 = vld [vmem:[#allocation11 + $0x108] sm:$0xff]
        %v4774 = vld [vmem:[#allocation11 + $0x110] sm:$0xff]
        %v4775 = vld [vmem:[#allocation11 + $0x118] sm:$0xff]
        %v4776 = vld [vmem:[#allocation11 + $0x120] sm:$0xff]
        %v4777 = vld [vmem:[#allocation11 + $0x128] sm:$0xff]
        %v4778 = vld [vmem:[#allocation11 + $0x130] sm:$0xff]
        %v4779 = vld [vmem:[#allocation11 + $0x138] sm:$0xff]
        %v4780 = vld [vmem:[#allocation11 + $0x140] sm:$0xff]
        %v4781 = vld [vmem:[#allocation11 + $0x148] sm:$0xff]
        %v4782 = vld [vmem:[#allocation11 + $0x150] sm:$0xff]
        %v4783 = vld [vmem:[#allocation11 + $0x158] sm:$0xff]
        %v4784 = vld [vmem:[#allocation11 + $0x160] sm:$0xff]
        %v4785 = vld [vmem:[#allocation11 + $0x168] sm:$0xff]
        %v4786 = vld [vmem:[#allocation11 + $0x170] sm:$0xff]
        %v4787 = vld [vmem:[#allocation11 + $0x178] sm:$0xff]
        %v4788 = vld [vmem:[#allocation11 + $0x180] sm:$0xff]
        %v4789 = vld [vmem:[#allocation11 + $0x188] sm:$0xff]
        %v4790 = vld [vmem:[#allocation11 + $0x190] sm:$0xff]
        %v4791 = vld [vmem:[#allocation11 + $0x198] sm:$0xff]
        %v4792 = vld [vmem:[#allocation11 + $0x1a0] sm:$0xff]
        %v4793 = vld [vmem:[#allocation11 + $0x1a8] sm:$0xff]
        %v4794 = vld [vmem:[#allocation11 + $0x1b0] sm:$0xff]
        %v4795 = vld [vmem:[#allocation11 + $0x1b8] sm:$0xff]
        %v4796 = vld [vmem:[#allocation11 + $0x1c0] sm:$0xff]
        %v4797 = vld [vmem:[#allocation11 + $0x1c8] sm:$0xff]
        %v4798 = vld [vmem:[#allocation11 + $0x1d0] sm:$0xff]
        %v4799 = vld [vmem:[#allocation11 + $0x1d8] sm:$0xff]
        %v4800 = vld [vmem:[#allocation11 + $0x1e0] sm:$0xff]
        %v4801 = vld [vmem:[#allocation11 + $0x1e8] sm:$0xff]
        %v4802 = vld [vmem:[#allocation11 + $0x1f0] sm:$0xff]
        %v4803 = vld [vmem:[#allocation11 + $0x1f8] sm:$0xff]
        %v4804 = vpack.c.bf16 %v4732, %v4732
        %v4805 = vpack.c.bf16 %v4733, %v4733
        %s4806 = scalar_lea.vmem [#allocation11], 512
        %v4807 = vld [vmem:[%s4806] sm:$0xff]
        %v4808 = vld [vmem:[%s4806 + $0x8] sm:$0xff]
        %v4809 = vld [vmem:[%s4806 + $0x10] sm:$0xff]
        %v4810 = vld [vmem:[%s4806 + $0x18] sm:$0xff]
        %v4811 = vld [vmem:[%s4806 + $0x20] sm:$0xff]
        %v4812 = vld [vmem:[%s4806 + $0x28] sm:$0xff]
        %v4813 = vld [vmem:[%s4806 + $0x30] sm:$0xff]
        %v4814 = vld [vmem:[%s4806 + $0x38] sm:$0xff]
        %v4815 = vld [vmem:[%s4806 + $0x40] sm:$0xff]
        %v4816 = vld [vmem:[%s4806 + $0x48] sm:$0xff]
        %v4817 = vld [vmem:[%s4806 + $0x50] sm:$0xff]
        %v4818 = vld [vmem:[%s4806 + $0x58] sm:$0xff]
        %v4819 = vld [vmem:[%s4806 + $0x60] sm:$0xff]
        %v4820 = vld [vmem:[%s4806 + $0x68] sm:$0xff]
        %v4821 = vld [vmem:[%s4806 + $0x70] sm:$0xff]
        %v4822 = vld [vmem:[%s4806 + $0x78] sm:$0xff]
        %v4823 = vld [vmem:[%s4806 + $0x80] sm:$0xff]
        %v4824 = vld [vmem:[%s4806 + $0x88] sm:$0xff]
        %v4825 = vld [vmem:[%s4806 + $0x90] sm:$0xff]
        %v4826 = vld [vmem:[%s4806 + $0x98] sm:$0xff]
        %v4827 = vld [vmem:[%s4806 + $0xa0] sm:$0xff]
        %v4828 = vld [vmem:[%s4806 + $0xa8] sm:$0xff]
        %v4829 = vld [vmem:[%s4806 + $0xb0] sm:$0xff]
        %v4830 = vld [vmem:[%s4806 + $0xb8] sm:$0xff]
        %v4831 = vld [vmem:[%s4806 + $0xc0] sm:$0xff]
        %v4832 = vld [vmem:[%s4806 + $0xc8] sm:$0xff]
        %v4833 = vld [vmem:[%s4806 + $0xd0] sm:$0xff]
        %v4834 = vld [vmem:[%s4806 + $0xd8] sm:$0xff]
        %v4835 = vld [vmem:[%s4806 + $0xe0] sm:$0xff]
        %v4836 = vld [vmem:[%s4806 + $0xe8] sm:$0xff]
        %v4837 = vld [vmem:[%s4806 + $0xf0] sm:$0xff]
        %v4838 = vld [vmem:[%s4806 + $0xf8] sm:$0xff]
        %v4839 = vld [vmem:[%s4806 + $0x100] sm:$0xff]
        %v4840 = vld [vmem:[%s4806 + $0x108] sm:$0xff]
        %v4841 = vld [vmem:[%s4806 + $0x110] sm:$0xff]
        %v4842 = vld [vmem:[%s4806 + $0x118] sm:$0xff]
        %v4843 = vld [vmem:[%s4806 + $0x120] sm:$0xff]
        %v4844 = vld [vmem:[%s4806 + $0x128] sm:$0xff]
        %v4845 = vld [vmem:[%s4806 + $0x130] sm:$0xff]
        %v4846 = vld [vmem:[%s4806 + $0x138] sm:$0xff]
        %v4847 = vld [vmem:[%s4806 + $0x140] sm:$0xff]
        %v4848 = vld [vmem:[%s4806 + $0x148] sm:$0xff]
        %v4849 = vld [vmem:[%s4806 + $0x150] sm:$0xff]
        %v4850 = vld [vmem:[%s4806 + $0x158] sm:$0xff]
        %v4851 = vld [vmem:[%s4806 + $0x160] sm:$0xff]
        %v4852 = vld [vmem:[%s4806 + $0x168] sm:$0xff]
        %v4853 = vld [vmem:[%s4806 + $0x170] sm:$0xff]
        %v4854 = vld [vmem:[%s4806 + $0x178] sm:$0xff]
        %v4855 = vld [vmem:[%s4806 + $0x180] sm:$0xff]
        %v4856 = vld [vmem:[%s4806 + $0x188] sm:$0xff]
        %v4857 = vld [vmem:[%s4806 + $0x190] sm:$0xff]
        %v4858 = vld [vmem:[%s4806 + $0x198] sm:$0xff]
        %v4859 = vld [vmem:[%s4806 + $0x1a0] sm:$0xff]
        %v4860 = vld [vmem:[%s4806 + $0x1a8] sm:$0xff]
        %v4861 = vld [vmem:[%s4806 + $0x1b0] sm:$0xff]
        %v4862 = vld [vmem:[%s4806 + $0x1b8] sm:$0xff]
        %v4863 = vld [vmem:[%s4806 + $0x1c0] sm:$0xff]
        %v4864 = vld [vmem:[%s4806 + $0x1c8] sm:$0xff]
        %v4865 = vld [vmem:[%s4806 + $0x1d0] sm:$0xff]
        %v4866 = vld [vmem:[%s4806 + $0x1d8] sm:$0xff]
        %v4867 = vld [vmem:[%s4806 + $0x1e0] sm:$0xff]
        %v4868 = vld [vmem:[%s4806 + $0x1e8] sm:$0xff]
        %v4869 = vld [vmem:[%s4806 + $0x1f0] sm:$0xff]
        %v4870 = vld [vmem:[%s4806 + $0x1f8] sm:$0xff]
        %v4935 = vunpack.c.l.b16 %v4807
        %v4936 = vunpack.c.h.b16 %v4807
        %v4937 = vunpack.c.l.b16 %v4808
        %v4938 = vunpack.c.h.b16 %v4808
        %v4939 = vunpack.c.l.b16 %v4809
        %v4940 = vunpack.c.h.b16 %v4809
        %v4941 = vunpack.c.l.b16 %v4810
        %v4942 = vunpack.c.h.b16 %v4810
        %v4943 = vunpack.c.l.b16 %v4811
        %v4944 = vunpack.c.h.b16 %v4811
        %v4945 = vunpack.c.l.b16 %v4812
        %v4946 = vunpack.c.h.b16 %v4812
        %v4947 = vunpack.c.l.b16 %v4813
        %v4948 = vunpack.c.h.b16 %v4813
        %v4949 = vunpack.c.l.b16 %v4814
        %v4950 = vunpack.c.h.b16 %v4814
        %v4951 = vunpack.c.l.b16 %v4815
        %v4952 = vunpack.c.h.b16 %v4815
        %v4953 = vunpack.c.l.b16 %v4816
        %v4954 = vunpack.c.h.b16 %v4816
        %v4955 = vunpack.c.l.b16 %v4817
        %v4956 = vunpack.c.h.b16 %v4817
        %v4957 = vunpack.c.l.b16 %v4818
        %v4958 = vunpack.c.h.b16 %v4818
        %v4959 = vunpack.c.l.b16 %v4819
        %v4960 = vunpack.c.h.b16 %v4819
        %v4961 = vunpack.c.l.b16 %v4820
        %v4962 = vunpack.c.h.b16 %v4820
        %v4963 = vunpack.c.l.b16 %v4821
        %v4964 = vunpack.c.h.b16 %v4821
        %v4965 = vunpack.c.l.b16 %v4822
        %v4966 = vunpack.c.h.b16 %v4822
        %v4967 = vunpack.c.l.b16 %v4823
        %v4968 = vunpack.c.h.b16 %v4823
        %v4969 = vunpack.c.l.b16 %v4824
        %v4970 = vunpack.c.h.b16 %v4824
        %v4971 = vunpack.c.l.b16 %v4825
        %v4972 = vunpack.c.h.b16 %v4825
        %v4973 = vunpack.c.l.b16 %v4826
        %v4974 = vunpack.c.h.b16 %v4826
        %v4975 = vunpack.c.l.b16 %v4827
        %v4976 = vunpack.c.h.b16 %v4827
        %v4977 = vunpack.c.l.b16 %v4828
        %v4978 = vunpack.c.h.b16 %v4828
        %v4979 = vunpack.c.l.b16 %v4829
        %v4980 = vunpack.c.h.b16 %v4829
        %v4981 = vunpack.c.l.b16 %v4830
        %v4982 = vunpack.c.h.b16 %v4830
        %v4983 = vunpack.c.l.b16 %v4831
        %v4984 = vunpack.c.h.b16 %v4831
        %v4985 = vunpack.c.l.b16 %v4832
        %v4986 = vunpack.c.h.b16 %v4832
        %v4987 = vunpack.c.l.b16 %v4833
        %v4988 = vunpack.c.h.b16 %v4833
        %v4989 = vunpack.c.l.b16 %v4834
        %v4990 = vunpack.c.h.b16 %v4834
        %v4991 = vunpack.c.l.b16 %v4835
        %v4992 = vunpack.c.h.b16 %v4835
        %v4993 = vunpack.c.l.b16 %v4836
        %v4994 = vunpack.c.h.b16 %v4836
        %v4995 = vunpack.c.l.b16 %v4837
        %v4996 = vunpack.c.h.b16 %v4837
        %v4997 = vunpack.c.l.b16 %v4838
        %v4998 = vunpack.c.h.b16 %v4838
        %v4999 = vunpack.c.l.b16 %v4839
        %v5000 = vunpack.c.h.b16 %v4839
        %v5001 = vunpack.c.l.b16 %v4840
        %v5002 = vunpack.c.h.b16 %v4840
        %v5003 = vunpack.c.l.b16 %v4841
        %v5004 = vunpack.c.h.b16 %v4841
        %v5005 = vunpack.c.l.b16 %v4842
        %v5006 = vunpack.c.h.b16 %v4842
        %v5007 = vunpack.c.l.b16 %v4843
        %v5008 = vunpack.c.h.b16 %v4843
        %v5009 = vunpack.c.l.b16 %v4844
        %v5010 = vunpack.c.h.b16 %v4844
        %v5011 = vunpack.c.l.b16 %v4845
        %v5012 = vunpack.c.h.b16 %v4845
        %v5013 = vunpack.c.l.b16 %v4846
        %v5014 = vunpack.c.h.b16 %v4846
        %v5015 = vunpack.c.l.b16 %v4847
        %v5016 = vunpack.c.h.b16 %v4847
        %v5017 = vunpack.c.l.b16 %v4848
        %v5018 = vunpack.c.h.b16 %v4848
        %v5019 = vunpack.c.l.b16 %v4849
        %v5020 = vunpack.c.h.b16 %v4849
        %v5021 = vunpack.c.l.b16 %v4850
        %v5022 = vunpack.c.h.b16 %v4850
        %v5023 = vunpack.c.l.b16 %v4851
        %v5024 = vunpack.c.h.b16 %v4851
        %v5025 = vunpack.c.l.b16 %v4852
        %v5026 = vunpack.c.h.b16 %v4852
        %v5027 = vunpack.c.l.b16 %v4853
        %v5028 = vunpack.c.h.b16 %v4853
        %v5029 = vunpack.c.l.b16 %v4854
        %v5030 = vunpack.c.h.b16 %v4854
        %v5031 = vunpack.c.l.b16 %v4855
        %v5032 = vunpack.c.h.b16 %v4855
        %v5033 = vunpack.c.l.b16 %v4856
        %v5034 = vunpack.c.h.b16 %v4856
        %v5035 = vunpack.c.l.b16 %v4857
        %v5036 = vunpack.c.h.b16 %v4857
        %v5037 = vunpack.c.l.b16 %v4858
        %v5038 = vunpack.c.h.b16 %v4858
        %v5039 = vunpack.c.l.b16 %v4859
        %v5040 = vunpack.c.h.b16 %v4859
        %v5041 = vunpack.c.l.b16 %v4860
        %v5042 = vunpack.c.h.b16 %v4860
        %v5043 = vunpack.c.l.b16 %v4861
        %v5044 = vunpack.c.h.b16 %v4861
        %v5045 = vunpack.c.l.b16 %v4862
        %v5046 = vunpack.c.h.b16 %v4862
        %v5047 = vunpack.c.l.b16 %v4863
        %v5048 = vunpack.c.h.b16 %v4863
        %v5049 = vunpack.c.l.b16 %v4864
        %v5050 = vunpack.c.h.b16 %v4864
        %v5051 = vunpack.c.l.b16 %v4865
        %v5052 = vunpack.c.h.b16 %v4865
        %v5053 = vunpack.c.l.b16 %v4866
        %v5054 = vunpack.c.h.b16 %v4866
        %v5055 = vunpack.c.l.b16 %v4867
        %v5056 = vunpack.c.h.b16 %v4867
        %v5057 = vunpack.c.l.b16 %v4868
        %v5058 = vunpack.c.h.b16 %v4868
        %v5059 = vunpack.c.l.b16 %v4869
        %v5060 = vunpack.c.h.b16 %v4869
        %v5061 = vunpack.c.l.b16 %v4870
        %v5062 = vunpack.c.h.b16 %v4870
        %v5063 = vpack.c.b16 %v4939, %v4935
        %v5064 = vpack.c.b16 %v4940, %v4936
        %v5065 = vpack.c.b16 %v4941, %v4937
        %v5066 = vpack.c.b16 %v4942, %v4938
        %v5067 = vpack.c.b16 %v4947, %v4943
        %v5068 = vpack.c.b16 %v4948, %v4944
        %v5069 = vpack.c.b16 %v4949, %v4945
        %v5070 = vpack.c.b16 %v4950, %v4946
        %v5071 = vpack.c.b16 %v4955, %v4951
        %v5072 = vpack.c.b16 %v4956, %v4952
        %v5073 = vpack.c.b16 %v4957, %v4953
        %v5074 = vpack.c.b16 %v4958, %v4954
        %v5075 = vpack.c.b16 %v4963, %v4959
        %v5076 = vpack.c.b16 %v4964, %v4960
        %v5077 = vpack.c.b16 %v4965, %v4961
        %v5078 = vpack.c.b16 %v4966, %v4962
        %v5079 = vpack.c.b16 %v4971, %v4967
        %v5080 = vpack.c.b16 %v4972, %v4968
        %v5081 = vpack.c.b16 %v4973, %v4969
        %v5082 = vpack.c.b16 %v4974, %v4970
        %v5083 = vpack.c.b16 %v4979, %v4975
        %v5084 = vpack.c.b16 %v4980, %v4976
        %v5085 = vpack.c.b16 %v4981, %v4977
        %v5086 = vpack.c.b16 %v4982, %v4978
        %v5087 = vpack.c.b16 %v4987, %v4983
        %v5088 = vpack.c.b16 %v4988, %v4984
        %v5089 = vpack.c.b16 %v4989, %v4985
        %v5090 = vpack.c.b16 %v4990, %v4986
        %v5091 = vpack.c.b16 %v4995, %v4991
        %v5092 = vpack.c.b16 %v4996, %v4992
        %v5093 = vpack.c.b16 %v4997, %v4993
        %v5094 = vpack.c.b16 %v4998, %v4994
        %v5095 = vpack.c.b16 %v5003, %v4999
        %v5096 = vpack.c.b16 %v5004, %v5000
        %v5097 = vpack.c.b16 %v5005, %v5001
        %v5098 = vpack.c.b16 %v5006, %v5002
        %v5099 = vpack.c.b16 %v5011, %v5007
        %v5100 = vpack.c.b16 %v5012, %v5008
        %v5101 = vpack.c.b16 %v5013, %v5009
        %v5102 = vpack.c.b16 %v5014, %v5010
        %v5103 = vpack.c.b16 %v5019, %v5015
        %v5104 = vpack.c.b16 %v5020, %v5016
        %v5105 = vpack.c.b16 %v5021, %v5017
        %v5106 = vpack.c.b16 %v5022, %v5018
        %v5107 = vpack.c.b16 %v5027, %v5023
        %v5108 = vpack.c.b16 %v5028, %v5024
        %v5109 = vpack.c.b16 %v5029, %v5025
        %v5110 = vpack.c.b16 %v5030, %v5026
        %v5111 = vpack.c.b16 %v5035, %v5031
        %v5112 = vpack.c.b16 %v5036, %v5032
        %v5113 = vpack.c.b16 %v5037, %v5033
        %v5114 = vpack.c.b16 %v5038, %v5034
        %v5115 = vpack.c.b16 %v5043, %v5039
        %v5116 = vpack.c.b16 %v5044, %v5040
        %v5117 = vpack.c.b16 %v5045, %v5041
        %v5118 = vpack.c.b16 %v5046, %v5042
        %v5119 = vpack.c.b16 %v5051, %v5047
        %v5120 = vpack.c.b16 %v5052, %v5048
        %v5121 = vpack.c.b16 %v5053, %v5049
        %v5122 = vpack.c.b16 %v5054, %v5050
        %v5123 = vpack.c.b16 %v5059, %v5055
        %v5124 = vpack.c.b16 %v5060, %v5056
        %v5125 = vpack.c.b16 %v5061, %v5057
        %v5126 = vpack.c.b16 %v5062, %v5058
        %5191 = vmatpush.bf16.msra.mxu0 %v5091
        %5192 = vmatpush.bf16.msra.mxu0 %v5087
        %5193 = vmatpush.bf16.msra.mxu0 %v5083
        %5194 = vmatpush.bf16.msra.mxu0 %v5079
        %5195 = vmatpush.bf16.msra.mxu0 %v5075
        %5196 = vmatpush.bf16.msra.mxu0 %v5071
        %5197 = vmatpush.bf16.msra.mxu0 %v5067
        %5198 = vmatpush.bf16.msra.mxu0 %v5063
        %5199 = vmatmul.bf16.gmra.mxu0 %v4804
        %v5200 = vpop.f32.mrf.mxu0
        %v5201 = vadd.f32 0.0, %v5200
        %v5202 = vpop.f32.mrf.mxu0
        %5203 = vdwg.mxu0
        %5204 = vmatpush.bf16.msra.mxu0 %v5123
        %5205 = vmatpush.bf16.msra.mxu0 %v5119
        %5206 = vmatpush.bf16.msra.mxu0 %v5115
        %5207 = vmatpush.bf16.msra.mxu0 %v5111
        %5208 = vmatpush.bf16.msra.mxu0 %v5107
        %5209 = vmatpush.bf16.msra.mxu0 %v5103
        %5210 = vmatpush.bf16.msra.mxu0 %v5099
        %5211 = vmatpush.bf16.msra.mxu0 %v5095
        %5212 = vmatmul.bf16.gmra.mxu0 %v4805
        %v5213 = vpop.f32.mrf.mxu0
        %v5214 = vadd.f32 %v5201, %v5213
        %v5215 = vpop.f32.mrf.mxu0
        %5216 = vdwg.mxu0
        %5217 = vmatpush.bf16.msra.mxu0 %v5092
        %5218 = vmatpush.bf16.msra.mxu0 %v5088
        %5219 = vmatpush.bf16.msra.mxu0 %v5084
        %5220 = vmatpush.bf16.msra.mxu0 %v5080
        %5221 = vmatpush.bf16.msra.mxu0 %v5076
        %5222 = vmatpush.bf16.msra.mxu0 %v5072
        %5223 = vmatpush.bf16.msra.mxu0 %v5068
        %5224 = vmatpush.bf16.msra.mxu0 %v5064
        %5225 = vmatmul.bf16.gmra.mxu0 %v4804
        %v5226 = vpop.f32.mrf.mxu0
        %v5227 = vadd.f32 0.0, %v5226
        %v5228 = vpop.f32.mrf.mxu0
        %5229 = vdwg.mxu0
        %5230 = vmatpush.bf16.msra.mxu0 %v5124
        %5231 = vmatpush.bf16.msra.mxu0 %v5120
        %5232 = vmatpush.bf16.msra.mxu0 %v5116
        %5233 = vmatpush.bf16.msra.mxu0 %v5112
        %5234 = vmatpush.bf16.msra.mxu0 %v5108
        %5235 = vmatpush.bf16.msra.mxu0 %v5104
        %5236 = vmatpush.bf16.msra.mxu0 %v5100
        %5237 = vmatpush.bf16.msra.mxu0 %v5096
        %5238 = vmatmul.bf16.gmra.mxu0 %v4805
        %v5239 = vpop.f32.mrf.mxu0
        %v5240 = vadd.f32 %v5227, %v5239
        %v5241 = vpop.f32.mrf.mxu0
        %5242 = vdwg.mxu0
        %5243 = vmatpush.bf16.msra.mxu0 %v5093
        %5244 = vmatpush.bf16.msra.mxu0 %v5089
        %5245 = vmatpush.bf16.msra.mxu0 %v5085
        %5246 = vmatpush.bf16.msra.mxu0 %v5081
        %5247 = vmatpush.bf16.msra.mxu0 %v5077
        %5248 = vmatpush.bf16.msra.mxu0 %v5073
        %5249 = vmatpush.bf16.msra.mxu0 %v5069
        %5250 = vmatpush.bf16.msra.mxu0 %v5065
        %5251 = vmatmul.bf16.gmra.mxu0 %v4804
        %v5252 = vpop.f32.mrf.mxu0
        %v5253 = vadd.f32 0.0, %v5252
        %v5254 = vpop.f32.mrf.mxu0
        %5255 = vdwg.mxu0
        %5256 = vmatpush.bf16.msra.mxu0 %v5125
        %5257 = vmatpush.bf16.msra.mxu0 %v5121
        %5258 = vmatpush.bf16.msra.mxu0 %v5117
        %5259 = vmatpush.bf16.msra.mxu0 %v5113
        %5260 = vmatpush.bf16.msra.mxu0 %v5109
        %5261 = vmatpush.bf16.msra.mxu0 %v5105
        %5262 = vmatpush.bf16.msra.mxu0 %v5101
        %5263 = vmatpush.bf16.msra.mxu0 %v5097
        %5264 = vmatmul.bf16.gmra.mxu0 %v4805
        %v5265 = vpop.f32.mrf.mxu0
        %v5266 = vadd.f32 %v5253, %v5265
        %v5267 = vpop.f32.mrf.mxu0
        %5268 = vdwg.mxu0
        %5269 = vmatpush.bf16.msra.mxu0 %v5094
        %5270 = vmatpush.bf16.msra.mxu0 %v5090
        %5271 = vmatpush.bf16.msra.mxu0 %v5086
        %5272 = vmatpush.bf16.msra.mxu0 %v5082
        %5273 = vmatpush.bf16.msra.mxu0 %v5078
        %5274 = vmatpush.bf16.msra.mxu0 %v5074
        %5275 = vmatpush.bf16.msra.mxu0 %v5070
        %5276 = vmatpush.bf16.msra.mxu0 %v5066
        %5277 = vmatmul.bf16.gmra.mxu0 %v4804
        %v5278 = vpop.f32.mrf.mxu0
        %v5279 = vadd.f32 0.0, %v5278
        %v5280 = vpop.f32.mrf.mxu0
        %5281 = vdwg.mxu0
        %5282 = vmatpush.bf16.msra.mxu0 %v5126
        %5283 = vmatpush.bf16.msra.mxu0 %v5122
        %5284 = vmatpush.bf16.msra.mxu0 %v5118
        %5285 = vmatpush.bf16.msra.mxu0 %v5114
        %5286 = vmatpush.bf16.msra.mxu0 %v5110
        %5287 = vmatpush.bf16.msra.mxu0 %v5106
        %5288 = vmatpush.bf16.msra.mxu0 %v5102
        %5289 = vmatpush.bf16.msra.mxu0 %v5098
        %5290 = vmatmul.bf16.gmra.mxu0 %v4805
        %v5291 = vpop.f32.mrf.mxu0
        %v5292 = vadd.f32 %v5279, %v5291
        %v5293 = vpop.f32.mrf.mxu0
        %5294 = vdwg.mxu0
        %v5359 = vunpack.c.l.b16 %v4740
        %v5360 = vunpack.c.h.b16 %v4740
        %v5361 = vunpack.c.l.b16 %v4741
        %v5362 = vunpack.c.h.b16 %v4741
        %v5363 = vunpack.c.l.b16 %v4742
        %v5364 = vunpack.c.h.b16 %v4742
        %v5365 = vunpack.c.l.b16 %v4743
        %v5366 = vunpack.c.h.b16 %v4743
        %v5367 = vunpack.c.l.b16 %v4744
        %v5368 = vunpack.c.h.b16 %v4744
        %v5369 = vunpack.c.l.b16 %v4745
        %v5370 = vunpack.c.h.b16 %v4745
        %v5371 = vunpack.c.l.b16 %v4746
        %v5372 = vunpack.c.h.b16 %v4746
        %v5373 = vunpack.c.l.b16 %v4747
        %v5374 = vunpack.c.h.b16 %v4747
        %v5375 = vunpack.c.l.b16 %v4748
        %v5376 = vunpack.c.h.b16 %v4748
        %v5377 = vunpack.c.l.b16 %v4749
        %v5378 = vunpack.c.h.b16 %v4749
        %v5379 = vunpack.c.l.b16 %v4750
        %v5380 = vunpack.c.h.b16 %v4750
        %v5381 = vunpack.c.l.b16 %v4751
        %v5382 = vunpack.c.h.b16 %v4751
        %v5383 = vunpack.c.l.b16 %v4752
        %v5384 = vunpack.c.h.b16 %v4752
        %v5385 = vunpack.c.l.b16 %v4753
        %v5386 = vunpack.c.h.b16 %v4753
        %v5387 = vunpack.c.l.b16 %v4754
        %v5388 = vunpack.c.h.b16 %v4754
        %v5389 = vunpack.c.l.b16 %v4755
        %v5390 = vunpack.c.h.b16 %v4755
        %v5391 = vunpack.c.l.b16 %v4756
        %v5392 = vunpack.c.h.b16 %v4756
        %v5393 = vunpack.c.l.b16 %v4757
        %v5394 = vunpack.c.h.b16 %v4757
        %v5395 = vunpack.c.l.b16 %v4758
        %v5396 = vunpack.c.h.b16 %v4758
        %v5397 = vunpack.c.l.b16 %v4759
        %v5398 = vunpack.c.h.b16 %v4759
        %v5399 = vunpack.c.l.b16 %v4760
        %v5400 = vunpack.c.h.b16 %v4760
        %v5401 = vunpack.c.l.b16 %v4761
        %v5402 = vunpack.c.h.b16 %v4761
        %v5403 = vunpack.c.l.b16 %v4762
        %v5404 = vunpack.c.h.b16 %v4762
        %v5405 = vunpack.c.l.b16 %v4763
        %v5406 = vunpack.c.h.b16 %v4763
        %v5407 = vunpack.c.l.b16 %v4764
        %v5408 = vunpack.c.h.b16 %v4764
        %v5409 = vunpack.c.l.b16 %v4765
        %v5410 = vunpack.c.h.b16 %v4765
        %v5411 = vunpack.c.l.b16 %v4766
        %v5412 = vunpack.c.h.b16 %v4766
        %v5413 = vunpack.c.l.b16 %v4767
        %v5414 = vunpack.c.h.b16 %v4767
        %v5415 = vunpack.c.l.b16 %v4768
        %v5416 = vunpack.c.h.b16 %v4768
        %v5417 = vunpack.c.l.b16 %v4769
        %v5418 = vunpack.c.h.b16 %v4769
        %v5419 = vunpack.c.l.b16 %v4770
        %v5420 = vunpack.c.h.b16 %v4770
        %v5421 = vunpack.c.l.b16 %v4771
        %v5422 = vunpack.c.h.b16 %v4771
        %v5423 = vunpack.c.l.b16 %v4772
        %v5424 = vunpack.c.h.b16 %v4772
        %v5425 = vunpack.c.l.b16 %v4773
        %v5426 = vunpack.c.h.b16 %v4773
        %v5427 = vunpack.c.l.b16 %v4774
        %v5428 = vunpack.c.h.b16 %v4774
        %v5429 = vunpack.c.l.b16 %v4775
        %v5430 = vunpack.c.h.b16 %v4775
        %v5431 = vunpack.c.l.b16 %v4776
        %v5432 = vunpack.c.h.b16 %v4776
        %v5433 = vunpack.c.l.b16 %v4777
        %v5434 = vunpack.c.h.b16 %v4777
        %v5435 = vunpack.c.l.b16 %v4778
        %v5436 = vunpack.c.h.b16 %v4778
        %v5437 = vunpack.c.l.b16 %v4779
        %v5438 = vunpack.c.h.b16 %v4779
        %v5439 = vunpack.c.l.b16 %v4780
        %v5440 = vunpack.c.h.b16 %v4780
        %v5441 = vunpack.c.l.b16 %v4781
        %v5442 = vunpack.c.h.b16 %v4781
        %v5443 = vunpack.c.l.b16 %v4782
        %v5444 = vunpack.c.h.b16 %v4782
        %v5445 = vunpack.c.l.b16 %v4783
        %v5446 = vunpack.c.h.b16 %v4783
        %v5447 = vunpack.c.l.b16 %v4784
        %v5448 = vunpack.c.h.b16 %v4784
        %v5449 = vunpack.c.l.b16 %v4785
        %v5450 = vunpack.c.h.b16 %v4785
        %v5451 = vunpack.c.l.b16 %v4786
        %v5452 = vunpack.c.h.b16 %v4786
        %v5453 = vunpack.c.l.b16 %v4787
        %v5454 = vunpack.c.h.b16 %v4787
        %v5455 = vunpack.c.l.b16 %v4788
        %v5456 = vunpack.c.h.b16 %v4788
        %v5457 = vunpack.c.l.b16 %v4789
        %v5458 = vunpack.c.h.b16 %v4789
        %v5459 = vunpack.c.l.b16 %v4790
        %v5460 = vunpack.c.h.b16 %v4790
        %v5461 = vunpack.c.l.b16 %v4791
        %v5462 = vunpack.c.h.b16 %v4791
        %v5463 = vunpack.c.l.b16 %v4792
        %v5464 = vunpack.c.h.b16 %v4792
        %v5465 = vunpack.c.l.b16 %v4793
        %v5466 = vunpack.c.h.b16 %v4793
        %v5467 = vunpack.c.l.b16 %v4794
        %v5468 = vunpack.c.h.b16 %v4794
        %v5469 = vunpack.c.l.b16 %v4795
        %v5470 = vunpack.c.h.b16 %v4795
        %v5471 = vunpack.c.l.b16 %v4796
        %v5472 = vunpack.c.h.b16 %v4796
        %v5473 = vunpack.c.l.b16 %v4797
        %v5474 = vunpack.c.h.b16 %v4797
        %v5475 = vunpack.c.l.b16 %v4798
        %v5476 = vunpack.c.h.b16 %v4798
        %v5477 = vunpack.c.l.b16 %v4799
        %v5478 = vunpack.c.h.b16 %v4799
        %v5479 = vunpack.c.l.b16 %v4800
        %v5480 = vunpack.c.h.b16 %v4800
        %v5481 = vunpack.c.l.b16 %v4801
        %v5482 = vunpack.c.h.b16 %v4801
        %v5483 = vunpack.c.l.b16 %v4802
        %v5484 = vunpack.c.h.b16 %v4802
        %v5485 = vunpack.c.l.b16 %v4803
        %v5486 = vunpack.c.h.b16 %v4803
        %v5487 = vpack.c.b16 %v5363, %v5359
        %v5488 = vpack.c.b16 %v5364, %v5360
        %v5489 = vpack.c.b16 %v5365, %v5361
        %v5490 = vpack.c.b16 %v5366, %v5362
        %v5491 = vpack.c.b16 %v5371, %v5367
        %v5492 = vpack.c.b16 %v5372, %v5368
        %v5493 = vpack.c.b16 %v5373, %v5369
        %v5494 = vpack.c.b16 %v5374, %v5370
        %v5495 = vpack.c.b16 %v5379, %v5375
        %v5496 = vpack.c.b16 %v5380, %v5376
        %v5497 = vpack.c.b16 %v5381, %v5377
        %v5498 = vpack.c.b16 %v5382, %v5378
        %v5499 = vpack.c.b16 %v5387, %v5383
        %v5500 = vpack.c.b16 %v5388, %v5384
        %v5501 = vpack.c.b16 %v5389, %v5385
        %v5502 = vpack.c.b16 %v5390, %v5386
        %v5503 = vpack.c.b16 %v5395, %v5391
        %v5504 = vpack.c.b16 %v5396, %v5392
        %v5505 = vpack.c.b16 %v5397, %v5393
        %v5506 = vpack.c.b16 %v5398, %v5394
        %v5507 = vpack.c.b16 %v5403, %v5399
        %v5508 = vpack.c.b16 %v5404, %v5400
        %v5509 = vpack.c.b16 %v5405, %v5401
        %v5510 = vpack.c.b16 %v5406, %v5402
        %v5511 = vpack.c.b16 %v5411, %v5407
        %v5512 = vpack.c.b16 %v5412, %v5408
        %v5513 = vpack.c.b16 %v5413, %v5409
        %v5514 = vpack.c.b16 %v5414, %v5410
        %v5515 = vpack.c.b16 %v5419, %v5415
        %v5516 = vpack.c.b16 %v5420, %v5416
        %v5517 = vpack.c.b16 %v5421, %v5417
        %v5518 = vpack.c.b16 %v5422, %v5418
        %v5519 = vpack.c.b16 %v5427, %v5423
        %v5520 = vpack.c.b16 %v5428, %v5424
        %v5521 = vpack.c.b16 %v5429, %v5425
        %v5522 = vpack.c.b16 %v5430, %v5426
        %v5523 = vpack.c.b16 %v5435, %v5431
        %v5524 = vpack.c.b16 %v5436, %v5432
        %v5525 = vpack.c.b16 %v5437, %v5433
        %v5526 = vpack.c.b16 %v5438, %v5434
        %v5527 = vpack.c.b16 %v5443, %v5439
        %v5528 = vpack.c.b16 %v5444, %v5440
        %v5529 = vpack.c.b16 %v5445, %v5441
        %v5530 = vpack.c.b16 %v5446, %v5442
        %v5531 = vpack.c.b16 %v5451, %v5447
        %v5532 = vpack.c.b16 %v5452, %v5448
        %v5533 = vpack.c.b16 %v5453, %v5449
        %v5534 = vpack.c.b16 %v5454, %v5450
        %v5535 = vpack.c.b16 %v5459, %v5455
        %v5536 = vpack.c.b16 %v5460, %v5456
        %v5537 = vpack.c.b16 %v5461, %v5457
        %v5538 = vpack.c.b16 %v5462, %v5458
        %v5539 = vpack.c.b16 %v5467, %v5463
        %v5540 = vpack.c.b16 %v5468, %v5464
        %v5541 = vpack.c.b16 %v5469, %v5465
        %v5542 = vpack.c.b16 %v5470, %v5466
        %v5543 = vpack.c.b16 %v5475, %v5471
        %v5544 = vpack.c.b16 %v5476, %v5472
        %v5545 = vpack.c.b16 %v5477, %v5473
        %v5546 = vpack.c.b16 %v5478, %v5474
        %v5547 = vpack.c.b16 %v5483, %v5479
        %v5548 = vpack.c.b16 %v5484, %v5480
        %v5549 = vpack.c.b16 %v5485, %v5481
        %v5550 = vpack.c.b16 %v5486, %v5482
        %5615 = vmatpush.bf16.msra.mxu0 %v5515
        %5616 = vmatpush.bf16.msra.mxu0 %v5511
        %5617 = vmatpush.bf16.msra.mxu0 %v5507
        %5618 = vmatpush.bf16.msra.mxu0 %v5503
        %5619 = vmatpush.bf16.msra.mxu0 %v5499
        %5620 = vmatpush.bf16.msra.mxu0 %v5495
        %5621 = vmatpush.bf16.msra.mxu0 %v5491
        %5622 = vmatpush.bf16.msra.mxu0 %v5487
        %5623 = vmatmul.bf16.gmra.mxu0 %v4738
        %v5624 = vpop.f32.mrf.mxu0
        %v5625 = vadd.f32 %v5214, %v5624
        %v5626 = vpop.f32.mrf.mxu0
        %5627 = vdwg.mxu0
        %5628 = vmatpush.bf16.msra.mxu0 %v5547
        %5629 = vmatpush.bf16.msra.mxu0 %v5543
        %5630 = vmatpush.bf16.msra.mxu0 %v5539
        %5631 = vmatpush.bf16.msra.mxu0 %v5535
        %5632 = vmatpush.bf16.msra.mxu0 %v5531
        %5633 = vmatpush.bf16.msra.mxu0 %v5527
        %5634 = vmatpush.bf16.msra.mxu0 %v5523
        %5635 = vmatpush.bf16.msra.mxu0 %v5519
        %5636 = vmatmul.bf16.gmra.mxu0 %v4739
        %v5637 = vpop.f32.mrf.mxu0
        %v5638 = vadd.f32 %v5625, %v5637
        %v5639 = vpop.f32.mrf.mxu0
        %5640 = vdwg.mxu0
        %5641 = vmatpush.bf16.msra.mxu0 %v5516
        %5642 = vmatpush.bf16.msra.mxu0 %v5512
        %5643 = vmatpush.bf16.msra.mxu0 %v5508
        %5644 = vmatpush.bf16.msra.mxu0 %v5504
        %5645 = vmatpush.bf16.msra.mxu0 %v5500
        %5646 = vmatpush.bf16.msra.mxu0 %v5496
        %5647 = vmatpush.bf16.msra.mxu0 %v5492
        %5648 = vmatpush.bf16.msra.mxu0 %v5488
        %5649 = vmatmul.bf16.gmra.mxu0 %v4738
        %v5650 = vpop.f32.mrf.mxu0
        %v5651 = vadd.f32 %v5240, %v5650
        %v5652 = vpop.f32.mrf.mxu0
        %5653 = vdwg.mxu0
        %5654 = vmatpush.bf16.msra.mxu0 %v5548
        %5655 = vmatpush.bf16.msra.mxu0 %v5544
        %5656 = vmatpush.bf16.msra.mxu0 %v5540
        %5657 = vmatpush.bf16.msra.mxu0 %v5536
        %5658 = vmatpush.bf16.msra.mxu0 %v5532
        %5659 = vmatpush.bf16.msra.mxu0 %v5528
        %5660 = vmatpush.bf16.msra.mxu0 %v5524
        %5661 = vmatpush.bf16.msra.mxu0 %v5520
        %5662 = vmatmul.bf16.gmra.mxu0 %v4739
        %v5663 = vpop.f32.mrf.mxu0
        %v5664 = vadd.f32 %v5651, %v5663
        %v5665 = vpop.f32.mrf.mxu0
        %5666 = vdwg.mxu0
        %5667 = vmatpush.bf16.msra.mxu0 %v5517
        %5668 = vmatpush.bf16.msra.mxu0 %v5513
        %5669 = vmatpush.bf16.msra.mxu0 %v5509
        %5670 = vmatpush.bf16.msra.mxu0 %v5505
        %5671 = vmatpush.bf16.msra.mxu0 %v5501
        %5672 = vmatpush.bf16.msra.mxu0 %v5497
        %5673 = vmatpush.bf16.msra.mxu0 %v5493
        %5674 = vmatpush.bf16.msra.mxu0 %v5489
        %5675 = vmatmul.bf16.gmra.mxu0 %v4738
        %v5676 = vpop.f32.mrf.mxu0
        %v5677 = vadd.f32 %v5266, %v5676
        %v5678 = vpop.f32.mrf.mxu0
        %5679 = vdwg.mxu0
        %5680 = vmatpush.bf16.msra.mxu0 %v5549
        %5681 = vmatpush.bf16.msra.mxu0 %v5545
        %5682 = vmatpush.bf16.msra.mxu0 %v5541
        %5683 = vmatpush.bf16.msra.mxu0 %v5537
        %5684 = vmatpush.bf16.msra.mxu0 %v5533
        %5685 = vmatpush.bf16.msra.mxu0 %v5529
        %5686 = vmatpush.bf16.msra.mxu0 %v5525
        %5687 = vmatpush.bf16.msra.mxu0 %v5521
        %5688 = vmatmul.bf16.gmra.mxu0 %v4739
        %v5689 = vpop.f32.mrf.mxu0
        %v5690 = vadd.f32 %v5677, %v5689
        %v5691 = vpop.f32.mrf.mxu0
        %5692 = vdwg.mxu0
        %5693 = vmatpush.bf16.msra.mxu0 %v5518
        %5694 = vmatpush.bf16.msra.mxu0 %v5514
        %5695 = vmatpush.bf16.msra.mxu0 %v5510
        %5696 = vmatpush.bf16.msra.mxu0 %v5506
        %5697 = vmatpush.bf16.msra.mxu0 %v5502
        %5698 = vmatpush.bf16.msra.mxu0 %v5498
        %5699 = vmatpush.bf16.msra.mxu0 %v5494
        %5700 = vmatpush.bf16.msra.mxu0 %v5490
        %5701 = vmatmul.bf16.gmra.mxu0 %v4738
        %v5702 = vpop.f32.mrf.mxu0
        %v5703 = vadd.f32 %v5292, %v5702
        %v5704 = vpop.f32.mrf.mxu0
        %5705 = vdwg.mxu0
        %5706 = vmatpush.bf16.msra.mxu0 %v5550
        %5707 = vmatpush.bf16.msra.mxu0 %v5546
        %5708 = vmatpush.bf16.msra.mxu0 %v5542
        %5709 = vmatpush.bf16.msra.mxu0 %v5538
        %5710 = vmatpush.bf16.msra.mxu0 %v5534
        %5711 = vmatpush.bf16.msra.mxu0 %v5530
        %5712 = vmatpush.bf16.msra.mxu0 %v5526
        %5713 = vmatpush.bf16.msra.mxu0 %v5522
        %5714 = vmatmul.bf16.gmra.mxu0 %v4739
        %v5715 = vpop.f32.mrf.mxu0
        %v5716 = vadd.f32 %v5703, %v5715
        %v5717 = vpop.f32.mrf.mxu0
        %5718 = vdwg.mxu0
        %v5719 = vpack.c.bf16 %v4734, %v4734
        %v5720 = vpack.c.bf16 %v4735, %v4735
        %s5721 = scalar_lea.vmem [#allocation11], 1024
        %v5722 = vld [vmem:[%s5721] sm:$0xff]
        %v5723 = vld [vmem:[%s5721 + $0x8] sm:$0xff]
        %v5724 = vld [vmem:[%s5721 + $0x10] sm:$0xff]
        %v5725 = vld [vmem:[%s5721 + $0x18] sm:$0xff]
        %v5726 = vld [vmem:[%s5721 + $0x20] sm:$0xff]
        %v5727 = vld [vmem:[%s5721 + $0x28] sm:$0xff]
        %v5728 = vld [vmem:[%s5721 + $0x30] sm:$0xff]
        %v5729 = vld [vmem:[%s5721 + $0x38] sm:$0xff]
        %v5730 = vld [vmem:[%s5721 + $0x40] sm:$0xff]
        %v5731 = vld [vmem:[%s5721 + $0x48] sm:$0xff]
        %v5732 = vld [vmem:[%s5721 + $0x50] sm:$0xff]
        %v5733 = vld [vmem:[%s5721 + $0x58] sm:$0xff]
        %v5734 = vld [vmem:[%s5721 + $0x60] sm:$0xff]
        %v5735 = vld [vmem:[%s5721 + $0x68] sm:$0xff]
        %v5736 = vld [vmem:[%s5721 + $0x70] sm:$0xff]
        %v5737 = vld [vmem:[%s5721 + $0x78] sm:$0xff]
        %v5738 = vld [vmem:[%s5721 + $0x80] sm:$0xff]
        %v5739 = vld [vmem:[%s5721 + $0x88] sm:$0xff]
        %v5740 = vld [vmem:[%s5721 + $0x90] sm:$0xff]
        %v5741 = vld [vmem:[%s5721 + $0x98] sm:$0xff]
        %v5742 = vld [vmem:[%s5721 + $0xa0] sm:$0xff]
        %v5743 = vld [vmem:[%s5721 + $0xa8] sm:$0xff]
        %v5744 = vld [vmem:[%s5721 + $0xb0] sm:$0xff]
        %v5745 = vld [vmem:[%s5721 + $0xb8] sm:$0xff]
        %v5746 = vld [vmem:[%s5721 + $0xc0] sm:$0xff]
        %v5747 = vld [vmem:[%s5721 + $0xc8] sm:$0xff]
        %v5748 = vld [vmem:[%s5721 + $0xd0] sm:$0xff]
        %v5749 = vld [vmem:[%s5721 + $0xd8] sm:$0xff]
        %v5750 = vld [vmem:[%s5721 + $0xe0] sm:$0xff]
        %v5751 = vld [vmem:[%s5721 + $0xe8] sm:$0xff]
        %v5752 = vld [vmem:[%s5721 + $0xf0] sm:$0xff]
        %v5753 = vld [vmem:[%s5721 + $0xf8] sm:$0xff]
        %v5754 = vld [vmem:[%s5721 + $0x100] sm:$0xff]
        %v5755 = vld [vmem:[%s5721 + $0x108] sm:$0xff]
        %v5756 = vld [vmem:[%s5721 + $0x110] sm:$0xff]
        %v5757 = vld [vmem:[%s5721 + $0x118] sm:$0xff]
        %v5758 = vld [vmem:[%s5721 + $0x120] sm:$0xff]
        %v5759 = vld [vmem:[%s5721 + $0x128] sm:$0xff]
        %v5760 = vld [vmem:[%s5721 + $0x130] sm:$0xff]
        %v5761 = vld [vmem:[%s5721 + $0x138] sm:$0xff]
        %v5762 = vld [vmem:[%s5721 + $0x140] sm:$0xff]
        %v5763 = vld [vmem:[%s5721 + $0x148] sm:$0xff]
        %v5764 = vld [vmem:[%s5721 + $0x150] sm:$0xff]
        %v5765 = vld [vmem:[%s5721 + $0x158] sm:$0xff]
        %v5766 = vld [vmem:[%s5721 + $0x160] sm:$0xff]
        %v5767 = vld [vmem:[%s5721 + $0x168] sm:$0xff]
        %v5768 = vld [vmem:[%s5721 + $0x170] sm:$0xff]
        %v5769 = vld [vmem:[%s5721 + $0x178] sm:$0xff]
        %v5770 = vld [vmem:[%s5721 + $0x180] sm:$0xff]
        %v5771 = vld [vmem:[%s5721 + $0x188] sm:$0xff]
        %v5772 = vld [vmem:[%s5721 + $0x190] sm:$0xff]
        %v5773 = vld [vmem:[%s5721 + $0x198] sm:$0xff]
        %v5774 = vld [vmem:[%s5721 + $0x1a0] sm:$0xff]
        %v5775 = vld [vmem:[%s5721 + $0x1a8] sm:$0xff]
        %v5776 = vld [vmem:[%s5721 + $0x1b0] sm:$0xff]
        %v5777 = vld [vmem:[%s5721 + $0x1b8] sm:$0xff]
        %v5778 = vld [vmem:[%s5721 + $0x1c0] sm:$0xff]
        %v5779 = vld [vmem:[%s5721 + $0x1c8] sm:$0xff]
        %v5780 = vld [vmem:[%s5721 + $0x1d0] sm:$0xff]
        %v5781 = vld [vmem:[%s5721 + $0x1d8] sm:$0xff]
        %v5782 = vld [vmem:[%s5721 + $0x1e0] sm:$0xff]
        %v5783 = vld [vmem:[%s5721 + $0x1e8] sm:$0xff]
        %v5784 = vld [vmem:[%s5721 + $0x1f0] sm:$0xff]
        %v5785 = vld [vmem:[%s5721 + $0x1f8] sm:$0xff]
        %v5850 = vunpack.c.l.b16 %v5722
        %v5851 = vunpack.c.h.b16 %v5722
        %v5852 = vunpack.c.l.b16 %v5723
        %v5853 = vunpack.c.h.b16 %v5723
        %v5854 = vunpack.c.l.b16 %v5724
        %v5855 = vunpack.c.h.b16 %v5724
        %v5856 = vunpack.c.l.b16 %v5725
        %v5857 = vunpack.c.h.b16 %v5725
        %v5858 = vunpack.c.l.b16 %v5726
        %v5859 = vunpack.c.h.b16 %v5726
        %v5860 = vunpack.c.l.b16 %v5727
        %v5861 = vunpack.c.h.b16 %v5727
        %v5862 = vunpack.c.l.b16 %v5728
        %v5863 = vunpack.c.h.b16 %v5728
        %v5864 = vunpack.c.l.b16 %v5729
        %v5865 = vunpack.c.h.b16 %v5729
        %v5866 = vunpack.c.l.b16 %v5730
        %v5867 = vunpack.c.h.b16 %v5730
        %v5868 = vunpack.c.l.b16 %v5731
        %v5869 = vunpack.c.h.b16 %v5731
        %v5870 = vunpack.c.l.b16 %v5732
        %v5871 = vunpack.c.h.b16 %v5732
        %v5872 = vunpack.c.l.b16 %v5733
        %v5873 = vunpack.c.h.b16 %v5733
        %v5874 = vunpack.c.l.b16 %v5734
        %v5875 = vunpack.c.h.b16 %v5734
        %v5876 = vunpack.c.l.b16 %v5735
        %v5877 = vunpack.c.h.b16 %v5735
        %v5878 = vunpack.c.l.b16 %v5736
        %v5879 = vunpack.c.h.b16 %v5736
        %v5880 = vunpack.c.l.b16 %v5737
        %v5881 = vunpack.c.h.b16 %v5737
        %v5882 = vunpack.c.l.b16 %v5738
        %v5883 = vunpack.c.h.b16 %v5738
        %v5884 = vunpack.c.l.b16 %v5739
        %v5885 = vunpack.c.h.b16 %v5739
        %v5886 = vunpack.c.l.b16 %v5740
        %v5887 = vunpack.c.h.b16 %v5740
        %v5888 = vunpack.c.l.b16 %v5741
        %v5889 = vunpack.c.h.b16 %v5741
        %v5890 = vunpack.c.l.b16 %v5742
        %v5891 = vunpack.c.h.b16 %v5742
        %v5892 = vunpack.c.l.b16 %v5743
        %v5893 = vunpack.c.h.b16 %v5743
        %v5894 = vunpack.c.l.b16 %v5744
        %v5895 = vunpack.c.h.b16 %v5744
        %v5896 = vunpack.c.l.b16 %v5745
        %v5897 = vunpack.c.h.b16 %v5745
        %v5898 = vunpack.c.l.b16 %v5746
        %v5899 = vunpack.c.h.b16 %v5746
        %v5900 = vunpack.c.l.b16 %v5747
        %v5901 = vunpack.c.h.b16 %v5747
        %v5902 = vunpack.c.l.b16 %v5748
        %v5903 = vunpack.c.h.b16 %v5748
        %v5904 = vunpack.c.l.b16 %v5749
        %v5905 = vunpack.c.h.b16 %v5749
        %v5906 = vunpack.c.l.b16 %v5750
        %v5907 = vunpack.c.h.b16 %v5750
        %v5908 = vunpack.c.l.b16 %v5751
        %v5909 = vunpack.c.h.b16 %v5751
        %v5910 = vunpack.c.l.b16 %v5752
        %v5911 = vunpack.c.h.b16 %v5752
        %v5912 = vunpack.c.l.b16 %v5753
        %v5913 = vunpack.c.h.b16 %v5753
        %v5914 = vunpack.c.l.b16 %v5754
        %v5915 = vunpack.c.h.b16 %v5754
        %v5916 = vunpack.c.l.b16 %v5755
        %v5917 = vunpack.c.h.b16 %v5755
        %v5918 = vunpack.c.l.b16 %v5756
        %v5919 = vunpack.c.h.b16 %v5756
        %v5920 = vunpack.c.l.b16 %v5757
        %v5921 = vunpack.c.h.b16 %v5757
        %v5922 = vunpack.c.l.b16 %v5758
        %v5923 = vunpack.c.h.b16 %v5758
        %v5924 = vunpack.c.l.b16 %v5759
        %v5925 = vunpack.c.h.b16 %v5759
        %v5926 = vunpack.c.l.b16 %v5760
        %v5927 = vunpack.c.h.b16 %v5760
        %v5928 = vunpack.c.l.b16 %v5761
        %v5929 = vunpack.c.h.b16 %v5761
        %v5930 = vunpack.c.l.b16 %v5762
        %v5931 = vunpack.c.h.b16 %v5762
        %v5932 = vunpack.c.l.b16 %v5763
        %v5933 = vunpack.c.h.b16 %v5763
        %v5934 = vunpack.c.l.b16 %v5764
        %v5935 = vunpack.c.h.b16 %v5764
        %v5936 = vunpack.c.l.b16 %v5765
        %v5937 = vunpack.c.h.b16 %v5765
        %v5938 = vunpack.c.l.b16 %v5766
        %v5939 = vunpack.c.h.b16 %v5766
        %v5940 = vunpack.c.l.b16 %v5767
        %v5941 = vunpack.c.h.b16 %v5767
        %v5942 = vunpack.c.l.b16 %v5768
        %v5943 = vunpack.c.h.b16 %v5768
        %v5944 = vunpack.c.l.b16 %v5769
        %v5945 = vunpack.c.h.b16 %v5769
        %v5946 = vunpack.c.l.b16 %v5770
        %v5947 = vunpack.c.h.b16 %v5770
        %v5948 = vunpack.c.l.b16 %v5771
        %v5949 = vunpack.c.h.b16 %v5771
        %v5950 = vunpack.c.l.b16 %v5772
        %v5951 = vunpack.c.h.b16 %v5772
        %v5952 = vunpack.c.l.b16 %v5773
        %v5953 = vunpack.c.h.b16 %v5773
        %v5954 = vunpack.c.l.b16 %v5774
        %v5955 = vunpack.c.h.b16 %v5774
        %v5956 = vunpack.c.l.b16 %v5775
        %v5957 = vunpack.c.h.b16 %v5775
        %v5958 = vunpack.c.l.b16 %v5776
        %v5959 = vunpack.c.h.b16 %v5776
        %v5960 = vunpack.c.l.b16 %v5777
        %v5961 = vunpack.c.h.b16 %v5777
        %v5962 = vunpack.c.l.b16 %v5778
        %v5963 = vunpack.c.h.b16 %v5778
        %v5964 = vunpack.c.l.b16 %v5779
        %v5965 = vunpack.c.h.b16 %v5779
        %v5966 = vunpack.c.l.b16 %v5780
        %v5967 = vunpack.c.h.b16 %v5780
        %v5968 = vunpack.c.l.b16 %v5781
        %v5969 = vunpack.c.h.b16 %v5781
        %v5970 = vunpack.c.l.b16 %v5782
        %v5971 = vunpack.c.h.b16 %v5782
        %v5972 = vunpack.c.l.b16 %v5783
        %v5973 = vunpack.c.h.b16 %v5783
        %v5974 = vunpack.c.l.b16 %v5784
        %v5975 = vunpack.c.h.b16 %v5784
        %v5976 = vunpack.c.l.b16 %v5785
        %v5977 = vunpack.c.h.b16 %v5785
        %v5978 = vpack.c.b16 %v5854, %v5850
        %v5979 = vpack.c.b16 %v5855, %v5851
        %v5980 = vpack.c.b16 %v5856, %v5852
        %v5981 = vpack.c.b16 %v5857, %v5853
        %v5982 = vpack.c.b16 %v5862, %v5858
        %v5983 = vpack.c.b16 %v5863, %v5859
        %v5984 = vpack.c.b16 %v5864, %v5860
        %v5985 = vpack.c.b16 %v5865, %v5861
        %v5986 = vpack.c.b16 %v5870, %v5866
        %v5987 = vpack.c.b16 %v5871, %v5867
        %v5988 = vpack.c.b16 %v5872, %v5868
        %v5989 = vpack.c.b16 %v5873, %v5869
        %v5990 = vpack.c.b16 %v5878, %v5874
        %v5991 = vpack.c.b16 %v5879, %v5875
        %v5992 = vpack.c.b16 %v5880, %v5876
        %v5993 = vpack.c.b16 %v5881, %v5877
        %v5994 = vpack.c.b16 %v5886, %v5882
        %v5995 = vpack.c.b16 %v5887, %v5883
        %v5996 = vpack.c.b16 %v5888, %v5884
        %v5997 = vpack.c.b16 %v5889, %v5885
        %v5998 = vpack.c.b16 %v5894, %v5890
        %v5999 = vpack.c.b16 %v5895, %v5891
        %v6000 = vpack.c.b16 %v5896, %v5892
        %v6001 = vpack.c.b16 %v5897, %v5893
        %v6002 = vpack.c.b16 %v5902, %v5898
        %v6003 = vpack.c.b16 %v5903, %v5899
        %v6004 = vpack.c.b16 %v5904, %v5900
        %v6005 = vpack.c.b16 %v5905, %v5901
        %v6006 = vpack.c.b16 %v5910, %v5906
        %v6007 = vpack.c.b16 %v5911, %v5907
        %v6008 = vpack.c.b16 %v5912, %v5908
        %v6009 = vpack.c.b16 %v5913, %v5909
        %v6010 = vpack.c.b16 %v5918, %v5914
        %v6011 = vpack.c.b16 %v5919, %v5915
        %v6012 = vpack.c.b16 %v5920, %v5916
        %v6013 = vpack.c.b16 %v5921, %v5917
        %v6014 = vpack.c.b16 %v5926, %v5922
        %v6015 = vpack.c.b16 %v5927, %v5923
        %v6016 = vpack.c.b16 %v5928, %v5924
        %v6017 = vpack.c.b16 %v5929, %v5925
        %v6018 = vpack.c.b16 %v5934, %v5930
        %v6019 = vpack.c.b16 %v5935, %v5931
        %v6020 = vpack.c.b16 %v5936, %v5932
        %v6021 = vpack.c.b16 %v5937, %v5933
        %v6022 = vpack.c.b16 %v5942, %v5938
        %v6023 = vpack.c.b16 %v5943, %v5939
        %v6024 = vpack.c.b16 %v5944, %v5940
        %v6025 = vpack.c.b16 %v5945, %v5941
        %v6026 = vpack.c.b16 %v5950, %v5946
        %v6027 = vpack.c.b16 %v5951, %v5947
        %v6028 = vpack.c.b16 %v5952, %v5948
        %v6029 = vpack.c.b16 %v5953, %v5949
        %v6030 = vpack.c.b16 %v5958, %v5954
        %v6031 = vpack.c.b16 %v5959, %v5955
        %v6032 = vpack.c.b16 %v5960, %v5956
        %v6033 = vpack.c.b16 %v5961, %v5957
        %v6034 = vpack.c.b16 %v5966, %v5962
        %v6035 = vpack.c.b16 %v5967, %v5963
        %v6036 = vpack.c.b16 %v5968, %v5964
        %v6037 = vpack.c.b16 %v5969, %v5965
        %v6038 = vpack.c.b16 %v5974, %v5970
        %v6039 = vpack.c.b16 %v5975, %v5971
        %v6040 = vpack.c.b16 %v5976, %v5972
        %v6041 = vpack.c.b16 %v5977, %v5973
        %6106 = vmatpush.bf16.msra.mxu0 %v6006
        %6107 = vmatpush.bf16.msra.mxu0 %v6002
        %6108 = vmatpush.bf16.msra.mxu0 %v5998
        %6109 = vmatpush.bf16.msra.mxu0 %v5994
        %6110 = vmatpush.bf16.msra.mxu0 %v5990
        %6111 = vmatpush.bf16.msra.mxu0 %v5986
        %6112 = vmatpush.bf16.msra.mxu0 %v5982
        %6113 = vmatpush.bf16.msra.mxu0 %v5978
        %6114 = vmatmul.bf16.gmra.mxu0 %v5719
        %v6115 = vpop.f32.mrf.mxu0
        %v6116 = vadd.f32 0.0, %v6115
        %v6117 = vpop.f32.mrf.mxu0
        %6118 = vdwg.mxu0
        %6119 = vmatpush.bf16.msra.mxu0 %v6038
        %6120 = vmatpush.bf16.msra.mxu0 %v6034
        %6121 = vmatpush.bf16.msra.mxu0 %v6030
        %6122 = vmatpush.bf16.msra.mxu0 %v6026
        %6123 = vmatpush.bf16.msra.mxu0 %v6022
        %6124 = vmatpush.bf16.msra.mxu0 %v6018
        %6125 = vmatpush.bf16.msra.mxu0 %v6014
        %6126 = vmatpush.bf16.msra.mxu0 %v6010
        %6127 = vmatmul.bf16.gmra.mxu0 %v5720
        %v6128 = vpop.f32.mrf.mxu0
        %v6129 = vadd.f32 %v6116, %v6128
        %v6130 = vpop.f32.mrf.mxu0
        %6131 = vdwg.mxu0
        %6132 = vmatpush.bf16.msra.mxu0 %v6007
        %6133 = vmatpush.bf16.msra.mxu0 %v6003
        %6134 = vmatpush.bf16.msra.mxu0 %v5999
        %6135 = vmatpush.bf16.msra.mxu0 %v5995
        %6136 = vmatpush.bf16.msra.mxu0 %v5991
        %6137 = vmatpush.bf16.msra.mxu0 %v5987
        %6138 = vmatpush.bf16.msra.mxu0 %v5983
        %6139 = vmatpush.bf16.msra.mxu0 %v5979
        %6140 = vmatmul.bf16.gmra.mxu0 %v5719
        %v6141 = vpop.f32.mrf.mxu0
        %v6142 = vadd.f32 0.0, %v6141
        %v6143 = vpop.f32.mrf.mxu0
        %6144 = vdwg.mxu0
        %6145 = vmatpush.bf16.msra.mxu0 %v6039
        %6146 = vmatpush.bf16.msra.mxu0 %v6035
        %6147 = vmatpush.bf16.msra.mxu0 %v6031
        %6148 = vmatpush.bf16.msra.mxu0 %v6027
        %6149 = vmatpush.bf16.msra.mxu0 %v6023
        %6150 = vmatpush.bf16.msra.mxu0 %v6019
        %6151 = vmatpush.bf16.msra.mxu0 %v6015
        %6152 = vmatpush.bf16.msra.mxu0 %v6011
        %6153 = vmatmul.bf16.gmra.mxu0 %v5720
        %v6154 = vpop.f32.mrf.mxu0
        %v6155 = vadd.f32 %v6142, %v6154
        %v6156 = vpop.f32.mrf.mxu0
        %6157 = vdwg.mxu0
        %6158 = vmatpush.bf16.msra.mxu0 %v6008
        %6159 = vmatpush.bf16.msra.mxu0 %v6004
        %6160 = vmatpush.bf16.msra.mxu0 %v6000
        %6161 = vmatpush.bf16.msra.mxu0 %v5996
        %6162 = vmatpush.bf16.msra.mxu0 %v5992
        %6163 = vmatpush.bf16.msra.mxu0 %v5988
        %6164 = vmatpush.bf16.msra.mxu0 %v5984
        %6165 = vmatpush.bf16.msra.mxu0 %v5980
        %6166 = vmatmul.bf16.gmra.mxu0 %v5719
        %v6167 = vpop.f32.mrf.mxu0
        %v6168 = vadd.f32 0.0, %v6167
        %v6169 = vpop.f32.mrf.mxu0
        %6170 = vdwg.mxu0
        %6171 = vmatpush.bf16.msra.mxu0 %v6040
        %6172 = vmatpush.bf16.msra.mxu0 %v6036
        %6173 = vmatpush.bf16.msra.mxu0 %v6032
        %6174 = vmatpush.bf16.msra.mxu0 %v6028
        %6175 = vmatpush.bf16.msra.mxu0 %v6024
        %6176 = vmatpush.bf16.msra.mxu0 %v6020
        %6177 = vmatpush.bf16.msra.mxu0 %v6016
        %6178 = vmatpush.bf16.msra.mxu0 %v6012
        %6179 = vmatmul.bf16.gmra.mxu0 %v5720
        %v6180 = vpop.f32.mrf.mxu0
        %v6181 = vadd.f32 %v6168, %v6180
        %v6182 = vpop.f32.mrf.mxu0
        %6183 = vdwg.mxu0
        %6184 = vmatpush.bf16.msra.mxu0 %v6009
        %6185 = vmatpush.bf16.msra.mxu0 %v6005
        %6186 = vmatpush.bf16.msra.mxu0 %v6001
        %6187 = vmatpush.bf16.msra.mxu0 %v5997
        %6188 = vmatpush.bf16.msra.mxu0 %v5993
        %6189 = vmatpush.bf16.msra.mxu0 %v5989
        %6190 = vmatpush.bf16.msra.mxu0 %v5985
        %6191 = vmatpush.bf16.msra.mxu0 %v5981
        %6192 = vmatmul.bf16.gmra.mxu0 %v5719
        %v6193 = vpop.f32.mrf.mxu0
        %v6194 = vadd.f32 0.0, %v6193
        %v6195 = vpop.f32.mrf.mxu0
        %6196 = vdwg.mxu0
        %6197 = vmatpush.bf16.msra.mxu0 %v6041
        %6198 = vmatpush.bf16.msra.mxu0 %v6037
        %6199 = vmatpush.bf16.msra.mxu0 %v6033
        %6200 = vmatpush.bf16.msra.mxu0 %v6029
        %6201 = vmatpush.bf16.msra.mxu0 %v6025
        %6202 = vmatpush.bf16.msra.mxu0 %v6021
        %6203 = vmatpush.bf16.msra.mxu0 %v6017
        %6204 = vmatpush.bf16.msra.mxu0 %v6013
        %6205 = vmatmul.bf16.gmra.mxu0 %v5720
        %v6206 = vpop.f32.mrf.mxu0
        %v6207 = vadd.f32 %v6194, %v6206
        %v6208 = vpop.f32.mrf.mxu0
        %6209 = vdwg.mxu0
        %v6210 = vadd.f32 %v5638, %v6129
        %v6211 = vadd.f32 %v5664, %v6155
        %v6212 = vadd.f32 %v5690, %v6181
        %v6213 = vadd.f32 %v5716, %v6207
        %v6214 = vpack.c.bf16 %v4736, %v4736
        %v6215 = vpack.c.bf16 %v4737, %v4737
        %s6216 = scalar_lea.vmem [#allocation11], 1536
        %v6217 = vld [vmem:[%s6216] sm:$0xff]
        %v6218 = vld [vmem:[%s6216 + $0x8] sm:$0xff]
        %v6219 = vld [vmem:[%s6216 + $0x10] sm:$0xff]
        %v6220 = vld [vmem:[%s6216 + $0x18] sm:$0xff]
        %v6221 = vld [vmem:[%s6216 + $0x20] sm:$0xff]
        %v6222 = vld [vmem:[%s6216 + $0x28] sm:$0xff]
        %v6223 = vld [vmem:[%s6216 + $0x30] sm:$0xff]
        %v6224 = vld [vmem:[%s6216 + $0x38] sm:$0xff]
        %v6225 = vld [vmem:[%s6216 + $0x40] sm:$0xff]
        %v6226 = vld [vmem:[%s6216 + $0x48] sm:$0xff]
        %v6227 = vld [vmem:[%s6216 + $0x50] sm:$0xff]
        %v6228 = vld [vmem:[%s6216 + $0x58] sm:$0xff]
        %v6229 = vld [vmem:[%s6216 + $0x60] sm:$0xff]
        %v6230 = vld [vmem:[%s6216 + $0x68] sm:$0xff]
        %v6231 = vld [vmem:[%s6216 + $0x70] sm:$0xff]
        %v6232 = vld [vmem:[%s6216 + $0x78] sm:$0xff]
        %v6233 = vld [vmem:[%s6216 + $0x80] sm:$0xff]
        %v6234 = vld [vmem:[%s6216 + $0x88] sm:$0xff]
        %v6235 = vld [vmem:[%s6216 + $0x90] sm:$0xff]
        %v6236 = vld [vmem:[%s6216 + $0x98] sm:$0xff]
        %v6237 = vld [vmem:[%s6216 + $0xa0] sm:$0xff]
        %v6238 = vld [vmem:[%s6216 + $0xa8] sm:$0xff]
        %v6239 = vld [vmem:[%s6216 + $0xb0] sm:$0xff]
        %v6240 = vld [vmem:[%s6216 + $0xb8] sm:$0xff]
        %v6241 = vld [vmem:[%s6216 + $0xc0] sm:$0xff]
        %v6242 = vld [vmem:[%s6216 + $0xc8] sm:$0xff]
        %v6243 = vld [vmem:[%s6216 + $0xd0] sm:$0xff]
        %v6244 = vld [vmem:[%s6216 + $0xd8] sm:$0xff]
        %v6245 = vld [vmem:[%s6216 + $0xe0] sm:$0xff]
        %v6246 = vld [vmem:[%s6216 + $0xe8] sm:$0xff]
        %v6247 = vld [vmem:[%s6216 + $0xf0] sm:$0xff]
        %v6248 = vld [vmem:[%s6216 + $0xf8] sm:$0xff]
        %v6249 = vld [vmem:[%s6216 + $0x100] sm:$0xff]
        %v6250 = vld [vmem:[%s6216 + $0x108] sm:$0xff]
        %v6251 = vld [vmem:[%s6216 + $0x110] sm:$0xff]
        %v6252 = vld [vmem:[%s6216 + $0x118] sm:$0xff]
        %v6253 = vld [vmem:[%s6216 + $0x120] sm:$0xff]
        %v6254 = vld [vmem:[%s6216 + $0x128] sm:$0xff]
        %v6255 = vld [vmem:[%s6216 + $0x130] sm:$0xff]
        %v6256 = vld [vmem:[%s6216 + $0x138] sm:$0xff]
        %v6257 = vld [vmem:[%s6216 + $0x140] sm:$0xff]
        %v6258 = vld [vmem:[%s6216 + $0x148] sm:$0xff]
        %v6259 = vld [vmem:[%s6216 + $0x150] sm:$0xff]
        %v6260 = vld [vmem:[%s6216 + $0x158] sm:$0xff]
        %v6261 = vld [vmem:[%s6216 + $0x160] sm:$0xff]
        %v6262 = vld [vmem:[%s6216 + $0x168] sm:$0xff]
        %v6263 = vld [vmem:[%s6216 + $0x170] sm:$0xff]
        %v6264 = vld [vmem:[%s6216 + $0x178] sm:$0xff]
        %v6265 = vld [vmem:[%s6216 + $0x180] sm:$0xff]
        %v6266 = vld [vmem:[%s6216 + $0x188] sm:$0xff]
        %v6267 = vld [vmem:[%s6216 + $0x190] sm:$0xff]
        %v6268 = vld [vmem:[%s6216 + $0x198] sm:$0xff]
        %v6269 = vld [vmem:[%s6216 + $0x1a0] sm:$0xff]
        %v6270 = vld [vmem:[%s6216 + $0x1a8] sm:$0xff]
        %v6271 = vld [vmem:[%s6216 + $0x1b0] sm:$0xff]
        %v6272 = vld [vmem:[%s6216 + $0x1b8] sm:$0xff]
        %v6273 = vld [vmem:[%s6216 + $0x1c0] sm:$0xff]
        %v6274 = vld [vmem:[%s6216 + $0x1c8] sm:$0xff]
        %v6275 = vld [vmem:[%s6216 + $0x1d0] sm:$0xff]
        %v6276 = vld [vmem:[%s6216 + $0x1d8] sm:$0xff]
        %v6277 = vld [vmem:[%s6216 + $0x1e0] sm:$0xff]
        %v6278 = vld [vmem:[%s6216 + $0x1e8] sm:$0xff]
        %v6279 = vld [vmem:[%s6216 + $0x1f0] sm:$0xff]
        %v6280 = vld [vmem:[%s6216 + $0x1f8] sm:$0xff]
        %v6345 = vunpack.c.l.b16 %v6217
        %v6346 = vunpack.c.h.b16 %v6217
        %v6347 = vunpack.c.l.b16 %v6218
        %v6348 = vunpack.c.h.b16 %v6218
        %v6349 = vunpack.c.l.b16 %v6219
        %v6350 = vunpack.c.h.b16 %v6219
        %v6351 = vunpack.c.l.b16 %v6220
        %v6352 = vunpack.c.h.b16 %v6220
        %v6353 = vunpack.c.l.b16 %v6221
        %v6354 = vunpack.c.h.b16 %v6221
        %v6355 = vunpack.c.l.b16 %v6222
        %v6356 = vunpack.c.h.b16 %v6222
        %v6357 = vunpack.c.l.b16 %v6223
        %v6358 = vunpack.c.h.b16 %v6223
        %v6359 = vunpack.c.l.b16 %v6224
        %v6360 = vunpack.c.h.b16 %v6224
        %v6361 = vunpack.c.l.b16 %v6225
        %v6362 = vunpack.c.h.b16 %v6225
        %v6363 = vunpack.c.l.b16 %v6226
        %v6364 = vunpack.c.h.b16 %v6226
        %v6365 = vunpack.c.l.b16 %v6227
        %v6366 = vunpack.c.h.b16 %v6227
        %v6367 = vunpack.c.l.b16 %v6228
        %v6368 = vunpack.c.h.b16 %v6228
        %v6369 = vunpack.c.l.b16 %v6229
        %v6370 = vunpack.c.h.b16 %v6229
        %v6371 = vunpack.c.l.b16 %v6230
        %v6372 = vunpack.c.h.b16 %v6230
        %v6373 = vunpack.c.l.b16 %v6231
        %v6374 = vunpack.c.h.b16 %v6231
        %v6375 = vunpack.c.l.b16 %v6232
        %v6376 = vunpack.c.h.b16 %v6232
        %v6377 = vunpack.c.l.b16 %v6233
        %v6378 = vunpack.c.h.b16 %v6233
        %v6379 = vunpack.c.l.b16 %v6234
        %v6380 = vunpack.c.h.b16 %v6234
        %v6381 = vunpack.c.l.b16 %v6235
        %v6382 = vunpack.c.h.b16 %v6235
        %v6383 = vunpack.c.l.b16 %v6236
        %v6384 = vunpack.c.h.b16 %v6236
        %v6385 = vunpack.c.l.b16 %v6237
        %v6386 = vunpack.c.h.b16 %v6237
        %v6387 = vunpack.c.l.b16 %v6238
        %v6388 = vunpack.c.h.b16 %v6238
        %v6389 = vunpack.c.l.b16 %v6239
        %v6390 = vunpack.c.h.b16 %v6239
        %v6391 = vunpack.c.l.b16 %v6240
        %v6392 = vunpack.c.h.b16 %v6240
        %v6393 = vunpack.c.l.b16 %v6241
        %v6394 = vunpack.c.h.b16 %v6241
        %v6395 = vunpack.c.l.b16 %v6242
        %v6396 = vunpack.c.h.b16 %v6242
        %v6397 = vunpack.c.l.b16 %v6243
        %v6398 = vunpack.c.h.b16 %v6243
        %v6399 = vunpack.c.l.b16 %v6244
        %v6400 = vunpack.c.h.b16 %v6244
        %v6401 = vunpack.c.l.b16 %v6245
        %v6402 = vunpack.c.h.b16 %v6245
        %v6403 = vunpack.c.l.b16 %v6246
        %v6404 = vunpack.c.h.b16 %v6246
        %v6405 = vunpack.c.l.b16 %v6247
        %v6406 = vunpack.c.h.b16 %v6247
        %v6407 = vunpack.c.l.b16 %v6248
        %v6408 = vunpack.c.h.b16 %v6248
        %v6409 = vunpack.c.l.b16 %v6249
        %v6410 = vunpack.c.h.b16 %v6249
        %v6411 = vunpack.c.l.b16 %v6250
        %v6412 = vunpack.c.h.b16 %v6250
        %v6413 = vunpack.c.l.b16 %v6251
        %v6414 = vunpack.c.h.b16 %v6251
        %v6415 = vunpack.c.l.b16 %v6252
        %v6416 = vunpack.c.h.b16 %v6252
        %v6417 = vunpack.c.l.b16 %v6253
        %v6418 = vunpack.c.h.b16 %v6253
        %v6419 = vunpack.c.l.b16 %v6254
        %v6420 = vunpack.c.h.b16 %v6254
        %v6421 = vunpack.c.l.b16 %v6255
        %v6422 = vunpack.c.h.b16 %v6255
        %v6423 = vunpack.c.l.b16 %v6256
        %v6424 = vunpack.c.h.b16 %v6256
        %v6425 = vunpack.c.l.b16 %v6257
        %v6426 = vunpack.c.h.b16 %v6257
        %v6427 = vunpack.c.l.b16 %v6258
        %v6428 = vunpack.c.h.b16 %v6258
        %v6429 = vunpack.c.l.b16 %v6259
        %v6430 = vunpack.c.h.b16 %v6259
        %v6431 = vunpack.c.l.b16 %v6260
        %v6432 = vunpack.c.h.b16 %v6260
        %v6433 = vunpack.c.l.b16 %v6261
        %v6434 = vunpack.c.h.b16 %v6261
        %v6435 = vunpack.c.l.b16 %v6262
        %v6436 = vunpack.c.h.b16 %v6262
        %v6437 = vunpack.c.l.b16 %v6263
        %v6438 = vunpack.c.h.b16 %v6263
        %v6439 = vunpack.c.l.b16 %v6264
        %v6440 = vunpack.c.h.b16 %v6264
        %v6441 = vunpack.c.l.b16 %v6265
        %v6442 = vunpack.c.h.b16 %v6265
        %v6443 = vunpack.c.l.b16 %v6266
        %v6444 = vunpack.c.h.b16 %v6266
        %v6445 = vunpack.c.l.b16 %v6267
        %v6446 = vunpack.c.h.b16 %v6267
        %v6447 = vunpack.c.l.b16 %v6268
        %v6448 = vunpack.c.h.b16 %v6268
        %v6449 = vunpack.c.l.b16 %v6269
        %v6450 = vunpack.c.h.b16 %v6269
        %v6451 = vunpack.c.l.b16 %v6270
        %v6452 = vunpack.c.h.b16 %v6270
        %v6453 = vunpack.c.l.b16 %v6271
        %v6454 = vunpack.c.h.b16 %v6271
        %v6455 = vunpack.c.l.b16 %v6272
        %v6456 = vunpack.c.h.b16 %v6272
        %v6457 = vunpack.c.l.b16 %v6273
        %v6458 = vunpack.c.h.b16 %v6273
        %v6459 = vunpack.c.l.b16 %v6274
        %v6460 = vunpack.c.h.b16 %v6274
        %v6461 = vunpack.c.l.b16 %v6275
        %v6462 = vunpack.c.h.b16 %v6275
        %v6463 = vunpack.c.l.b16 %v6276
        %v6464 = vunpack.c.h.b16 %v6276
        %v6465 = vunpack.c.l.b16 %v6277
        %v6466 = vunpack.c.h.b16 %v6277
        %v6467 = vunpack.c.l.b16 %v6278
        %v6468 = vunpack.c.h.b16 %v6278
        %v6469 = vunpack.c.l.b16 %v6279
        %v6470 = vunpack.c.h.b16 %v6279
        %v6471 = vunpack.c.l.b16 %v6280
        %v6472 = vunpack.c.h.b16 %v6280
        %v6473 = vpack.c.b16 %v6349, %v6345
        %v6474 = vpack.c.b16 %v6350, %v6346
        %v6475 = vpack.c.b16 %v6351, %v6347
        %v6476 = vpack.c.b16 %v6352, %v6348
        %v6477 = vpack.c.b16 %v6357, %v6353
        %v6478 = vpack.c.b16 %v6358, %v6354
        %v6479 = vpack.c.b16 %v6359, %v6355
        %v6480 = vpack.c.b16 %v6360, %v6356
        %v6481 = vpack.c.b16 %v6365, %v6361
        %v6482 = vpack.c.b16 %v6366, %v6362
        %v6483 = vpack.c.b16 %v6367, %v6363
        %v6484 = vpack.c.b16 %v6368, %v6364
        %v6485 = vpack.c.b16 %v6373, %v6369
        %v6486 = vpack.c.b16 %v6374, %v6370
        %v6487 = vpack.c.b16 %v6375, %v6371
        %v6488 = vpack.c.b16 %v6376, %v6372
        %v6489 = vpack.c.b16 %v6381, %v6377
        %v6490 = vpack.c.b16 %v6382, %v6378
        %v6491 = vpack.c.b16 %v6383, %v6379
        %v6492 = vpack.c.b16 %v6384, %v6380
        %v6493 = vpack.c.b16 %v6389, %v6385
        %v6494 = vpack.c.b16 %v6390, %v6386
        %v6495 = vpack.c.b16 %v6391, %v6387
        %v6496 = vpack.c.b16 %v6392, %v6388
        %v6497 = vpack.c.b16 %v6397, %v6393
        %v6498 = vpack.c.b16 %v6398, %v6394
        %v6499 = vpack.c.b16 %v6399, %v6395
        %v6500 = vpack.c.b16 %v6400, %v6396
        %v6501 = vpack.c.b16 %v6405, %v6401
        %v6502 = vpack.c.b16 %v6406, %v6402
        %v6503 = vpack.c.b16 %v6407, %v6403
        %v6504 = vpack.c.b16 %v6408, %v6404
        %v6505 = vpack.c.b16 %v6413, %v6409
        %v6506 = vpack.c.b16 %v6414, %v6410
        %v6507 = vpack.c.b16 %v6415, %v6411
        %v6508 = vpack.c.b16 %v6416, %v6412
        %v6509 = vpack.c.b16 %v6421, %v6417
        %v6510 = vpack.c.b16 %v6422, %v6418
        %v6511 = vpack.c.b16 %v6423, %v6419
        %v6512 = vpack.c.b16 %v6424, %v6420
        %v6513 = vpack.c.b16 %v6429, %v6425
        %v6514 = vpack.c.b16 %v6430, %v6426
        %v6515 = vpack.c.b16 %v6431, %v6427
        %v6516 = vpack.c.b16 %v6432, %v6428
        %v6517 = vpack.c.b16 %v6437, %v6433
        %v6518 = vpack.c.b16 %v6438, %v6434
        %v6519 = vpack.c.b16 %v6439, %v6435
        %v6520 = vpack.c.b16 %v6440, %v6436
        %v6521 = vpack.c.b16 %v6445, %v6441
        %v6522 = vpack.c.b16 %v6446, %v6442
        %v6523 = vpack.c.b16 %v6447, %v6443
        %v6524 = vpack.c.b16 %v6448, %v6444
        %v6525 = vpack.c.b16 %v6453, %v6449
        %v6526 = vpack.c.b16 %v6454, %v6450
        %v6527 = vpack.c.b16 %v6455, %v6451
        %v6528 = vpack.c.b16 %v6456, %v6452
        %v6529 = vpack.c.b16 %v6461, %v6457
        %v6530 = vpack.c.b16 %v6462, %v6458
        %v6531 = vpack.c.b16 %v6463, %v6459
        %v6532 = vpack.c.b16 %v6464, %v6460
        %v6533 = vpack.c.b16 %v6469, %v6465
        %v6534 = vpack.c.b16 %v6470, %v6466
        %v6535 = vpack.c.b16 %v6471, %v6467
        %v6536 = vpack.c.b16 %v6472, %v6468
        %6601 = vmatpush.bf16.msra.mxu0 %v6501
        %6602 = vmatpush.bf16.msra.mxu0 %v6497
        %6603 = vmatpush.bf16.msra.mxu0 %v6493
        %6604 = vmatpush.bf16.msra.mxu0 %v6489
        %6605 = vmatpush.bf16.msra.mxu0 %v6485
        %6606 = vmatpush.bf16.msra.mxu0 %v6481
        %6607 = vmatpush.bf16.msra.mxu0 %v6477
        %6608 = vmatpush.bf16.msra.mxu0 %v6473
        %6609 = vmatmul.bf16.gmra.mxu0 %v6214
        %v6610 = vpop.f32.mrf.mxu0
        %v6611 = vadd.f32 0.0, %v6610
        %v6612 = vpop.f32.mrf.mxu0
        %6613 = vdwg.mxu0
        %6614 = vmatpush.bf16.msra.mxu0 %v6533
        %6615 = vmatpush.bf16.msra.mxu0 %v6529
        %6616 = vmatpush.bf16.msra.mxu0 %v6525
        %6617 = vmatpush.bf16.msra.mxu0 %v6521
        %6618 = vmatpush.bf16.msra.mxu0 %v6517
        %6619 = vmatpush.bf16.msra.mxu0 %v6513
        %6620 = vmatpush.bf16.msra.mxu0 %v6509
        %6621 = vmatpush.bf16.msra.mxu0 %v6505
        %6622 = vmatmul.bf16.gmra.mxu0 %v6215
        %v6623 = vpop.f32.mrf.mxu0
        %v6624 = vadd.f32 %v6611, %v6623
        %v6625 = vpop.f32.mrf.mxu0
        %6626 = vdwg.mxu0
        %6627 = vmatpush.bf16.msra.mxu0 %v6502
        %6628 = vmatpush.bf16.msra.mxu0 %v6498
        %6629 = vmatpush.bf16.msra.mxu0 %v6494
        %6630 = vmatpush.bf16.msra.mxu0 %v6490
        %6631 = vmatpush.bf16.msra.mxu0 %v6486
        %6632 = vmatpush.bf16.msra.mxu0 %v6482
        %6633 = vmatpush.bf16.msra.mxu0 %v6478
        %6634 = vmatpush.bf16.msra.mxu0 %v6474
        %6635 = vmatmul.bf16.gmra.mxu0 %v6214
        %v6636 = vpop.f32.mrf.mxu0
        %v6637 = vadd.f32 0.0, %v6636
        %v6638 = vpop.f32.mrf.mxu0
        %6639 = vdwg.mxu0
        %6640 = vmatpush.bf16.msra.mxu0 %v6534
        %6641 = vmatpush.bf16.msra.mxu0 %v6530
        %6642 = vmatpush.bf16.msra.mxu0 %v6526
        %6643 = vmatpush.bf16.msra.mxu0 %v6522
        %6644 = vmatpush.bf16.msra.mxu0 %v6518
        %6645 = vmatpush.bf16.msra.mxu0 %v6514
        %6646 = vmatpush.bf16.msra.mxu0 %v6510
        %6647 = vmatpush.bf16.msra.mxu0 %v6506
        %6648 = vmatmul.bf16.gmra.mxu0 %v6215
        %v6649 = vpop.f32.mrf.mxu0
        %v6650 = vadd.f32 %v6637, %v6649
        %v6651 = vpop.f32.mrf.mxu0
        %6652 = vdwg.mxu0
        %6653 = vmatpush.bf16.msra.mxu0 %v6503
        %6654 = vmatpush.bf16.msra.mxu0 %v6499
        %6655 = vmatpush.bf16.msra.mxu0 %v6495
        %6656 = vmatpush.bf16.msra.mxu0 %v6491
        %6657 = vmatpush.bf16.msra.mxu0 %v6487
        %6658 = vmatpush.bf16.msra.mxu0 %v6483
        %6659 = vmatpush.bf16.msra.mxu0 %v6479
        %6660 = vmatpush.bf16.msra.mxu0 %v6475
        %6661 = vmatmul.bf16.gmra.mxu0 %v6214
        %v6662 = vpop.f32.mrf.mxu0
        %v6663 = vadd.f32 0.0, %v6662
        %v6664 = vpop.f32.mrf.mxu0
        %6665 = vdwg.mxu0
        %6666 = vmatpush.bf16.msra.mxu0 %v6535
        %6667 = vmatpush.bf16.msra.mxu0 %v6531
        %6668 = vmatpush.bf16.msra.mxu0 %v6527
        %6669 = vmatpush.bf16.msra.mxu0 %v6523
        %6670 = vmatpush.bf16.msra.mxu0 %v6519
        %6671 = vmatpush.bf16.msra.mxu0 %v6515
        %6672 = vmatpush.bf16.msra.mxu0 %v6511
        %6673 = vmatpush.bf16.msra.mxu0 %v6507
        %6674 = vmatmul.bf16.gmra.mxu0 %v6215
        %v6675 = vpop.f32.mrf.mxu0
        %v6676 = vadd.f32 %v6663, %v6675
        %v6677 = vpop.f32.mrf.mxu0
        %6678 = vdwg.mxu0
        %6679 = vmatpush.bf16.msra.mxu0 %v6504
        %6680 = vmatpush.bf16.msra.mxu0 %v6500
        %6681 = vmatpush.bf16.msra.mxu0 %v6496
        %6682 = vmatpush.bf16.msra.mxu0 %v6492
        %6683 = vmatpush.bf16.msra.mxu0 %v6488
        %6684 = vmatpush.bf16.msra.mxu0 %v6484
        %6685 = vmatpush.bf16.msra.mxu0 %v6480
        %6686 = vmatpush.bf16.msra.mxu0 %v6476
        %6687 = vmatmul.bf16.gmra.mxu0 %v6214
        %v6688 = vpop.f32.mrf.mxu0
        %v6689 = vadd.f32 0.0, %v6688
        %v6690 = vpop.f32.mrf.mxu0
        %6691 = vdwg.mxu0
        %6692 = vmatpush.bf16.msra.mxu0 %v6536
        %6693 = vmatpush.bf16.msra.mxu0 %v6532
        %6694 = vmatpush.bf16.msra.mxu0 %v6528
        %6695 = vmatpush.bf16.msra.mxu0 %v6524
        %6696 = vmatpush.bf16.msra.mxu0 %v6520
        %6697 = vmatpush.bf16.msra.mxu0 %v6516
        %6698 = vmatpush.bf16.msra.mxu0 %v6512
        %6699 = vmatpush.bf16.msra.mxu0 %v6508
        %6700 = vmatmul.bf16.gmra.mxu0 %v6215
        %v6701 = vpop.f32.mrf.mxu0
        %v6702 = vadd.f32 %v6689, %v6701
        %v6703 = vpop.f32.mrf.mxu0
        %6704 = vdwg.mxu0
        %v6705 = vadd.f32 %v6210, %v6624
        %v6706 = vadd.f32 %v6211, %v6650
        %v6707 = vadd.f32 %v6212, %v6676
        %v6708 = vadd.f32 %v6213, %v6702
        %v6709 = vld [vmem:[#allocation13] sm:$0xf]
        %v6711 = vperm.slane %v6709, 0
        %v6712 = vperm.slane %v6709, 1
        %v6713 = vperm.slane %v6709, 2
        %v6714 = vperm.slane %v6709, 3
        %v6719 = vadd.f32 %v6705, %v6711
        %v6720 = vadd.f32 %v6706, %v6712
        %v6721 = vadd.f32 %v6707, %v6713
        %v6722 = vadd.f32 %v6708, %v6714
        %v6723 = vmax.f32 %v6719, 0.0
        %v6724 = vmax.f32 %v6720, 0.0
        %v6725 = vmax.f32 %v6721, 0.0
        %v6726 = vmax.f32 %v6722, 0.0
        %v6727 = vpack.c.bf16 %v6723, %v6723
        %v6728 = vpack.c.bf16 %v6724, %v6724
        %v6729 = vpack.c.bf16 %v6725, %v6725
        %v6730 = vpack.c.bf16 %v6726, %v6726
        %v6731 = vld [vmem:[#allocation14] sm:$0xf]
        %v6732 = vld [vmem:[#allocation14 + $0x4] sm:$0xf]
        %v6733 = vld [vmem:[#allocation14 + $0x8] sm:$0xf]
        %v6734 = vld [vmem:[#allocation14 + $0xc] sm:$0xf]
        %v6735 = vld [vmem:[#allocation14 + $0x10] sm:$0xf]
        %v6736 = vld [vmem:[#allocation14 + $0x14] sm:$0xf]
        %v6737 = vld [vmem:[#allocation14 + $0x18] sm:$0xf]
        %v6738 = vld [vmem:[#allocation14 + $0x1c] sm:$0xf]
        %v6739 = vld [vmem:[#allocation14 + $0x20] sm:$0xf]
        %v6740 = vld [vmem:[#allocation14 + $0x24] sm:$0xf]
        %v6741 = vld [vmem:[#allocation14 + $0x28] sm:$0xf]
        %v6742 = vld [vmem:[#allocation14 + $0x2c] sm:$0xf]
        %v6743 = vld [vmem:[#allocation14 + $0x30] sm:$0xf]
        %v6744 = vld [vmem:[#allocation14 + $0x34] sm:$0xf]
        %v6745 = vld [vmem:[#allocation14 + $0x38] sm:$0xf]
        %v6746 = vld [vmem:[#allocation14 + $0x3c] sm:$0xf]
        %v6747 = vld [vmem:[#allocation14 + $0x40] sm:$0xf]
        %v6748 = vld [vmem:[#allocation14 + $0x44] sm:$0xf]
        %v6749 = vld [vmem:[#allocation14 + $0x48] sm:$0xf]
        %v6750 = vld [vmem:[#allocation14 + $0x4c] sm:$0xf]
        %v6751 = vld [vmem:[#allocation14 + $0x50] sm:$0xf]
        %v6752 = vld [vmem:[#allocation14 + $0x54] sm:$0xf]
        %v6753 = vld [vmem:[#allocation14 + $0x58] sm:$0xf]
        %v6754 = vld [vmem:[#allocation14 + $0x5c] sm:$0xf]
        %v6755 = vld [vmem:[#allocation14 + $0x60] sm:$0xf]
        %v6756 = vld [vmem:[#allocation14 + $0x64] sm:$0xf]
        %v6757 = vld [vmem:[#allocation14 + $0x68] sm:$0xf]
        %v6758 = vld [vmem:[#allocation14 + $0x6c] sm:$0xf]
        %v6759 = vld [vmem:[#allocation14 + $0x70] sm:$0xf]
        %v6760 = vld [vmem:[#allocation14 + $0x74] sm:$0xf]
        %v6761 = vld [vmem:[#allocation14 + $0x78] sm:$0xf]
        %v6762 = vld [vmem:[#allocation14 + $0x7c] sm:$0xf]
        %v6763 = vld [vmem:[#allocation14 + $0x80] sm:$0xf]
        %v6764 = vld [vmem:[#allocation14 + $0x84] sm:$0xf]
        %v6765 = vld [vmem:[#allocation14 + $0x88] sm:$0xf]
        %v6766 = vld [vmem:[#allocation14 + $0x8c] sm:$0xf]
        %v6767 = vld [vmem:[#allocation14 + $0x90] sm:$0xf]
        %v6768 = vld [vmem:[#allocation14 + $0x94] sm:$0xf]
        %v6769 = vld [vmem:[#allocation14 + $0x98] sm:$0xf]
        %v6770 = vld [vmem:[#allocation14 + $0x9c] sm:$0xf]
        %v6771 = vld [vmem:[#allocation14 + $0xa0] sm:$0xf]
        %v6772 = vld [vmem:[#allocation14 + $0xa4] sm:$0xf]
        %v6773 = vld [vmem:[#allocation14 + $0xa8] sm:$0xf]
        %v6774 = vld [vmem:[#allocation14 + $0xac] sm:$0xf]
        %v6775 = vld [vmem:[#allocation14 + $0xb0] sm:$0xf]
        %v6776 = vld [vmem:[#allocation14 + $0xb4] sm:$0xf]
        %v6777 = vld [vmem:[#allocation14 + $0xb8] sm:$0xf]
        %v6778 = vld [vmem:[#allocation14 + $0xbc] sm:$0xf]
        %v6779 = vld [vmem:[#allocation14 + $0xc0] sm:$0xf]
        %v6780 = vld [vmem:[#allocation14 + $0xc4] sm:$0xf]
        %v6781 = vld [vmem:[#allocation14 + $0xc8] sm:$0xf]
        %v6782 = vld [vmem:[#allocation14 + $0xcc] sm:$0xf]
        %v6783 = vld [vmem:[#allocation14 + $0xd0] sm:$0xf]
        %v6784 = vld [vmem:[#allocation14 + $0xd4] sm:$0xf]
        %v6785 = vld [vmem:[#allocation14 + $0xd8] sm:$0xf]
        %v6786 = vld [vmem:[#allocation14 + $0xdc] sm:$0xf]
        %v6787 = vld [vmem:[#allocation14 + $0xe0] sm:$0xf]
        %v6788 = vld [vmem:[#allocation14 + $0xe4] sm:$0xf]
        %v6789 = vld [vmem:[#allocation14 + $0xe8] sm:$0xf]
        %v6790 = vld [vmem:[#allocation14 + $0xec] sm:$0xf]
        %v6791 = vld [vmem:[#allocation14 + $0xf0] sm:$0xf]
        %v6792 = vld [vmem:[#allocation14 + $0xf4] sm:$0xf]
        %v6793 = vld [vmem:[#allocation14 + $0xf8] sm:$0xf]
        %v6794 = vld [vmem:[#allocation14 + $0xfc] sm:$0xf]
        %v6795 = vld [vmem:[#allocation16] sm:$0x1]
        %v6797 = vperm.slane %v6795, 0
        %v6863 = vunpack.c.l.b16 %v6731
        %v6864 = vunpack.c.l.b16 %v6732
        %v6865 = vunpack.c.l.b16 %v6733
        %v6866 = vunpack.c.l.b16 %v6734
        %v6867 = vunpack.c.l.b16 %v6735
        %v6868 = vunpack.c.l.b16 %v6736
        %v6869 = vunpack.c.l.b16 %v6737
        %v6870 = vunpack.c.l.b16 %v6738
        %v6871 = vunpack.c.l.b16 %v6739
        %v6872 = vunpack.c.l.b16 %v6740
        %v6873 = vunpack.c.l.b16 %v6741
        %v6874 = vunpack.c.l.b16 %v6742
        %v6875 = vunpack.c.l.b16 %v6743
        %v6876 = vunpack.c.l.b16 %v6744
        %v6877 = vunpack.c.l.b16 %v6745
        %v6878 = vunpack.c.l.b16 %v6746
        %v6879 = vunpack.c.l.b16 %v6747
        %v6880 = vunpack.c.l.b16 %v6748
        %v6881 = vunpack.c.l.b16 %v6749
        %v6882 = vunpack.c.l.b16 %v6750
        %v6883 = vunpack.c.l.b16 %v6751
        %v6884 = vunpack.c.l.b16 %v6752
        %v6885 = vunpack.c.l.b16 %v6753
        %v6886 = vunpack.c.l.b16 %v6754
        %v6887 = vunpack.c.l.b16 %v6755
        %v6888 = vunpack.c.l.b16 %v6756
        %v6889 = vunpack.c.l.b16 %v6757
        %v6890 = vunpack.c.l.b16 %v6758
        %v6891 = vunpack.c.l.b16 %v6759
        %v6892 = vunpack.c.l.b16 %v6760
        %v6893 = vunpack.c.l.b16 %v6761
        %v6894 = vunpack.c.l.b16 %v6762
        %v6895 = vunpack.c.l.b16 %v6763
        %v6896 = vunpack.c.l.b16 %v6764
        %v6897 = vunpack.c.l.b16 %v6765
        %v6898 = vunpack.c.l.b16 %v6766
        %v6899 = vunpack.c.l.b16 %v6767
        %v6900 = vunpack.c.l.b16 %v6768
        %v6901 = vunpack.c.l.b16 %v6769
        %v6902 = vunpack.c.l.b16 %v6770
        %v6903 = vunpack.c.l.b16 %v6771
        %v6904 = vunpack.c.l.b16 %v6772
        %v6905 = vunpack.c.l.b16 %v6773
        %v6906 = vunpack.c.l.b16 %v6774
        %v6907 = vunpack.c.l.b16 %v6775
        %v6908 = vunpack.c.l.b16 %v6776
        %v6909 = vunpack.c.l.b16 %v6777
        %v6910 = vunpack.c.l.b16 %v6778
        %v6911 = vunpack.c.l.b16 %v6779
        %v6912 = vunpack.c.l.b16 %v6780
        %v6913 = vunpack.c.l.b16 %v6781
        %v6914 = vunpack.c.l.b16 %v6782
        %v6915 = vunpack.c.l.b16 %v6783
        %v6916 = vunpack.c.l.b16 %v6784
        %v6917 = vunpack.c.l.b16 %v6785
        %v6918 = vunpack.c.l.b16 %v6786
        %v6919 = vunpack.c.l.b16 %v6787
        %v6920 = vunpack.c.l.b16 %v6788
        %v6921 = vunpack.c.l.b16 %v6789
        %v6922 = vunpack.c.l.b16 %v6790
        %v6923 = vunpack.c.l.b16 %v6791
        %v6924 = vunpack.c.l.b16 %v6792
        %v6925 = vunpack.c.l.b16 %v6793
        %v6926 = vunpack.c.l.b16 %v6794
        %v6927 = vpack.c.b16 %v6864, %v6863
        %v6928 = vpack.c.b16 %v6866, %v6865
        %v6929 = vpack.c.b16 %v6868, %v6867
        %v6930 = vpack.c.b16 %v6870, %v6869
        %v6931 = vpack.c.b16 %v6872, %v6871
        %v6932 = vpack.c.b16 %v6874, %v6873
        %v6933 = vpack.c.b16 %v6876, %v6875
        %v6934 = vpack.c.b16 %v6878, %v6877
        %v6935 = vpack.c.b16 %v6880, %v6879
        %v6936 = vpack.c.b16 %v6882, %v6881
        %v6937 = vpack.c.b16 %v6884, %v6883
        %v6938 = vpack.c.b16 %v6886, %v6885
        %v6939 = vpack.c.b16 %v6888, %v6887
        %v6940 = vpack.c.b16 %v6890, %v6889
        %v6941 = vpack.c.b16 %v6892, %v6891
        %v6942 = vpack.c.b16 %v6894, %v6893
        %v6943 = vpack.c.b16 %v6896, %v6895
        %v6944 = vpack.c.b16 %v6898, %v6897
        %v6945 = vpack.c.b16 %v6900, %v6899
        %v6946 = vpack.c.b16 %v6902, %v6901
        %v6947 = vpack.c.b16 %v6904, %v6903
        %v6948 = vpack.c.b16 %v6906, %v6905
        %v6949 = vpack.c.b16 %v6908, %v6907
        %v6950 = vpack.c.b16 %v6910, %v6909
        %v6951 = vpack.c.b16 %v6912, %v6911
        %v6952 = vpack.c.b16 %v6914, %v6913
        %v6953 = vpack.c.b16 %v6916, %v6915
        %v6954 = vpack.c.b16 %v6918, %v6917
        %v6955 = vpack.c.b16 %v6920, %v6919
        %v6956 = vpack.c.b16 %v6922, %v6921
        %v6957 = vpack.c.b16 %v6924, %v6923
        %v6958 = vpack.c.b16 %v6926, %v6925
        %6991 = vmatpush.bf16.msra.mxu0 %v6934
        %6992 = vmatpush.bf16.msra.mxu0 %v6933
        %6993 = vmatpush.bf16.msra.mxu0 %v6932
        %6994 = vmatpush.bf16.msra.mxu0 %v6931
        %6995 = vmatpush.bf16.msra.mxu0 %v6930
        %6996 = vmatpush.bf16.msra.mxu0 %v6929
        %6997 = vmatpush.bf16.msra.mxu0 %v6928
        %6998 = vmatpush.bf16.msra.mxu0 %v6927
        %6999 = vmatmul.bf16.gmra.mxu0 %v6727
        %v7000 = vpop.f32.mrf.mxu0
        %v7001 = vadd.f32 %v6797, %v7000
        %v7002 = vpop.f32.mrf.mxu0
        %7003 = vdwg.mxu0
        %7004 = vmatpush.bf16.msra.mxu0 %v6942
        %7005 = vmatpush.bf16.msra.mxu0 %v6941
        %7006 = vmatpush.bf16.msra.mxu0 %v6940
        %7007 = vmatpush.bf16.msra.mxu0 %v6939
        %7008 = vmatpush.bf16.msra.mxu0 %v6938
        %7009 = vmatpush.bf16.msra.mxu0 %v6937
        %7010 = vmatpush.bf16.msra.mxu0 %v6936
        %7011 = vmatpush.bf16.msra.mxu0 %v6935
        %7012 = vmatmul.bf16.gmra.mxu0 %v6728
        %v7013 = vpop.f32.mrf.mxu0
        %v7014 = vadd.f32 %v7001, %v7013
        %v7015 = vpop.f32.mrf.mxu0
        %7016 = vdwg.mxu0
        %7017 = vmatpush.bf16.msra.mxu0 %v6950
        %7018 = vmatpush.bf16.msra.mxu0 %v6949
        %7019 = vmatpush.bf16.msra.mxu0 %v6948
        %7020 = vmatpush.bf16.msra.mxu0 %v6947
        %7021 = vmatpush.bf16.msra.mxu0 %v6946
        %7022 = vmatpush.bf16.msra.mxu0 %v6945
        %7023 = vmatpush.bf16.msra.mxu0 %v6944
        %7024 = vmatpush.bf16.msra.mxu0 %v6943
        %7025 = vmatmul.bf16.gmra.mxu0 %v6729
        %v7026 = vpop.f32.mrf.mxu0
        %v7027 = vadd.f32 %v7014, %v7026
        %v7028 = vpop.f32.mrf.mxu0
        %7029 = vdwg.mxu0
        %7030 = vmatpush.bf16.msra.mxu0 %v6958
        %7031 = vmatpush.bf16.msra.mxu0 %v6957
        %7032 = vmatpush.bf16.msra.mxu0 %v6956
        %7033 = vmatpush.bf16.msra.mxu0 %v6955
        %7034 = vmatpush.bf16.msra.mxu0 %v6954
        %7035 = vmatpush.bf16.msra.mxu0 %v6953
        %7036 = vmatpush.bf16.msra.mxu0 %v6952
        %7037 = vmatpush.bf16.msra.mxu0 %v6951
        %7038 = vmatmul.bf16.gmra.mxu0 %v6730
        %v7039 = vpop.f32.mrf.mxu0
        %v7040 = vadd.f32 %v7027, %v7039
        %v7041 = vpop.f32.mrf.mxu0
        %7042 = vdwg.mxu0
        %7043 = vmax.xlane.f32.xlu0 %v7040
        %v7044 = vpop.xlane.xlu0 %7043
        %v7045 = vsub.f32 %v7040, %v7044
        %v7046 = vmul.f32 %v7045, 1.442695
        %v7047 = vpow.pop %v7046
        %7048 = vadd.xlane.f32.xlu0 %v7047
        %v7049 = vpop.xlane.xlu0 %7048
        %v7050 = vlog2.pop %v7049
        %v7051 = vmul.f32 %v7050, 0.6931472
        %v7052 = vadd.f32 %v7051, %v7044
        %v7053 = vsub.f32 %v7040, %v7052
        %7054 = vst [vmem:[%s476] sm:$0xff] %v7053
        %s7055 = sand.u32 %s232, 1
        %s7056 = scalar_lea.sflag [#allocation4], %s7055
        %s7057 = sand.u32 %s232, 1
        %s7058 = smul.addr %s7057, 8
        %s7059 = scalar_lea.vmem [#allocation17], %s7058
        // Predicated region
        $region93: #{tpu_custom_call.1} parent=55 // pred_check
          %p7060 = pneg %p242
        $region94: #{tpu_custom_call.1} parent=55 // pred_check_branch
          %7062 = sbr.rel (%p7060) target = $region96
        $region95: #{tpu_custom_call.1} parent=55 // pred_region
          %7064 = vsyncadd %s7056, 0
          %s7065 = smul.addr %s30, 8
          %s7066 = scalar_lea.hbm %s9, %s7065
          %s7068 = sshll.u32 %s7059, 4
          %s7069 = int_to_ptr.vmem [resolvable:$true] %s7068
          %s7070 = sshll.u32 %s7066, 4
          %s7071 = int_to_ptr.hbm [resolvable:$true] %s7070
          %7073 = dma.vmem_to_hbm [thread:$0]  %s7069, 128, %s7071, %s7056
        $region96: #{tpu_custom_call.1} parent=55 // pred_fallthru
          _
      $region56: #{tpu_custom_call.1} parent=5 // pred_fallthru
        _
      %p7074 = scmp.le.s32.totalorder 2, %s25
      // Predicated region
      $region97: #{tpu_custom_call.1} parent=5 // pred_check
        %p7075 = pneg %p7074
      $region98: #{tpu_custom_call.1} parent=5 // pred_check_branch
        %7077 = sbr.rel (%p7075) target = $region100
      $region99: #{tpu_custom_call.1} parent=5 // pred_region
        %s7078 = ssub.s32 %s25, 2
        // Predicated region
        $region101: #{tpu_custom_call.1} parent=99 // pred_check
          %p7079 = pneg %p248
        $region102: #{tpu_custom_call.1} parent=99 // pred_check_branch
          %7081 = sbr.rel (%p7079) target = $region104
        $region103: #{tpu_custom_call.1} parent=99 // pred_region
          %s7082 = sand.u32 %s233, 1
          %s7083 = scalar_lea.sflag [#allocation4], %s7082
          %s7084 = sand.u32 %s233, 1
          %s7085 = smul.addr %s7084, 8
          %s7086 = scalar_lea.vmem [#allocation17], %s7085
          %7088 = dma.done %s7083, 128
        $region104: #{tpu_custom_call.1} parent=99 // pred_fallthru
          _
      $region100: #{tpu_custom_call.1} parent=5 // pred_fallthru
        _
    $region6: #{tpu_custom_call.1} parent=1 // loop_footer
      %s29 = sadd.s32 1, %s25
    $region7: #{tpu_custom_call.1} parent=1 // loop_footer_branch
      %24 = sbr.rel target = $region3
    $region8: #{tpu_custom_call.1} parent=1 // loop_exit
      _
    %7089 = vsyncpa [#allocation3], 1
    %s7090 = scalar_lea.sflag [#allocation3], 1
    %7091 = vsyncpa %s7090, 1
    %7092 = vsyncpa [#allocation6], 1
    %7093 = vsyncpa [#allocation9], 1
    %7094 = vsyncpa [#allocation12], 1
    %7095 = vsyncpa [#allocation15], 1
    %7096 = vsyncpa [#allocation4], 1
    %s7097 = scalar_lea.sflag [#allocation4], 1
    %7098 = vsyncpa %s7097, 1

</llo_original>
